<compile_context>
chip_gen: v7x
topology: tpu7x:2x2x1
jax: 0.10.0
libtpu: 0.0.40
codegen_flags: <defaults>
</compile_context>

<pallas_src>
from functools import partial

import jax
import jax.numpy as jnp
import numpy as np
from jax.experimental import pallas as pl
from jax.experimental.pallas import tpu as pltpu


# ----------------------------------------------------------------------------
# Fused bidirectional GRU kernel (input projection + recurrence + masking,
# and the direction sum when the sequence fits one time chunk)
# ----------------------------------------------------------------------------
def _bigru_fused_kernel(*refs, hidden_size, batch, chunk, padded_len,
                        fuse_sum, unroll):
    """Grid axis 0 = time chunk (sequential / "arbitrary").

    Forward direction processes global times i*chunk + s; backward processes
    padded_len - 1 - (i*chunk + s).  Hidden states are carried across grid
    iterations inside the resident hn output block (constant index_map).
    """
    H = hidden_size
    B = batch
    G3 = 3 * H

    if fuse_sum:
        (len_ref, x_ref, wih_ref, whh_ref, bih_ref, bhh_ref,
         out_ref, hn_ref, gif_s, gib_s, outb_s) = refs
    else:
        (len_ref, xf_ref, xb_ref, wih_ref, whh_ref, bih_ref, bhh_ref,
         out_f_ref, out_b_ref, hn_ref, gif_s, gib_s) = refs

    i = pl.program_id(0)

    @pl.when(i == 0)
    def _init():
        hn_ref[...] = jnp.zeros_like(hn_ref)

    # ---- fused per-chunk input projection: gi never round-trips HBM ----
    bih = bih_ref[...]                          # (1, 6H) f32  [fwd 3H | bwd 3H]
    if fuse_sum:
        # Single time chunk: fwd and bwd share the same x rows -> one wide
        # (TC*B, H) @ (H, 6H) matmul produces both directions' projections.
        gi_all = jnp.dot(x_ref[...], wih_ref[...],
                         preferred_element_type=jnp.float32) + bih
        gif_s[...] = gi_all[:, :G3]
        gib_s[...] = gi_all[:, G3:]
    else:
        # Different x chunks per direction -> two exact-FLOP matmuls.
        gif_s[...] = (jnp.dot(xf_ref[...], wih_ref[:, :G3],
                              preferred_element_type=jnp.float32) + bih[:, :G3])
        gib_s[...] = (jnp.dot(xb_ref[...], wih_ref[:, G3:],
                              preferred_element_type=jnp.float32) + bih[:, G3:])

    lengths = len_ref[...]                      # (B, 1) int32
    whh = whh_ref[...]                          # (2H, 6H) block-diagonal
    bhh = bhh_ref[...]                          # (1, 6H) f32
    # Hidden carry lives in the resident hn block; concat once per chunk.
    h_cat0 = jnp.concatenate([hn_ref[0], hn_ref[1]], axis=-1)    # (B, 2H)

    def step(s, h_cat):
        t_f = i * chunk + s                     # forward global time
        t_b = padded_len - 1 - t_f              # backward global time
        rf = s * B                              # row offsets (static multiples
        rb = (chunk - 1 - s) * B                #   of B once unrolled)

        # ONE MXU op per step for BOTH directions' recurrent projection.
        gh = (jnp.dot(h_cat.astype(whh.dtype), whh,
                      preferred_element_type=jnp.float32) + bhh)   # (B, 6H)
        gi_f = gif_s[pl.ds(rf, B), :]           # (B, 3H), gate order [r z n]
        gi_b = gib_s[pl.ds(rb, B), :]

        # PyTorch GRU gate order (r, z, n); b_hn stays inside the r* term.
        rz_f = jax.nn.sigmoid(gi_f[:, :2 * H] + gh[:, :2 * H])
        rz_b = jax.nn.sigmoid(gi_b[:, :2 * H] + gh[:, G3:G3 + 2 * H])
        n_f = jnp.tanh(gi_f[:, 2 * H:] + rz_f[:, :H] * gh[:, 2 * H:G3])
        n_b = jnp.tanh(gi_b[:, 2 * H:] + rz_b[:, :H] * gh[:, G3 + 2 * H:])
        h_f = h_cat[:, :H]
        h_b = h_cat[:, H:]
        hf_new = n_f + rz_f[:, H:] * (h_f - n_f)        # == (1-z)*n + z*h
        hb_new = n_b + rz_b[:, H:] * (h_b - n_b)

        # pack/pad mask built in-kernel from lengths (no (T,B,1) mask DMAs).
        mf = lengths > t_f                      # (B, 1) bool
        mb = lengths > t_b
        hf_next = jnp.where(mf, hf_new, h_f)
        hb_next = jnp.where(mb, hb_new, h_b)
        of = jnp.where(mf, hf_next, 0.0)
        ob = jnp.where(mb, hb_next, 0.0)

        if fuse_sum:
            out_ref[pl.ds(rf, B), :] = of       # forward contribution
            outb_s[pl.ds(rb, B), :] = ob        # backward -> VMEM accumulator
        else:
            out_f_ref[pl.ds(rf, B), :] = of
            out_b_ref[pl.ds(rb, B), :] = ob
        return jnp.concatenate([hf_next, hb_next], axis=-1)

    h_cat = jax.lax.fori_loop(0, chunk, step, h_cat0, unroll=unroll)

    hn_ref[0] = h_cat[:, :H]
    hn_ref[1] = h_cat[:, H:]

    if fuse_sum:
        # Direction sum fused in-kernel: the old stage-3 HBM round trip and
        # extra kernel launch are gone.
        out_ref[...] = out_ref[...] + outb_s[...]


# ----------------------------------------------------------------------------
# Fallback (multi-chunk only): lane-dense tiled sum of the two directions
# ----------------------------------------------------------------------------
def _sum_dirs_kernel(a_ref, b_ref, o_ref):
    o_ref[...] = a_ref[...] + b_ref[...]


# ----------------------------------------------------------------------------
# Wrapper
# ----------------------------------------------------------------------------
def encoder_rnn_forward(input_seq, input_lengths, params, *, time_chunk=None,
                        compute_dtype=jnp.float32):
    """input_seq: (T, B) int32 token ids; input_lengths: (B,) int32 (max == T).

    compute_dtype: dtype of the matmul operands (x / weights / h).  Use
    jnp.bfloat16 on v6e/v7x to halve weight/x VMEM+HBM bytes and ~2x MXU rate;
    accumulation, gate math and the hidden state always stay f32.
    """
    T, B = input_seq.shape
    H = params["hidden_size"]
    G3, G6 = 3 * H, 6 * H
    itemsize = jnp.dtype(compute_dtype).itemsize

    # ---- time chunk: default = largest chunk that fits a conservative VMEM
    #      budget (so T=16 -> one chunk -> one grid step, fully fused path) ----
    if time_chunk is None:
        per_step = B * H * (2 * itemsize + 40)      # x + gi + out + accumulator
        time_chunk = max(1, (16 << 20) // max(per_step, 1))
    TC = max(1, min(time_chunk, T))
    NC = -(-T // TC)
    T_pad = NC * TC
    fuse_sum = NC == 1

    # TODO(synk): the embedding gather could be fused into the kernel via
    # scalar-prefetched token ids + per-row DMA gather; at H=32 the 128-byte
    # row DMAs lose to XLA's batched gather, so it is kept as XLA glue.
    embedded = params["embedding"][input_seq]                   # (T, B, H) f32
    if T_pad != T:
        # Padded steps have t >= length for every sequence -> fully masked.
        embedded = jnp.pad(embedded, ((0, T_pad - T), (0, 0), (0, 0)))
    x2d = embedded.reshape(T_pad * B, H).astype(compute_dtype)

    # ---- derived fused weights (built once in XLA, outside the kernel) ----
    wih_cat = jnp.concatenate([params["wih_f_t"], params["wih_b_t"]],
                              axis=-1).astype(compute_dtype)        # (H, 6H)
    bih_cat = jnp.concatenate([params["bih_f"], params["bih_b"]], axis=-1)
    # Block-diagonal recurrent weight -> one MXU op per step for both dirs.
    whh_blk = jnp.zeros((2 * H, G6), jnp.float32)
    whh_blk = whh_blk.at[:H, :G3].set(params["whh_f_t"])
    whh_blk = whh_blk.at[H:, G3:].set(params["whh_b_t"])
    whh_blk = whh_blk.astype(compute_dtype)
    bhh_cat = jnp.concatenate([params["bhh_f"], params["bhh_b"]], axis=-1)
    lengths2d = input_lengths.reshape(B, 1).astype(jnp.int32)

    # ---- right-sized VMEM limit (v7x has only 64 MiB/TC; cap well below) ----
    n_x = 1 if fuse_sum else 2
    n_out = 1 if fuse_sum else 2
    blk_bytes = (n_x * TC * B * H * itemsize                    # x chunks
                 + 3 * H * G6 * itemsize + 2 * G6 * 4           # weights+biases
                 + n_out * TC * B * H * 4 + 2 * B * H * 4       # outputs + h_n
                 + B * 4)                                       # lengths
    scratch_bytes = 2 * TC * B * G3 * 4 + (TC * B * H * 4 if fuse_sum else 0)
    vmem_limit = int(min(2 * (2 * blk_bytes + scratch_bytes) + (1 << 20),
                         32 << 20))

    # Full unroll for short chunks; bounded unroll for long ones (vreg pressure).
    unroll = True if TC <= 16 else 8
    kern = partial(_bigru_fused_kernel, hidden_size=H, batch=B, chunk=TC,
                   padded_len=T_pad, fuse_sum=fuse_sum, unroll=unroll)

    len_spec = pl.BlockSpec((B, 1), lambda i: (0, 0))
    w_specs = [pl.BlockSpec((H, G6), lambda i: (0, 0)),         # wih_cat
               pl.BlockSpec((2 * H, G6), lambda i: (0, 0)),     # whh_blk
               pl.BlockSpec((1, G6), lambda i: (0, 0)),         # bih_cat
               pl.BlockSpec((1, G6), lambda i: (0, 0))]         # bhh_cat
    x_fwd_spec = pl.BlockSpec((TC * B, H), lambda i: (i, 0))
    hn_spec = pl.BlockSpec((2, B, H), lambda i: (0, 0, 0))
    cparams = pltpu.CompilerParams(
        dimension_semantics=("arbitrary",),   # sequential: hidden carry across chunks
        vmem_limit_bytes=vmem_limit)

    if fuse_sum:
        out2d, h_n = pl.pallas_call(
            kern, grid=(NC,),
            in_specs=[len_spec, x_fwd_spec] + w_specs,
            out_specs=[pl.BlockSpec((TC * B, H), lambda i: (i, 0)), hn_spec],
            out_shape=[jax.ShapeDtypeStruct((T_pad * B, H), jnp.float32),
                       jax.ShapeDtypeStruct((2, B, H), jnp.float32)],
            scratch_shapes=[pltpu.VMEM((TC * B, G3), jnp.float32),
                            pltpu.VMEM((TC * B, G3), jnp.float32),
                            pltpu.VMEM((TC * B, H), jnp.float32)],
            compiler_params=cparams,
        )(lengths2d, x2d, wih_cat, whh_blk, bih_cat, bhh_cat)
        outputs = out2d.reshape(T_pad, B, H)[:T]
        return outputs, h_n

    # ---- multi-chunk fallback: per-direction outputs + lane-dense sum ----
    x_bwd_spec = pl.BlockSpec((TC * B, H), lambda i: (NC - 1 - i, 0))
    out_f2d, out_b2d, h_n = pl.pallas_call(
        kern, grid=(NC,),
        in_specs=[len_spec, x_fwd_spec, x_bwd_spec] + w_specs,
        out_specs=[pl.BlockSpec((TC * B, H), lambda i: (i, 0)),
                   pl.BlockSpec((TC * B, H), lambda i: (NC - 1 - i, 0)),
                   hn_spec],
        out_shape=[jax.ShapeDtypeStruct((T_pad * B, H), jnp.float32),
                   jax.ShapeDtypeStruct((T_pad * B, H), jnp.float32),
                   jax.ShapeDtypeStruct((2, B, H), jnp.float32)],
        scratch_shapes=[pltpu.VMEM((TC * B, G3), jnp.float32),
                        pltpu.VMEM((TC * B, G3), jnp.float32)],
        compiler_params=cparams,
    )(lengths2d, x2d, x2d, wih_cat, whh_blk, bih_cat, bhh_cat)

    # Lane-dense (last dim = B*H) tiled add of the two directions.
    a2 = out_f2d.reshape(T_pad, B * H)
    b2 = out_b2d.reshape(T_pad, B * H)
    BR = T_pad if T_pad * B * H * 4 * 3 <= (8 << 20) else TC
    summed = pl.pallas_call(
        _sum_dirs_kernel, grid=(T_pad // BR,),
        in_specs=[pl.BlockSpec((BR, B * H), lambda r: (r, 0)),
                  pl.BlockSpec((BR, B * H), lambda r: (r, 0))],
        out_specs=pl.BlockSpec((BR, B * H), lambda r: (r, 0)),
        out_shape=jax.ShapeDtypeStruct((T_pad, B * H), jnp.float32),
        compiler_params=pltpu.CompilerParams(
            dimension_semantics=("parallel",)),
    )(a2, b2)
    outputs = summed.reshape(T_pad, B, H)[:T]
    return outputs, h_n


# ----------------------------------------------------------------------------
# Pure-JAX reference (mirrors PyTorch GRU math) for validation
# ----------------------------------------------------------------------------
def _reference_forward(input_seq, input_lengths, params):
    T, B = input_seq.shape
    H = params["hidden_size"]
    x = params["embedding"][input_seq]                       # (T, B, H)
    mask = (jnp.arange(T)[:, None] < input_lengths[None, :]).astype(jnp.float32)
    hi = jax.lax.Precision.HIGHEST

    def cell(xt, h, wih_t, whh_t, bih, bhh):
        gi = jnp.dot(xt, wih_t, precision=hi) + bih
        gh = jnp.dot(h, whh_t, precision=hi) + bhh
        r = jax.nn.sigmoid(gi[:, :H] + gh[:, :H])
        z = jax.nn.sigmoid(gi[:, H:2 * H] + gh[:, H:2 * H])
        n = jnp.tanh(gi[:, 2 * H:] + r * gh[:, 2 * H:])
        return (1.0 - z) * n + z * h

    def fwd_step(h, inp):
        xt, mt = inp
        h_new = cell(xt, h, params["wih_f_t"], params["whh_f_t"],
                     params["bih_f"], params["bhh_f"])
        h = jnp.where(mt[:, None] > 0, h_new, h)
        return h, jnp.where(mt[:, None] > 0, h, 0.0)

    def bwd_step(h, inp):
        xt, mt = inp
        h_new = cell(xt, h, params["wih_b_t"], params["whh_b_t"],
                     params["bih_b"], params["bhh_b"])
        h = jnp.where(mt[:, None] > 0, h_new, h)
        return h, jnp.where(mt[:, None] > 0, h, 0.0)

    h0 = jnp.zeros((B, H), jnp.float32)
    hf, out_f = jax.lax.scan(fwd_step, h0, (x, mask))
    hb, out_b_rev = jax.lax.scan(bwd_step, h0, (x[::-1], mask[::-1]))
    out_b = out_b_rev[::-1]
    return out_f + out_b, jnp.stack([hf, hb], axis=0)


# ----------------------------------------------------------------------------
# Parameter init (deterministic, PyTorch-style shapes)
# ----------------------------------------------------------------------------
def init_params(key, vocab_size, hidden_size):
    H = hidden_size
    ks = jax.random.split(key, 9)
    bound = 1.0 / np.sqrt(H)
    u = lambda k, shape: jax.random.uniform(k, shape, jnp.float32, -bound, bound)
    return {
        "hidden_size": H,
        "embedding": jax.random.normal(ks[0], (vocab_size, H), jnp.float32),
        # stored transposed: (H, 3H), gate (column) order = [r | z | n]
        "wih_f_t": u(ks[1], (3 * H, H)).T,
        "whh_f_t": u(ks[2], (3 * H, H)).T,
        "bih_f": u(ks[3], (1, 3 * H)),
        "bhh_f": u(ks[4], (1, 3 * H)),
        "wih_b_t": u(ks[5], (3 * H, H)).T,
        "whh_b_t": u(ks[6], (3 * H, H)).T,
        "bih_b": u(ks[7], (1, 3 * H)),
        "bhh_b": u(ks[8], (1, 3 * H)),
    }


if __name__ == "__main__":
    T, B, H, VOCAB = 16, 8, 32, 20

    key = jax.random.PRNGKey(0)
    k_tok, k_par = jax.random.split(key)

    input_seq = jax.random.randint(k_tok, (T, B), 0, VOCAB, dtype=jnp.int32)
    # sorted-descending lengths, max == T (pack_padded_sequence convention)
    input_lengths = jnp.array([16, 15, 12, 10, 9, 7, 4, 2], dtype=jnp.int32)
    params = init_params(k_par, VOCAB, H)

    ref_out, ref_hid = _reference_forward(input_seq, input_lengths, params)

    # Fast path: single time chunk -> fused input projection, recurrence,
    # masking and in-kernel direction sum (one sequential pallas_call).
    outputs, hidden = encoder_rnn_forward(input_seq, input_lengths, params)
    jax.block_until_ready((outputs, hidden))
    np.testing.assert_allclose(np.asarray(outputs), np.asarray(ref_out),
                               rtol=1e-4, atol=1e-5)
    np.testing.assert_allclose(np.asarray(hidden), np.asarray(ref_hid),
                               rtol=1e-4, atol=1e-5)
    assert outputs.shape == (T, B, H) and hidden.shape == (2, B, H)

    # Multi-chunk path: exercises the cross-chunk hidden carry and the
    # lane-dense fallback direction-sum kernel.
    out_mc, hid_mc = encoder_rnn_forward(input_seq, input_lengths, params,
                                         time_chunk=8)
    jax.block_until_ready((out_mc, hid_mc))
    np.testing.assert_allclose(np.asarray(out_mc), np.asarray(ref_out),
                               rtol=1e-4, atol=1e-5)
    np.testing.assert_allclose(np.asarray(hid_mc), np.asarray(ref_hid),
                               rtol=1e-4, atol=1e-5)

    # bf16 matmul operands (v6e/v7x recommendation); gate math stays f32.
    out_bf, hid_bf = encoder_rnn_forward(input_seq, input_lengths, params,
                                         compute_dtype=jnp.bfloat16)
    jax.block_until_ready((out_bf, hid_bf))
    assert bool(jnp.all(jnp.isfinite(out_bf))) and bool(
        jnp.all(jnp.isfinite(hid_bf)))
    assert float(jnp.max(jnp.abs(out_bf - ref_out))) < 0.25

    print("KERNEL_OK")
</pallas_src>

<mosaic_0001>
module attributes {stable_mosaic.version = 11 : i64} {
  func.func @_bigru_fused_kernel(%arg0: i32, %arg1: memref<8x1xi32, #tpu.memory_space<vmem>>, %arg2: memref<128x32xf32, #tpu.memory_space<vmem>>, %arg3: memref<32x192xf32, #tpu.memory_space<vmem>>, %arg4: memref<64x192xf32, #tpu.memory_space<vmem>>, %arg5: memref<1x192xf32, #tpu.memory_space<vmem>>, %arg6: memref<1x192xf32, #tpu.memory_space<vmem>>, %arg7: memref<128x32xf32, #tpu.memory_space<vmem>>, %arg8: memref<2x8x32xf32, #tpu.memory_space<vmem>>, %arg9: memref<128x96xf32, #tpu.memory_space<vmem>>, %arg10: memref<128x96xf32, #tpu.memory_space<vmem>>, %arg11: memref<128x32xf32, #tpu.memory_space<vmem>>) attributes {dimension_semantics = [#tpu.dimension_semantics<arbitrary>], iteration_bounds = array<i64: 1>, scalar_prefetch = 0 : i64, scratch_operands = 3 : i64, tpu.core_type = #tpu.core_type<tc>, window_params = [{pipeline_mode = #tpu.pipeline_mode<synchronous>, transform_indices = @transform_0, window_bounds = array<i64: 8, 1>}, {transform_indices = @transform_1, window_bounds = array<i64: 128, 32>}, {pipeline_mode = #tpu.pipeline_mode<synchronous>, transform_indices = @transform_2, window_bounds = array<i64: 32, 192>}, {pipeline_mode = #tpu.pipeline_mode<synchronous>, transform_indices = @transform_3, window_bounds = array<i64: 64, 192>}, {pipeline_mode = #tpu.pipeline_mode<synchronous>, transform_indices = @transform_4, window_bounds = array<i64: 1, 192>}, {pipeline_mode = #tpu.pipeline_mode<synchronous>, transform_indices = @transform_5, window_bounds = array<i64: 1, 192>}, {transform_indices = @transform_6, window_bounds = array<i64: 128, 32>}, {pipeline_mode = #tpu.pipeline_mode<synchronous>, transform_indices = @transform_7, window_bounds = array<i64: 2, 8, 32>}]} {
    %c0_i32 = arith.constant 0 : i32
    %0 = arith.cmpi eq, %arg0, %c0_i32 : i32
    %1 = arith.extui %0 : i1 to i32
    %c0_i32_0 = arith.constant 0 : i32
    %2 = arith.cmpi ne, %1, %c0_i32_0 : i32
    scf.if %2 {
      %cst_258 = arith.constant 0.000000e+00 : f32
      %1217 = vector.broadcast %cst_258 : f32 to vector<2x8x32xf32>
      %c0_259 = arith.constant 0 : index
      %c0_260 = arith.constant 0 : index
      %c0_261 = arith.constant 0 : index
      %1218 = vector.load %arg8[%c0_259, %c0_260, %c0_261] : memref<2x8x32xf32, #tpu.memory_space<vmem>>, vector<2x8x32xf32>
      tpu.vector_store %arg8[%c0_259, %c0_260, %c0_261], %1217 {strides = array<i32>} : memref<2x8x32xf32, #tpu.memory_space<vmem>>, vector<2x8x32xf32>,
    } else {
    }
    %c0 = arith.constant 0 : index
    %c0_1 = arith.constant 0 : index
    %3 = vector.load %arg5[%c0, %c0_1] : memref<1x192xf32, #tpu.memory_space<vmem>>, vector<1x192xf32>
    %c0_2 = arith.constant 0 : index
    %c0_3 = arith.constant 0 : index
    %4 = vector.load %arg2[%c0_2, %c0_3] : memref<128x32xf32, #tpu.memory_space<vmem>>, vector<128x32xf32>
    %c0_4 = arith.constant 0 : index
    %c0_5 = arith.constant 0 : index
    %5 = vector.load %arg3[%c0_4, %c0_5] : memref<32x192xf32, #tpu.memory_space<vmem>>, vector<32x192xf32>
    %cst = arith.constant dense<0.000000e+00> : vector<128x192xf32>
    %6 = tpu.matmul %4, %5, %cst {dimension_numbers = #tpu.dot_dimension_numbers<[1], [0], [0], [1], [0, 0, 1, 1], [], []>} : vector<128x32xf32>, vector<32x192xf32>, vector<128x192xf32> -> vector<128x192xf32>
    %7 = vector.broadcast %3 : vector<1x192xf32> to vector<128x192xf32>
    %8 = arith.addf %6, %7 : vector<128x192xf32>
    %9 = vector.extract_strided_slice %8 {offsets = [0, 0], sizes = [128, 96], strides = [1, 1]} : vector<128x192xf32> to vector<128x96xf32>
    %c0_6 = arith.constant 0 : index
    %c0_7 = arith.constant 0 : index
    %10 = vector.load %arg9[%c0_6, %c0_7] : memref<128x96xf32, #tpu.memory_space<vmem>>, vector<128x96xf32>
    tpu.vector_store %arg9[%c0_6, %c0_7], %9 {strides = array<i32>} : memref<128x96xf32, #tpu.memory_space<vmem>>, vector<128x96xf32>,
    %11 = vector.extract_strided_slice %8 {offsets = [0, 96], sizes = [128, 96], strides = [1, 1]} : vector<128x192xf32> to vector<128x96xf32>
    %c0_8 = arith.constant 0 : index
    %c0_9 = arith.constant 0 : index
    %12 = vector.load %arg10[%c0_8, %c0_9] : memref<128x96xf32, #tpu.memory_space<vmem>>, vector<128x96xf32>
    tpu.vector_store %arg10[%c0_8, %c0_9], %11 {strides = array<i32>} : memref<128x96xf32, #tpu.memory_space<vmem>>, vector<128x96xf32>,
    %c0_10 = arith.constant 0 : index
    %c0_11 = arith.constant 0 : index
    %13 = vector.load %arg1[%c0_10, %c0_11] : memref<8x1xi32, #tpu.memory_space<vmem>>, vector<8x1xi32>
    %c0_12 = arith.constant 0 : index
    %c0_13 = arith.constant 0 : index
    %14 = vector.load %arg4[%c0_12, %c0_13] : memref<64x192xf32, #tpu.memory_space<vmem>>, vector<64x192xf32>
    %c0_14 = arith.constant 0 : index
    %c0_15 = arith.constant 0 : index
    %15 = vector.load %arg6[%c0_14, %c0_15] : memref<1x192xf32, #tpu.memory_space<vmem>>, vector<1x192xf32>
    %c0_16 = arith.constant 0 : index
    %c0_17 = arith.constant 0 : index
    %c0_18 = arith.constant 0 : index
    %16 = vector.load %arg8[%c0_16, %c0_17, %c0_18] : memref<2x8x32xf32, #tpu.memory_space<vmem>>, vector<1x8x32xf32>
    %17 = vector.shape_cast %16 : vector<1x8x32xf32> to vector<8x32xf32>
    %c1 = arith.constant 1 : index
    %c0_19 = arith.constant 0 : index
    %c0_20 = arith.constant 0 : index
    %18 = vector.load %arg8[%c1, %c0_19, %c0_20] : memref<2x8x32xf32, #tpu.memory_space<vmem>>, vector<1x8x32xf32>
    %19 = vector.shape_cast %18 : vector<1x8x32xf32> to vector<8x32xf32>
    %20 = tpu.concatenate %17, %19 in 1 : vector<8x32xf32>, vector<8x32xf32> -> vector<8x64xf32>
    %c0_i32_21 = arith.constant 0 : i32
    %c16_i32 = arith.constant 16 : i32
    %21 = arith.muli %arg0, %c16_i32 : i32
    %22 = arith.addi %21, %c0_i32_21 : i32
    %c15_i32 = arith.constant 15 : i32
    %23 = arith.subi %c15_i32, %22 : i32
    %c8_i32 = arith.constant 8 : i32
    %24 = arith.muli %c0_i32_21, %c8_i32 : i32
    %c15_i32_22 = arith.constant 15 : i32
    %25 = arith.subi %c15_i32_22, %c0_i32_21 : i32
    %c8_i32_23 = arith.constant 8 : i32
    %26 = arith.muli %25, %c8_i32_23 : i32
    %cst_24 = arith.constant dense<0.000000e+00> : vector<8x192xf32>
    %27 = tpu.matmul %20, %14, %cst_24 {dimension_numbers = #tpu.dot_dimension_numbers<[1], [0], [0], [1], [0, 0, 1, 1], [], []>} : vector<8x64xf32>, vector<64x192xf32>, vector<8x192xf32> -> vector<8x192xf32>
    %28 = vector.broadcast %15 : vector<1x192xf32> to vector<8x192xf32>
    %29 = arith.addf %27, %28 : vector<8x192xf32>
    %30 = arith.index_cast %24 : i32 to index
    %c0_25 = arith.constant 0 : index
    %31 = vector.load %arg9[%30, %c0_25] : memref<128x96xf32, #tpu.memory_space<vmem>>, vector<8x96xf32>
    %32 = arith.index_cast %26 : i32 to index
    %c0_26 = arith.constant 0 : index
    %33 = vector.load %arg10[%32, %c0_26] : memref<128x96xf32, #tpu.memory_space<vmem>>, vector<8x96xf32>
    %34 = vector.extract_strided_slice %31 {offsets = [0, 0], sizes = [8, 64], strides = [1, 1]} : vector<8x96xf32> to vector<8x64xf32>
    %35 = vector.extract_strided_slice %29 {offsets = [0, 0], sizes = [8, 64], strides = [1, 1]} : vector<8x192xf32> to vector<8x64xf32>
    %36 = arith.addf %34, %35 : vector<8x64xf32>
    %37 = arith.negf %36 : vector<8x64xf32>
    %38 = math.exp %37 : vector<8x64xf32>
    %cst_27 = arith.constant 1.000000e+00 : f32
    %39 = vector.broadcast %cst_27 : f32 to vector<8x64xf32>
    %40 = arith.addf %39, %38 : vector<8x64xf32>
    %41 = arith.divf %39, %40 : vector<8x64xf32>
    %42 = vector.extract_strided_slice %33 {offsets = [0, 0], sizes = [8, 64], strides = [1, 1]} : vector<8x96xf32> to vector<8x64xf32>
    %43 = vector.extract_strided_slice %29 {offsets = [0, 96], sizes = [8, 64], strides = [1, 1]} : vector<8x192xf32> to vector<8x64xf32>
    %44 = arith.addf %42, %43 : vector<8x64xf32>
    %45 = arith.negf %44 : vector<8x64xf32>
    %46 = math.exp %45 : vector<8x64xf32>
    %cst_28 = arith.constant 1.000000e+00 : f32
    %47 = vector.broadcast %cst_28 : f32 to vector<8x64xf32>
    %48 = arith.addf %47, %46 : vector<8x64xf32>
    %49 = arith.divf %47, %48 : vector<8x64xf32>
    %50 = vector.extract_strided_slice %31 {offsets = [0, 64], sizes = [8, 32], strides = [1, 1]} : vector<8x96xf32> to vector<8x32xf32>
    %51 = vector.extract_strided_slice %41 {offsets = [0, 0], sizes = [8, 32], strides = [1, 1]} : vector<8x64xf32> to vector<8x32xf32>
    %52 = vector.extract_strided_slice %29 {offsets = [0, 64], sizes = [8, 32], strides = [1, 1]} : vector<8x192xf32> to vector<8x32xf32>
    %53 = arith.mulf %51, %52 : vector<8x32xf32>
    %54 = arith.addf %50, %53 : vector<8x32xf32>
    %55 = math.tanh %54 : vector<8x32xf32>
    %56 = vector.extract_strided_slice %33 {offsets = [0, 64], sizes = [8, 32], strides = [1, 1]} : vector<8x96xf32> to vector<8x32xf32>
    %57 = vector.extract_strided_slice %49 {offsets = [0, 0], sizes = [8, 32], strides = [1, 1]} : vector<8x64xf32> to vector<8x32xf32>
    %58 = vector.extract_strided_slice %29 {offsets = [0, 160], sizes = [8, 32], strides = [1, 1]} : vector<8x192xf32> to vector<8x32xf32>
    %59 = arith.mulf %57, %58 : vector<8x32xf32>
    %60 = arith.addf %56, %59 : vector<8x32xf32>
    %61 = math.tanh %60 : vector<8x32xf32>
    %62 = vector.extract_strided_slice %20 {offsets = [0, 0], sizes = [8, 32], strides = [1, 1]} : vector<8x64xf32> to vector<8x32xf32>
    %63 = vector.extract_strided_slice %20 {offsets = [0, 32], sizes = [8, 32], strides = [1, 1]} : vector<8x64xf32> to vector<8x32xf32>
    %64 = vector.extract_strided_slice %41 {offsets = [0, 32], sizes = [8, 32], strides = [1, 1]} : vector<8x64xf32> to vector<8x32xf32>
    %65 = arith.subf %62, %55 : vector<8x32xf32>
    %66 = arith.mulf %64, %65 : vector<8x32xf32>
    %67 = arith.addf %55, %66 : vector<8x32xf32>
    %68 = vector.extract_strided_slice %49 {offsets = [0, 32], sizes = [8, 32], strides = [1, 1]} : vector<8x64xf32> to vector<8x32xf32>
    %69 = arith.subf %63, %61 : vector<8x32xf32>
    %70 = arith.mulf %68, %69 : vector<8x32xf32>
    %71 = arith.addf %61, %70 : vector<8x32xf32>
    %72 = vector.broadcast %22 : i32 to vector<8x1xi32>
    %73 = arith.cmpi sgt, %13, %72 : vector<8x1xi32>
    %74 = vector.broadcast %23 : i32 to vector<8x1xi32>
    %75 = arith.cmpi sgt, %13, %74 : vector<8x1xi32>
    %76 = vector.shape_cast %73 : vector<8x1xi1> to vector<8x1xi1>
    %77 = vector.broadcast %76 : vector<8x1xi1> to vector<8x32xi1>
    %78 = arith.select %77, %67, %62 : vector<8x32xi1>, vector<8x32xf32>
    %79 = vector.shape_cast %75 : vector<8x1xi1> to vector<8x1xi1>
    %80 = vector.broadcast %79 : vector<8x1xi1> to vector<8x32xi1>
    %81 = arith.select %80, %71, %63 : vector<8x32xi1>, vector<8x32xf32>
    %cst_29 = arith.constant 0.000000e+00 : f32
    %82 = vector.shape_cast %73 : vector<8x1xi1> to vector<8x1xi1>
    %83 = vector.broadcast %82 : vector<8x1xi1> to vector<8x32xi1>
    %84 = vector.broadcast %cst_29 : f32 to vector<8x32xf32>
    %85 = arith.select %83, %78, %84 : vector<8x32xi1>, vector<8x32xf32>
    %cst_30 = arith.constant 0.000000e+00 : f32
    %86 = vector.shape_cast %75 : vector<8x1xi1> to vector<8x1xi1>
    %87 = vector.broadcast %86 : vector<8x1xi1> to vector<8x32xi1>
    %88 = vector.broadcast %cst_30 : f32 to vector<8x32xf32>
    %89 = arith.select %87, %81, %88 : vector<8x32xi1>, vector<8x32xf32>
    %90 = arith.index_cast %24 : i32 to index
    %c0_31 = arith.constant 0 : index
    %91 = vector.load %arg7[%90, %c0_31] : memref<128x32xf32, #tpu.memory_space<vmem>>, vector<8x32xf32>
    tpu.vector_store %arg7[%90, %c0_31], %85 {strides = array<i32>} : memref<128x32xf32, #tpu.memory_space<vmem>>, vector<8x32xf32>,
    %92 = arith.index_cast %26 : i32 to index
    %c0_32 = arith.constant 0 : index
    %93 = vector.load %arg11[%92, %c0_32] : memref<128x32xf32, #tpu.memory_space<vmem>>, vector<8x32xf32>
    tpu.vector_store %arg11[%92, %c0_32], %89 {strides = array<i32>} : memref<128x32xf32, #tpu.memory_space<vmem>>, vector<8x32xf32>,
    %94 = tpu.concatenate %78, %81 in 1 : vector<8x32xf32>, vector<8x32xf32> -> vector<8x64xf32>
    %c1_i32 = arith.constant 1 : i32
    %c16_i32_33 = arith.constant 16 : i32
    %95 = arith.muli %arg0, %c16_i32_33 : i32
    %96 = arith.addi %95, %c1_i32 : i32
    %c15_i32_34 = arith.constant 15 : i32
    %97 = arith.subi %c15_i32_34, %96 : i32
    %c8_i32_35 = arith.constant 8 : i32
    %98 = arith.muli %c1_i32, %c8_i32_35 : i32
    %c15_i32_36 = arith.constant 15 : i32
    %99 = arith.subi %c15_i32_36, %c1_i32 : i32
    %c8_i32_37 = arith.constant 8 : i32
    %100 = arith.muli %99, %c8_i32_37 : i32
    %cst_38 = arith.constant dense<0.000000e+00> : vector<8x192xf32>
    %101 = tpu.matmul %94, %14, %cst_38 {dimension_numbers = #tpu.dot_dimension_numbers<[1], [0], [0], [1], [0, 0, 1, 1], [], []>} : vector<8x64xf32>, vector<64x192xf32>, vector<8x192xf32> -> vector<8x192xf32>
    %102 = vector.broadcast %15 : vector<1x192xf32> to vector<8x192xf32>
    %103 = arith.addf %101, %102 : vector<8x192xf32>
    %104 = arith.index_cast %98 : i32 to index
    %c0_39 = arith.constant 0 : index
    %105 = vector.load %arg9[%104, %c0_39] : memref<128x96xf32, #tpu.memory_space<vmem>>, vector<8x96xf32>
    %106 = arith.index_cast %100 : i32 to index
    %c0_40 = arith.constant 0 : index
    %107 = vector.load %arg10[%106, %c0_40] : memref<128x96xf32, #tpu.memory_space<vmem>>, vector<8x96xf32>
    %108 = vector.extract_strided_slice %105 {offsets = [0, 0], sizes = [8, 64], strides = [1, 1]} : vector<8x96xf32> to vector<8x64xf32>
    %109 = vector.extract_strided_slice %103 {offsets = [0, 0], sizes = [8, 64], strides = [1, 1]} : vector<8x192xf32> to vector<8x64xf32>
    %110 = arith.addf %108, %109 : vector<8x64xf32>
    %111 = arith.negf %110 : vector<8x64xf32>
    %112 = math.exp %111 : vector<8x64xf32>
    %cst_41 = arith.constant 1.000000e+00 : f32
    %113 = vector.broadcast %cst_41 : f32 to vector<8x64xf32>
    %114 = arith.addf %113, %112 : vector<8x64xf32>
    %115 = arith.divf %113, %114 : vector<8x64xf32>
    %116 = vector.extract_strided_slice %107 {offsets = [0, 0], sizes = [8, 64], strides = [1, 1]} : vector<8x96xf32> to vector<8x64xf32>
    %117 = vector.extract_strided_slice %103 {offsets = [0, 96], sizes = [8, 64], strides = [1, 1]} : vector<8x192xf32> to vector<8x64xf32>
    %118 = arith.addf %116, %117 : vector<8x64xf32>
    %119 = arith.negf %118 : vector<8x64xf32>
    %120 = math.exp %119 : vector<8x64xf32>
    %cst_42 = arith.constant 1.000000e+00 : f32
    %121 = vector.broadcast %cst_42 : f32 to vector<8x64xf32>
    %122 = arith.addf %121, %120 : vector<8x64xf32>
    %123 = arith.divf %121, %122 : vector<8x64xf32>
    %124 = vector.extract_strided_slice %105 {offsets = [0, 64], sizes = [8, 32], strides = [1, 1]} : vector<8x96xf32> to vector<8x32xf32>
    %125 = vector.extract_strided_slice %115 {offsets = [0, 0], sizes = [8, 32], strides = [1, 1]} : vector<8x64xf32> to vector<8x32xf32>
    %126 = vector.extract_strided_slice %103 {offsets = [0, 64], sizes = [8, 32], strides = [1, 1]} : vector<8x192xf32> to vector<8x32xf32>
    %127 = arith.mulf %125, %126 : vector<8x32xf32>
    %128 = arith.addf %124, %127 : vector<8x32xf32>
    %129 = math.tanh %128 : vector<8x32xf32>
    %130 = vector.extract_strided_slice %107 {offsets = [0, 64], sizes = [8, 32], strides = [1, 1]} : vector<8x96xf32> to vector<8x32xf32>
    %131 = vector.extract_strided_slice %123 {offsets = [0, 0], sizes = [8, 32], strides = [1, 1]} : vector<8x64xf32> to vector<8x32xf32>
    %132 = vector.extract_strided_slice %103 {offsets = [0, 160], sizes = [8, 32], strides = [1, 1]} : vector<8x192xf32> to vector<8x32xf32>
    %133 = arith.mulf %131, %132 : vector<8x32xf32>
    %134 = arith.addf %130, %133 : vector<8x32xf32>
    %135 = math.tanh %134 : vector<8x32xf32>
    %136 = vector.extract_strided_slice %94 {offsets = [0, 0], sizes = [8, 32], strides = [1, 1]} : vector<8x64xf32> to vector<8x32xf32>
    %137 = vector.extract_strided_slice %94 {offsets = [0, 32], sizes = [8, 32], strides = [1, 1]} : vector<8x64xf32> to vector<8x32xf32>
    %138 = vector.extract_strided_slice %115 {offsets = [0, 32], sizes = [8, 32], strides = [1, 1]} : vector<8x64xf32> to vector<8x32xf32>
    %139 = arith.subf %136, %129 : vector<8x32xf32>
    %140 = arith.mulf %138, %139 : vector<8x32xf32>
    %141 = arith.addf %129, %140 : vector<8x32xf32>
    %142 = vector.extract_strided_slice %123 {offsets = [0, 32], sizes = [8, 32], strides = [1, 1]} : vector<8x64xf32> to vector<8x32xf32>
    %143 = arith.subf %137, %135 : vector<8x32xf32>
    %144 = arith.mulf %142, %143 : vector<8x32xf32>
    %145 = arith.addf %135, %144 : vector<8x32xf32>
    %146 = vector.broadcast %96 : i32 to vector<8x1xi32>
    %147 = arith.cmpi sgt, %13, %146 : vector<8x1xi32>
    %148 = vector.broadcast %97 : i32 to vector<8x1xi32>
    %149 = arith.cmpi sgt, %13, %148 : vector<8x1xi32>
    %150 = vector.shape_cast %147 : vector<8x1xi1> to vector<8x1xi1>
    %151 = vector.broadcast %150 : vector<8x1xi1> to vector<8x32xi1>
    %152 = arith.select %151, %141, %136 : vector<8x32xi1>, vector<8x32xf32>
    %153 = vector.shape_cast %149 : vector<8x1xi1> to vector<8x1xi1>
    %154 = vector.broadcast %153 : vector<8x1xi1> to vector<8x32xi1>
    %155 = arith.select %154, %145, %137 : vector<8x32xi1>, vector<8x32xf32>
    %cst_43 = arith.constant 0.000000e+00 : f32
    %156 = vector.shape_cast %147 : vector<8x1xi1> to vector<8x1xi1>
    %157 = vector.broadcast %156 : vector<8x1xi1> to vector<8x32xi1>
    %158 = vector.broadcast %cst_43 : f32 to vector<8x32xf32>
    %159 = arith.select %157, %152, %158 : vector<8x32xi1>, vector<8x32xf32>
    %cst_44 = arith.constant 0.000000e+00 : f32
    %160 = vector.shape_cast %149 : vector<8x1xi1> to vector<8x1xi1>
    %161 = vector.broadcast %160 : vector<8x1xi1> to vector<8x32xi1>
    %162 = vector.broadcast %cst_44 : f32 to vector<8x32xf32>
    %163 = arith.select %161, %155, %162 : vector<8x32xi1>, vector<8x32xf32>
    %164 = arith.index_cast %98 : i32 to index
    %c0_45 = arith.constant 0 : index
    %165 = vector.load %arg7[%164, %c0_45] : memref<128x32xf32, #tpu.memory_space<vmem>>, vector<8x32xf32>
    tpu.vector_store %arg7[%164, %c0_45], %159 {strides = array<i32>} : memref<128x32xf32, #tpu.memory_space<vmem>>, vector<8x32xf32>,
    %166 = arith.index_cast %100 : i32 to index
    %c0_46 = arith.constant 0 : index
    %167 = vector.load %arg11[%166, %c0_46] : memref<128x32xf32, #tpu.memory_space<vmem>>, vector<8x32xf32>
    tpu.vector_store %arg11[%166, %c0_46], %163 {strides = array<i32>} : memref<128x32xf32, #tpu.memory_space<vmem>>, vector<8x32xf32>,
    %168 = tpu.concatenate %152, %155 in 1 : vector<8x32xf32>, vector<8x32xf32> -> vector<8x64xf32>
    %c2_i32 = arith.constant 2 : i32
    %c16_i32_47 = arith.constant 16 : i32
    %169 = arith.muli %arg0, %c16_i32_47 : i32
    %170 = arith.addi %169, %c2_i32 : i32
    %c15_i32_48 = arith.constant 15 : i32
    %171 = arith.subi %c15_i32_48, %170 : i32
    %c8_i32_49 = arith.constant 8 : i32
    %172 = arith.muli %c2_i32, %c8_i32_49 : i32
    %c15_i32_50 = arith.constant 15 : i32
    %173 = arith.subi %c15_i32_50, %c2_i32 : i32
    %c8_i32_51 = arith.constant 8 : i32
    %174 = arith.muli %173, %c8_i32_51 : i32
    %cst_52 = arith.constant dense<0.000000e+00> : vector<8x192xf32>
    %175 = tpu.matmul %168, %14, %cst_52 {dimension_numbers = #tpu.dot_dimension_numbers<[1], [0], [0], [1], [0, 0, 1, 1], [], []>} : vector<8x64xf32>, vector<64x192xf32>, vector<8x192xf32> -> vector<8x192xf32>
    %176 = vector.broadcast %15 : vector<1x192xf32> to vector<8x192xf32>
    %177 = arith.addf %175, %176 : vector<8x192xf32>
    %178 = arith.index_cast %172 : i32 to index
    %c0_53 = arith.constant 0 : index
    %179 = vector.load %arg9[%178, %c0_53] : memref<128x96xf32, #tpu.memory_space<vmem>>, vector<8x96xf32>
    %180 = arith.index_cast %174 : i32 to index
    %c0_54 = arith.constant 0 : index
    %181 = vector.load %arg10[%180, %c0_54] : memref<128x96xf32, #tpu.memory_space<vmem>>, vector<8x96xf32>
    %182 = vector.extract_strided_slice %179 {offsets = [0, 0], sizes = [8, 64], strides = [1, 1]} : vector<8x96xf32> to vector<8x64xf32>
    %183 = vector.extract_strided_slice %177 {offsets = [0, 0], sizes = [8, 64], strides = [1, 1]} : vector<8x192xf32> to vector<8x64xf32>
    %184 = arith.addf %182, %183 : vector<8x64xf32>
    %185 = arith.negf %184 : vector<8x64xf32>
    %186 = math.exp %185 : vector<8x64xf32>
    %cst_55 = arith.constant 1.000000e+00 : f32
    %187 = vector.broadcast %cst_55 : f32 to vector<8x64xf32>
    %188 = arith.addf %187, %186 : vector<8x64xf32>
    %189 = arith.divf %187, %188 : vector<8x64xf32>
    %190 = vector.extract_strided_slice %181 {offsets = [0, 0], sizes = [8, 64], strides = [1, 1]} : vector<8x96xf32> to vector<8x64xf32>
    %191 = vector.extract_strided_slice %177 {offsets = [0, 96], sizes = [8, 64], strides = [1, 1]} : vector<8x192xf32> to vector<8x64xf32>
    %192 = arith.addf %190, %191 : vector<8x64xf32>
    %193 = arith.negf %192 : vector<8x64xf32>
    %194 = math.exp %193 : vector<8x64xf32>
    %cst_56 = arith.constant 1.000000e+00 : f32
    %195 = vector.broadcast %cst_56 : f32 to vector<8x64xf32>
    %196 = arith.addf %195, %194 : vector<8x64xf32>
    %197 = arith.divf %195, %196 : vector<8x64xf32>
    %198 = vector.extract_strided_slice %179 {offsets = [0, 64], sizes = [8, 32], strides = [1, 1]} : vector<8x96xf32> to vector<8x32xf32>
    %199 = vector.extract_strided_slice %189 {offsets = [0, 0], sizes = [8, 32], strides = [1, 1]} : vector<8x64xf32> to vector<8x32xf32>
    %200 = vector.extract_strided_slice %177 {offsets = [0, 64], sizes = [8, 32], strides = [1, 1]} : vector<8x192xf32> to vector<8x32xf32>
    %201 = arith.mulf %199, %200 : vector<8x32xf32>
    %202 = arith.addf %198, %201 : vector<8x32xf32>
    %203 = math.tanh %202 : vector<8x32xf32>
    %204 = vector.extract_strided_slice %181 {offsets = [0, 64], sizes = [8, 32], strides = [1, 1]} : vector<8x96xf32> to vector<8x32xf32>
    %205 = vector.extract_strided_slice %197 {offsets = [0, 0], sizes = [8, 32], strides = [1, 1]} : vector<8x64xf32> to vector<8x32xf32>
    %206 = vector.extract_strided_slice %177 {offsets = [0, 160], sizes = [8, 32], strides = [1, 1]} : vector<8x192xf32> to vector<8x32xf32>
    %207 = arith.mulf %205, %206 : vector<8x32xf32>
    %208 = arith.addf %204, %207 : vector<8x32xf32>
    %209 = math.tanh %208 : vector<8x32xf32>
    %210 = vector.extract_strided_slice %168 {offsets = [0, 0], sizes = [8, 32], strides = [1, 1]} : vector<8x64xf32> to vector<8x32xf32>
    %211 = vector.extract_strided_slice %168 {offsets = [0, 32], sizes = [8, 32], strides = [1, 1]} : vector<8x64xf32> to vector<8x32xf32>
    %212 = vector.extract_strided_slice %189 {offsets = [0, 32], sizes = [8, 32], strides = [1, 1]} : vector<8x64xf32> to vector<8x32xf32>
    %213 = arith.subf %210, %203 : vector<8x32xf32>
    %214 = arith.mulf %212, %213 : vector<8x32xf32>
    %215 = arith.addf %203, %214 : vector<8x32xf32>
    %216 = vector.extract_strided_slice %197 {offsets = [0, 32], sizes = [8, 32], strides = [1, 1]} : vector<8x64xf32> to vector<8x32xf32>
    %217 = arith.subf %211, %209 : vector<8x32xf32>
    %218 = arith.mulf %216, %217 : vector<8x32xf32>
    %219 = arith.addf %209, %218 : vector<8x32xf32>
    %220 = vector.broadcast %170 : i32 to vector<8x1xi32>
    %221 = arith.cmpi sgt, %13, %220 : vector<8x1xi32>
    %222 = vector.broadcast %171 : i32 to vector<8x1xi32>
    %223 = arith.cmpi sgt, %13, %222 : vector<8x1xi32>
    %224 = vector.shape_cast %221 : vector<8x1xi1> to vector<8x1xi1>
    %225 = vector.broadcast %224 : vector<8x1xi1> to vector<8x32xi1>
    %226 = arith.select %225, %215, %210 : vector<8x32xi1>, vector<8x32xf32>
    %227 = vector.shape_cast %223 : vector<8x1xi1> to vector<8x1xi1>
    %228 = vector.broadcast %227 : vector<8x1xi1> to vector<8x32xi1>
    %229 = arith.select %228, %219, %211 : vector<8x32xi1>, vector<8x32xf32>
    %cst_57 = arith.constant 0.000000e+00 : f32
    %230 = vector.shape_cast %221 : vector<8x1xi1> to vector<8x1xi1>
    %231 = vector.broadcast %230 : vector<8x1xi1> to vector<8x32xi1>
    %232 = vector.broadcast %cst_57 : f32 to vector<8x32xf32>
    %233 = arith.select %231, %226, %232 : vector<8x32xi1>, vector<8x32xf32>
    %cst_58 = arith.constant 0.000000e+00 : f32
    %234 = vector.shape_cast %223 : vector<8x1xi1> to vector<8x1xi1>
    %235 = vector.broadcast %234 : vector<8x1xi1> to vector<8x32xi1>
    %236 = vector.broadcast %cst_58 : f32 to vector<8x32xf32>
    %237 = arith.select %235, %229, %236 : vector<8x32xi1>, vector<8x32xf32>
    %238 = arith.index_cast %172 : i32 to index
    %c0_59 = arith.constant 0 : index
    %239 = vector.load %arg7[%238, %c0_59] : memref<128x32xf32, #tpu.memory_space<vmem>>, vector<8x32xf32>
    tpu.vector_store %arg7[%238, %c0_59], %233 {strides = array<i32>} : memref<128x32xf32, #tpu.memory_space<vmem>>, vector<8x32xf32>,
    %240 = arith.index_cast %174 : i32 to index
    %c0_60 = arith.constant 0 : index
    %241 = vector.load %arg11[%240, %c0_60] : memref<128x32xf32, #tpu.memory_space<vmem>>, vector<8x32xf32>
    tpu.vector_store %arg11[%240, %c0_60], %237 {strides = array<i32>} : memref<128x32xf32, #tpu.memory_space<vmem>>, vector<8x32xf32>,
    %242 = tpu.concatenate %226, %229 in 1 : vector<8x32xf32>, vector<8x32xf32> -> vector<8x64xf32>
    %c3_i32 = arith.constant 3 : i32
    %c16_i32_61 = arith.constant 16 : i32
    %243 = arith.muli %arg0, %c16_i32_61 : i32
    %244 = arith.addi %243, %c3_i32 : i32
    %c15_i32_62 = arith.constant 15 : i32
    %245 = arith.subi %c15_i32_62, %244 : i32
    %c8_i32_63 = arith.constant 8 : i32
    %246 = arith.muli %c3_i32, %c8_i32_63 : i32
    %c15_i32_64 = arith.constant 15 : i32
    %247 = arith.subi %c15_i32_64, %c3_i32 : i32
    %c8_i32_65 = arith.constant 8 : i32
    %248 = arith.muli %247, %c8_i32_65 : i32
    %cst_66 = arith.constant dense<0.000000e+00> : vector<8x192xf32>
    %249 = tpu.matmul %242, %14, %cst_66 {dimension_numbers = #tpu.dot_dimension_numbers<[1], [0], [0], [1], [0, 0, 1, 1], [], []>} : vector<8x64xf32>, vector<64x192xf32>, vector<8x192xf32> -> vector<8x192xf32>
    %250 = vector.broadcast %15 : vector<1x192xf32> to vector<8x192xf32>
    %251 = arith.addf %249, %250 : vector<8x192xf32>
    %252 = arith.index_cast %246 : i32 to index
    %c0_67 = arith.constant 0 : index
    %253 = vector.load %arg9[%252, %c0_67] : memref<128x96xf32, #tpu.memory_space<vmem>>, vector<8x96xf32>
    %254 = arith.index_cast %248 : i32 to index
    %c0_68 = arith.constant 0 : index
    %255 = vector.load %arg10[%254, %c0_68] : memref<128x96xf32, #tpu.memory_space<vmem>>, vector<8x96xf32>
    %256 = vector.extract_strided_slice %253 {offsets = [0, 0], sizes = [8, 64], strides = [1, 1]} : vector<8x96xf32> to vector<8x64xf32>
    %257 = vector.extract_strided_slice %251 {offsets = [0, 0], sizes = [8, 64], strides = [1, 1]} : vector<8x192xf32> to vector<8x64xf32>
    %258 = arith.addf %256, %257 : vector<8x64xf32>
    %259 = arith.negf %258 : vector<8x64xf32>
    %260 = math.exp %259 : vector<8x64xf32>
    %cst_69 = arith.constant 1.000000e+00 : f32
    %261 = vector.broadcast %cst_69 : f32 to vector<8x64xf32>
    %262 = arith.addf %261, %260 : vector<8x64xf32>
    %263 = arith.divf %261, %262 : vector<8x64xf32>
    %264 = vector.extract_strided_slice %255 {offsets = [0, 0], sizes = [8, 64], strides = [1, 1]} : vector<8x96xf32> to vector<8x64xf32>
    %265 = vector.extract_strided_slice %251 {offsets = [0, 96], sizes = [8, 64], strides = [1, 1]} : vector<8x192xf32> to vector<8x64xf32>
    %266 = arith.addf %264, %265 : vector<8x64xf32>
    %267 = arith.negf %266 : vector<8x64xf32>
    %268 = math.exp %267 : vector<8x64xf32>
    %cst_70 = arith.constant 1.000000e+00 : f32
    %269 = vector.broadcast %cst_70 : f32 to vector<8x64xf32>
    %270 = arith.addf %269, %268 : vector<8x64xf32>
    %271 = arith.divf %269, %270 : vector<8x64xf32>
    %272 = vector.extract_strided_slice %253 {offsets = [0, 64], sizes = [8, 32], strides = [1, 1]} : vector<8x96xf32> to vector<8x32xf32>
    %273 = vector.extract_strided_slice %263 {offsets = [0, 0], sizes = [8, 32], strides = [1, 1]} : vector<8x64xf32> to vector<8x32xf32>
    %274 = vector.extract_strided_slice %251 {offsets = [0, 64], sizes = [8, 32], strides = [1, 1]} : vector<8x192xf32> to vector<8x32xf32>
    %275 = arith.mulf %273, %274 : vector<8x32xf32>
    %276 = arith.addf %272, %275 : vector<8x32xf32>
    %277 = math.tanh %276 : vector<8x32xf32>
    %278 = vector.extract_strided_slice %255 {offsets = [0, 64], sizes = [8, 32], strides = [1, 1]} : vector<8x96xf32> to vector<8x32xf32>
    %279 = vector.extract_strided_slice %271 {offsets = [0, 0], sizes = [8, 32], strides = [1, 1]} : vector<8x64xf32> to vector<8x32xf32>
    %280 = vector.extract_strided_slice %251 {offsets = [0, 160], sizes = [8, 32], strides = [1, 1]} : vector<8x192xf32> to vector<8x32xf32>
    %281 = arith.mulf %279, %280 : vector<8x32xf32>
    %282 = arith.addf %278, %281 : vector<8x32xf32>
    %283 = math.tanh %282 : vector<8x32xf32>
    %284 = vector.extract_strided_slice %242 {offsets = [0, 0], sizes = [8, 32], strides = [1, 1]} : vector<8x64xf32> to vector<8x32xf32>
    %285 = vector.extract_strided_slice %242 {offsets = [0, 32], sizes = [8, 32], strides = [1, 1]} : vector<8x64xf32> to vector<8x32xf32>
    %286 = vector.extract_strided_slice %263 {offsets = [0, 32], sizes = [8, 32], strides = [1, 1]} : vector<8x64xf32> to vector<8x32xf32>
    %287 = arith.subf %284, %277 : vector<8x32xf32>
    %288 = arith.mulf %286, %287 : vector<8x32xf32>
    %289 = arith.addf %277, %288 : vector<8x32xf32>
    %290 = vector.extract_strided_slice %271 {offsets = [0, 32], sizes = [8, 32], strides = [1, 1]} : vector<8x64xf32> to vector<8x32xf32>
    %291 = arith.subf %285, %283 : vector<8x32xf32>
    %292 = arith.mulf %290, %291 : vector<8x32xf32>
    %293 = arith.addf %283, %292 : vector<8x32xf32>
    %294 = vector.broadcast %244 : i32 to vector<8x1xi32>
    %295 = arith.cmpi sgt, %13, %294 : vector<8x1xi32>
    %296 = vector.broadcast %245 : i32 to vector<8x1xi32>
    %297 = arith.cmpi sgt, %13, %296 : vector<8x1xi32>
    %298 = vector.shape_cast %295 : vector<8x1xi1> to vector<8x1xi1>
    %299 = vector.broadcast %298 : vector<8x1xi1> to vector<8x32xi1>
    %300 = arith.select %299, %289, %284 : vector<8x32xi1>, vector<8x32xf32>
    %301 = vector.shape_cast %297 : vector<8x1xi1> to vector<8x1xi1>
    %302 = vector.broadcast %301 : vector<8x1xi1> to vector<8x32xi1>
    %303 = arith.select %302, %293, %285 : vector<8x32xi1>, vector<8x32xf32>
    %cst_71 = arith.constant 0.000000e+00 : f32
    %304 = vector.shape_cast %295 : vector<8x1xi1> to vector<8x1xi1>
    %305 = vector.broadcast %304 : vector<8x1xi1> to vector<8x32xi1>
    %306 = vector.broadcast %cst_71 : f32 to vector<8x32xf32>
    %307 = arith.select %305, %300, %306 : vector<8x32xi1>, vector<8x32xf32>
    %cst_72 = arith.constant 0.000000e+00 : f32
    %308 = vector.shape_cast %297 : vector<8x1xi1> to vector<8x1xi1>
    %309 = vector.broadcast %308 : vector<8x1xi1> to vector<8x32xi1>
    %310 = vector.broadcast %cst_72 : f32 to vector<8x32xf32>
    %311 = arith.select %309, %303, %310 : vector<8x32xi1>, vector<8x32xf32>
    %312 = arith.index_cast %246 : i32 to index
    %c0_73 = arith.constant 0 : index
    %313 = vector.load %arg7[%312, %c0_73] : memref<128x32xf32, #tpu.memory_space<vmem>>, vector<8x32xf32>
    tpu.vector_store %arg7[%312, %c0_73], %307 {strides = array<i32>} : memref<128x32xf32, #tpu.memory_space<vmem>>, vector<8x32xf32>,
    %314 = arith.index_cast %248 : i32 to index
    %c0_74 = arith.constant 0 : index
    %315 = vector.load %arg11[%314, %c0_74] : memref<128x32xf32, #tpu.memory_space<vmem>>, vector<8x32xf32>
    tpu.vector_store %arg11[%314, %c0_74], %311 {strides = array<i32>} : memref<128x32xf32, #tpu.memory_space<vmem>>, vector<8x32xf32>,
    %316 = tpu.concatenate %300, %303 in 1 : vector<8x32xf32>, vector<8x32xf32> -> vector<8x64xf32>
    %c4_i32 = arith.constant 4 : i32
    %c16_i32_75 = arith.constant 16 : i32
    %317 = arith.muli %arg0, %c16_i32_75 : i32
    %318 = arith.addi %317, %c4_i32 : i32
    %c15_i32_76 = arith.constant 15 : i32
    %319 = arith.subi %c15_i32_76, %318 : i32
    %c8_i32_77 = arith.constant 8 : i32
    %320 = arith.muli %c4_i32, %c8_i32_77 : i32
    %c15_i32_78 = arith.constant 15 : i32
    %321 = arith.subi %c15_i32_78, %c4_i32 : i32
    %c8_i32_79 = arith.constant 8 : i32
    %322 = arith.muli %321, %c8_i32_79 : i32
    %cst_80 = arith.constant dense<0.000000e+00> : vector<8x192xf32>
    %323 = tpu.matmul %316, %14, %cst_80 {dimension_numbers = #tpu.dot_dimension_numbers<[1], [0], [0], [1], [0, 0, 1, 1], [], []>} : vector<8x64xf32>, vector<64x192xf32>, vector<8x192xf32> -> vector<8x192xf32>
    %324 = vector.broadcast %15 : vector<1x192xf32> to vector<8x192xf32>
    %325 = arith.addf %323, %324 : vector<8x192xf32>
    %326 = arith.index_cast %320 : i32 to index
    %c0_81 = arith.constant 0 : index
    %327 = vector.load %arg9[%326, %c0_81] : memref<128x96xf32, #tpu.memory_space<vmem>>, vector<8x96xf32>
    %328 = arith.index_cast %322 : i32 to index
    %c0_82 = arith.constant 0 : index
    %329 = vector.load %arg10[%328, %c0_82] : memref<128x96xf32, #tpu.memory_space<vmem>>, vector<8x96xf32>
    %330 = vector.extract_strided_slice %327 {offsets = [0, 0], sizes = [8, 64], strides = [1, 1]} : vector<8x96xf32> to vector<8x64xf32>
    %331 = vector.extract_strided_slice %325 {offsets = [0, 0], sizes = [8, 64], strides = [1, 1]} : vector<8x192xf32> to vector<8x64xf32>
    %332 = arith.addf %330, %331 : vector<8x64xf32>
    %333 = arith.negf %332 : vector<8x64xf32>
    %334 = math.exp %333 : vector<8x64xf32>
    %cst_83 = arith.constant 1.000000e+00 : f32
    %335 = vector.broadcast %cst_83 : f32 to vector<8x64xf32>
    %336 = arith.addf %335, %334 : vector<8x64xf32>
    %337 = arith.divf %335, %336 : vector<8x64xf32>
    %338 = vector.extract_strided_slice %329 {offsets = [0, 0], sizes = [8, 64], strides = [1, 1]} : vector<8x96xf32> to vector<8x64xf32>
    %339 = vector.extract_strided_slice %325 {offsets = [0, 96], sizes = [8, 64], strides = [1, 1]} : vector<8x192xf32> to vector<8x64xf32>
    %340 = arith.addf %338, %339 : vector<8x64xf32>
    %341 = arith.negf %340 : vector<8x64xf32>
    %342 = math.exp %341 : vector<8x64xf32>
    %cst_84 = arith.constant 1.000000e+00 : f32
    %343 = vector.broadcast %cst_84 : f32 to vector<8x64xf32>
    %344 = arith.addf %343, %342 : vector<8x64xf32>
    %345 = arith.divf %343, %344 : vector<8x64xf32>
    %346 = vector.extract_strided_slice %327 {offsets = [0, 64], sizes = [8, 32], strides = [1, 1]} : vector<8x96xf32> to vector<8x32xf32>
    %347 = vector.extract_strided_slice %337 {offsets = [0, 0], sizes = [8, 32], strides = [1, 1]} : vector<8x64xf32> to vector<8x32xf32>
    %348 = vector.extract_strided_slice %325 {offsets = [0, 64], sizes = [8, 32], strides = [1, 1]} : vector<8x192xf32> to vector<8x32xf32>
    %349 = arith.mulf %347, %348 : vector<8x32xf32>
    %350 = arith.addf %346, %349 : vector<8x32xf32>
    %351 = math.tanh %350 : vector<8x32xf32>
    %352 = vector.extract_strided_slice %329 {offsets = [0, 64], sizes = [8, 32], strides = [1, 1]} : vector<8x96xf32> to vector<8x32xf32>
    %353 = vector.extract_strided_slice %345 {offsets = [0, 0], sizes = [8, 32], strides = [1, 1]} : vector<8x64xf32> to vector<8x32xf32>
    %354 = vector.extract_strided_slice %325 {offsets = [0, 160], sizes = [8, 32], strides = [1, 1]} : vector<8x192xf32> to vector<8x32xf32>
    %355 = arith.mulf %353, %354 : vector<8x32xf32>
    %356 = arith.addf %352, %355 : vector<8x32xf32>
    %357 = math.tanh %356 : vector<8x32xf32>
    %358 = vector.extract_strided_slice %316 {offsets = [0, 0], sizes = [8, 32], strides = [1, 1]} : vector<8x64xf32> to vector<8x32xf32>
    %359 = vector.extract_strided_slice %316 {offsets = [0, 32], sizes = [8, 32], strides = [1, 1]} : vector<8x64xf32> to vector<8x32xf32>
    %360 = vector.extract_strided_slice %337 {offsets = [0, 32], sizes = [8, 32], strides = [1, 1]} : vector<8x64xf32> to vector<8x32xf32>
    %361 = arith.subf %358, %351 : vector<8x32xf32>
    %362 = arith.mulf %360, %361 : vector<8x32xf32>
    %363 = arith.addf %351, %362 : vector<8x32xf32>
    %364 = vector.extract_strided_slice %345 {offsets = [0, 32], sizes = [8, 32], strides = [1, 1]} : vector<8x64xf32> to vector<8x32xf32>
    %365 = arith.subf %359, %357 : vector<8x32xf32>
    %366 = arith.mulf %364, %365 : vector<8x32xf32>
    %367 = arith.addf %357, %366 : vector<8x32xf32>
    %368 = vector.broadcast %318 : i32 to vector<8x1xi32>
    %369 = arith.cmpi sgt, %13, %368 : vector<8x1xi32>
    %370 = vector.broadcast %319 : i32 to vector<8x1xi32>
    %371 = arith.cmpi sgt, %13, %370 : vector<8x1xi32>
    %372 = vector.shape_cast %369 : vector<8x1xi1> to vector<8x1xi1>
    %373 = vector.broadcast %372 : vector<8x1xi1> to vector<8x32xi1>
    %374 = arith.select %373, %363, %358 : vector<8x32xi1>, vector<8x32xf32>
    %375 = vector.shape_cast %371 : vector<8x1xi1> to vector<8x1xi1>
    %376 = vector.broadcast %375 : vector<8x1xi1> to vector<8x32xi1>
    %377 = arith.select %376, %367, %359 : vector<8x32xi1>, vector<8x32xf32>
    %cst_85 = arith.constant 0.000000e+00 : f32
    %378 = vector.shape_cast %369 : vector<8x1xi1> to vector<8x1xi1>
    %379 = vector.broadcast %378 : vector<8x1xi1> to vector<8x32xi1>
    %380 = vector.broadcast %cst_85 : f32 to vector<8x32xf32>
    %381 = arith.select %379, %374, %380 : vector<8x32xi1>, vector<8x32xf32>
    %cst_86 = arith.constant 0.000000e+00 : f32
    %382 = vector.shape_cast %371 : vector<8x1xi1> to vector<8x1xi1>
    %383 = vector.broadcast %382 : vector<8x1xi1> to vector<8x32xi1>
    %384 = vector.broadcast %cst_86 : f32 to vector<8x32xf32>
    %385 = arith.select %383, %377, %384 : vector<8x32xi1>, vector<8x32xf32>
    %386 = arith.index_cast %320 : i32 to index
    %c0_87 = arith.constant 0 : index
    %387 = vector.load %arg7[%386, %c0_87] : memref<128x32xf32, #tpu.memory_space<vmem>>, vector<8x32xf32>
    tpu.vector_store %arg7[%386, %c0_87], %381 {strides = array<i32>} : memref<128x32xf32, #tpu.memory_space<vmem>>, vector<8x32xf32>,
    %388 = arith.index_cast %322 : i32 to index
    %c0_88 = arith.constant 0 : index
    %389 = vector.load %arg11[%388, %c0_88] : memref<128x32xf32, #tpu.memory_space<vmem>>, vector<8x32xf32>
    tpu.vector_store %arg11[%388, %c0_88], %385 {strides = array<i32>} : memref<128x32xf32, #tpu.memory_space<vmem>>, vector<8x32xf32>,
    %390 = tpu.concatenate %374, %377 in 1 : vector<8x32xf32>, vector<8x32xf32> -> vector<8x64xf32>
    %c5_i32 = arith.constant 5 : i32
    %c16_i32_89 = arith.constant 16 : i32
    %391 = arith.muli %arg0, %c16_i32_89 : i32
    %392 = arith.addi %391, %c5_i32 : i32
    %c15_i32_90 = arith.constant 15 : i32
    %393 = arith.subi %c15_i32_90, %392 : i32
    %c8_i32_91 = arith.constant 8 : i32
    %394 = arith.muli %c5_i32, %c8_i32_91 : i32
    %c15_i32_92 = arith.constant 15 : i32
    %395 = arith.subi %c15_i32_92, %c5_i32 : i32
    %c8_i32_93 = arith.constant 8 : i32
    %396 = arith.muli %395, %c8_i32_93 : i32
    %cst_94 = arith.constant dense<0.000000e+00> : vector<8x192xf32>
    %397 = tpu.matmul %390, %14, %cst_94 {dimension_numbers = #tpu.dot_dimension_numbers<[1], [0], [0], [1], [0, 0, 1, 1], [], []>} : vector<8x64xf32>, vector<64x192xf32>, vector<8x192xf32> -> vector<8x192xf32>
    %398 = vector.broadcast %15 : vector<1x192xf32> to vector<8x192xf32>
    %399 = arith.addf %397, %398 : vector<8x192xf32>
    %400 = arith.index_cast %394 : i32 to index
    %c0_95 = arith.constant 0 : index
    %401 = vector.load %arg9[%400, %c0_95] : memref<128x96xf32, #tpu.memory_space<vmem>>, vector<8x96xf32>
    %402 = arith.index_cast %396 : i32 to index
    %c0_96 = arith.constant 0 : index
    %403 = vector.load %arg10[%402, %c0_96] : memref<128x96xf32, #tpu.memory_space<vmem>>, vector<8x96xf32>
    %404 = vector.extract_strided_slice %401 {offsets = [0, 0], sizes = [8, 64], strides = [1, 1]} : vector<8x96xf32> to vector<8x64xf32>
    %405 = vector.extract_strided_slice %399 {offsets = [0, 0], sizes = [8, 64], strides = [1, 1]} : vector<8x192xf32> to vector<8x64xf32>
    %406 = arith.addf %404, %405 : vector<8x64xf32>
    %407 = arith.negf %406 : vector<8x64xf32>
    %408 = math.exp %407 : vector<8x64xf32>
    %cst_97 = arith.constant 1.000000e+00 : f32
    %409 = vector.broadcast %cst_97 : f32 to vector<8x64xf32>
    %410 = arith.addf %409, %408 : vector<8x64xf32>
    %411 = arith.divf %409, %410 : vector<8x64xf32>
    %412 = vector.extract_strided_slice %403 {offsets = [0, 0], sizes = [8, 64], strides = [1, 1]} : vector<8x96xf32> to vector<8x64xf32>
    %413 = vector.extract_strided_slice %399 {offsets = [0, 96], sizes = [8, 64], strides = [1, 1]} : vector<8x192xf32> to vector<8x64xf32>
    %414 = arith.addf %412, %413 : vector<8x64xf32>
    %415 = arith.negf %414 : vector<8x64xf32>
    %416 = math.exp %415 : vector<8x64xf32>
    %cst_98 = arith.constant 1.000000e+00 : f32
    %417 = vector.broadcast %cst_98 : f32 to vector<8x64xf32>
    %418 = arith.addf %417, %416 : vector<8x64xf32>
    %419 = arith.divf %417, %418 : vector<8x64xf32>
    %420 = vector.extract_strided_slice %401 {offsets = [0, 64], sizes = [8, 32], strides = [1, 1]} : vector<8x96xf32> to vector<8x32xf32>
    %421 = vector.extract_strided_slice %411 {offsets = [0, 0], sizes = [8, 32], strides = [1, 1]} : vector<8x64xf32> to vector<8x32xf32>
    %422 = vector.extract_strided_slice %399 {offsets = [0, 64], sizes = [8, 32], strides = [1, 1]} : vector<8x192xf32> to vector<8x32xf32>
    %423 = arith.mulf %421, %422 : vector<8x32xf32>
    %424 = arith.addf %420, %423 : vector<8x32xf32>
    %425 = math.tanh %424 : vector<8x32xf32>
    %426 = vector.extract_strided_slice %403 {offsets = [0, 64], sizes = [8, 32], strides = [1, 1]} : vector<8x96xf32> to vector<8x32xf32>
    %427 = vector.extract_strided_slice %419 {offsets = [0, 0], sizes = [8, 32], strides = [1, 1]} : vector<8x64xf32> to vector<8x32xf32>
    %428 = vector.extract_strided_slice %399 {offsets = [0, 160], sizes = [8, 32], strides = [1, 1]} : vector<8x192xf32> to vector<8x32xf32>
    %429 = arith.mulf %427, %428 : vector<8x32xf32>
    %430 = arith.addf %426, %429 : vector<8x32xf32>
    %431 = math.tanh %430 : vector<8x32xf32>
    %432 = vector.extract_strided_slice %390 {offsets = [0, 0], sizes = [8, 32], strides = [1, 1]} : vector<8x64xf32> to vector<8x32xf32>
    %433 = vector.extract_strided_slice %390 {offsets = [0, 32], sizes = [8, 32], strides = [1, 1]} : vector<8x64xf32> to vector<8x32xf32>
    %434 = vector.extract_strided_slice %411 {offsets = [0, 32], sizes = [8, 32], strides = [1, 1]} : vector<8x64xf32> to vector<8x32xf32>
    %435 = arith.subf %432, %425 : vector<8x32xf32>
    %436 = arith.mulf %434, %435 : vector<8x32xf32>
    %437 = arith.addf %425, %436 : vector<8x32xf32>
    %438 = vector.extract_strided_slice %419 {offsets = [0, 32], sizes = [8, 32], strides = [1, 1]} : vector<8x64xf32> to vector<8x32xf32>
    %439 = arith.subf %433, %431 : vector<8x32xf32>
    %440 = arith.mulf %438, %439 : vector<8x32xf32>
    %441 = arith.addf %431, %440 : vector<8x32xf32>
    %442 = vector.broadcast %392 : i32 to vector<8x1xi32>
    %443 = arith.cmpi sgt, %13, %442 : vector<8x1xi32>
    %444 = vector.broadcast %393 : i32 to vector<8x1xi32>
    %445 = arith.cmpi sgt, %13, %444 : vector<8x1xi32>
    %446 = vector.shape_cast %443 : vector<8x1xi1> to vector<8x1xi1>
    %447 = vector.broadcast %446 : vector<8x1xi1> to vector<8x32xi1>
    %448 = arith.select %447, %437, %432 : vector<8x32xi1>, vector<8x32xf32>
    %449 = vector.shape_cast %445 : vector<8x1xi1> to vector<8x1xi1>
    %450 = vector.broadcast %449 : vector<8x1xi1> to vector<8x32xi1>
    %451 = arith.select %450, %441, %433 : vector<8x32xi1>, vector<8x32xf32>
    %cst_99 = arith.constant 0.000000e+00 : f32
    %452 = vector.shape_cast %443 : vector<8x1xi1> to vector<8x1xi1>
    %453 = vector.broadcast %452 : vector<8x1xi1> to vector<8x32xi1>
    %454 = vector.broadcast %cst_99 : f32 to vector<8x32xf32>
    %455 = arith.select %453, %448, %454 : vector<8x32xi1>, vector<8x32xf32>
    %cst_100 = arith.constant 0.000000e+00 : f32
    %456 = vector.shape_cast %445 : vector<8x1xi1> to vector<8x1xi1>
    %457 = vector.broadcast %456 : vector<8x1xi1> to vector<8x32xi1>
    %458 = vector.broadcast %cst_100 : f32 to vector<8x32xf32>
    %459 = arith.select %457, %451, %458 : vector<8x32xi1>, vector<8x32xf32>
    %460 = arith.index_cast %394 : i32 to index
    %c0_101 = arith.constant 0 : index
    %461 = vector.load %arg7[%460, %c0_101] : memref<128x32xf32, #tpu.memory_space<vmem>>, vector<8x32xf32>
    tpu.vector_store %arg7[%460, %c0_101], %455 {strides = array<i32>} : memref<128x32xf32, #tpu.memory_space<vmem>>, vector<8x32xf32>,
    %462 = arith.index_cast %396 : i32 to index
    %c0_102 = arith.constant 0 : index
    %463 = vector.load %arg11[%462, %c0_102] : memref<128x32xf32, #tpu.memory_space<vmem>>, vector<8x32xf32>
    tpu.vector_store %arg11[%462, %c0_102], %459 {strides = array<i32>} : memref<128x32xf32, #tpu.memory_space<vmem>>, vector<8x32xf32>,
    %464 = tpu.concatenate %448, %451 in 1 : vector<8x32xf32>, vector<8x32xf32> -> vector<8x64xf32>
    %c6_i32 = arith.constant 6 : i32
    %c16_i32_103 = arith.constant 16 : i32
    %465 = arith.muli %arg0, %c16_i32_103 : i32
    %466 = arith.addi %465, %c6_i32 : i32
    %c15_i32_104 = arith.constant 15 : i32
    %467 = arith.subi %c15_i32_104, %466 : i32
    %c8_i32_105 = arith.constant 8 : i32
    %468 = arith.muli %c6_i32, %c8_i32_105 : i32
    %c15_i32_106 = arith.constant 15 : i32
    %469 = arith.subi %c15_i32_106, %c6_i32 : i32
    %c8_i32_107 = arith.constant 8 : i32
    %470 = arith.muli %469, %c8_i32_107 : i32
    %cst_108 = arith.constant dense<0.000000e+00> : vector<8x192xf32>
    %471 = tpu.matmul %464, %14, %cst_108 {dimension_numbers = #tpu.dot_dimension_numbers<[1], [0], [0], [1], [0, 0, 1, 1], [], []>} : vector<8x64xf32>, vector<64x192xf32>, vector<8x192xf32> -> vector<8x192xf32>
    %472 = vector.broadcast %15 : vector<1x192xf32> to vector<8x192xf32>
    %473 = arith.addf %471, %472 : vector<8x192xf32>
    %474 = arith.index_cast %468 : i32 to index
    %c0_109 = arith.constant 0 : index
    %475 = vector.load %arg9[%474, %c0_109] : memref<128x96xf32, #tpu.memory_space<vmem>>, vector<8x96xf32>
    %476 = arith.index_cast %470 : i32 to index
    %c0_110 = arith.constant 0 : index
    %477 = vector.load %arg10[%476, %c0_110] : memref<128x96xf32, #tpu.memory_space<vmem>>, vector<8x96xf32>
    %478 = vector.extract_strided_slice %475 {offsets = [0, 0], sizes = [8, 64], strides = [1, 1]} : vector<8x96xf32> to vector<8x64xf32>
    %479 = vector.extract_strided_slice %473 {offsets = [0, 0], sizes = [8, 64], strides = [1, 1]} : vector<8x192xf32> to vector<8x64xf32>
    %480 = arith.addf %478, %479 : vector<8x64xf32>
    %481 = arith.negf %480 : vector<8x64xf32>
    %482 = math.exp %481 : vector<8x64xf32>
    %cst_111 = arith.constant 1.000000e+00 : f32
    %483 = vector.broadcast %cst_111 : f32 to vector<8x64xf32>
    %484 = arith.addf %483, %482 : vector<8x64xf32>
    %485 = arith.divf %483, %484 : vector<8x64xf32>
    %486 = vector.extract_strided_slice %477 {offsets = [0, 0], sizes = [8, 64], strides = [1, 1]} : vector<8x96xf32> to vector<8x64xf32>
    %487 = vector.extract_strided_slice %473 {offsets = [0, 96], sizes = [8, 64], strides = [1, 1]} : vector<8x192xf32> to vector<8x64xf32>
    %488 = arith.addf %486, %487 : vector<8x64xf32>
    %489 = arith.negf %488 : vector<8x64xf32>
    %490 = math.exp %489 : vector<8x64xf32>
    %cst_112 = arith.constant 1.000000e+00 : f32
    %491 = vector.broadcast %cst_112 : f32 to vector<8x64xf32>
    %492 = arith.addf %491, %490 : vector<8x64xf32>
    %493 = arith.divf %491, %492 : vector<8x64xf32>
    %494 = vector.extract_strided_slice %475 {offsets = [0, 64], sizes = [8, 32], strides = [1, 1]} : vector<8x96xf32> to vector<8x32xf32>
    %495 = vector.extract_strided_slice %485 {offsets = [0, 0], sizes = [8, 32], strides = [1, 1]} : vector<8x64xf32> to vector<8x32xf32>
    %496 = vector.extract_strided_slice %473 {offsets = [0, 64], sizes = [8, 32], strides = [1, 1]} : vector<8x192xf32> to vector<8x32xf32>
    %497 = arith.mulf %495, %496 : vector<8x32xf32>
    %498 = arith.addf %494, %497 : vector<8x32xf32>
    %499 = math.tanh %498 : vector<8x32xf32>
    %500 = vector.extract_strided_slice %477 {offsets = [0, 64], sizes = [8, 32], strides = [1, 1]} : vector<8x96xf32> to vector<8x32xf32>
    %501 = vector.extract_strided_slice %493 {offsets = [0, 0], sizes = [8, 32], strides = [1, 1]} : vector<8x64xf32> to vector<8x32xf32>
    %502 = vector.extract_strided_slice %473 {offsets = [0, 160], sizes = [8, 32], strides = [1, 1]} : vector<8x192xf32> to vector<8x32xf32>
    %503 = arith.mulf %501, %502 : vector<8x32xf32>
    %504 = arith.addf %500, %503 : vector<8x32xf32>
    %505 = math.tanh %504 : vector<8x32xf32>
    %506 = vector.extract_strided_slice %464 {offsets = [0, 0], sizes = [8, 32], strides = [1, 1]} : vector<8x64xf32> to vector<8x32xf32>
    %507 = vector.extract_strided_slice %464 {offsets = [0, 32], sizes = [8, 32], strides = [1, 1]} : vector<8x64xf32> to vector<8x32xf32>
    %508 = vector.extract_strided_slice %485 {offsets = [0, 32], sizes = [8, 32], strides = [1, 1]} : vector<8x64xf32> to vector<8x32xf32>
    %509 = arith.subf %506, %499 : vector<8x32xf32>
    %510 = arith.mulf %508, %509 : vector<8x32xf32>
    %511 = arith.addf %499, %510 : vector<8x32xf32>
    %512 = vector.extract_strided_slice %493 {offsets = [0, 32], sizes = [8, 32], strides = [1, 1]} : vector<8x64xf32> to vector<8x32xf32>
    %513 = arith.subf %507, %505 : vector<8x32xf32>
    %514 = arith.mulf %512, %513 : vector<8x32xf32>
    %515 = arith.addf %505, %514 : vector<8x32xf32>
    %516 = vector.broadcast %466 : i32 to vector<8x1xi32>
    %517 = arith.cmpi sgt, %13, %516 : vector<8x1xi32>
    %518 = vector.broadcast %467 : i32 to vector<8x1xi32>
    %519 = arith.cmpi sgt, %13, %518 : vector<8x1xi32>
    %520 = vector.shape_cast %517 : vector<8x1xi1> to vector<8x1xi1>
    %521 = vector.broadcast %520 : vector<8x1xi1> to vector<8x32xi1>
    %522 = arith.select %521, %511, %506 : vector<8x32xi1>, vector<8x32xf32>
    %523 = vector.shape_cast %519 : vector<8x1xi1> to vector<8x1xi1>
    %524 = vector.broadcast %523 : vector<8x1xi1> to vector<8x32xi1>
    %525 = arith.select %524, %515, %507 : vector<8x32xi1>, vector<8x32xf32>
    %cst_113 = arith.constant 0.000000e+00 : f32
    %526 = vector.shape_cast %517 : vector<8x1xi1> to vector<8x1xi1>
    %527 = vector.broadcast %526 : vector<8x1xi1> to vector<8x32xi1>
    %528 = vector.broadcast %cst_113 : f32 to vector<8x32xf32>
    %529 = arith.select %527, %522, %528 : vector<8x32xi1>, vector<8x32xf32>
    %cst_114 = arith.constant 0.000000e+00 : f32
    %530 = vector.shape_cast %519 : vector<8x1xi1> to vector<8x1xi1>
    %531 = vector.broadcast %530 : vector<8x1xi1> to vector<8x32xi1>
    %532 = vector.broadcast %cst_114 : f32 to vector<8x32xf32>
    %533 = arith.select %531, %525, %532 : vector<8x32xi1>, vector<8x32xf32>
    %534 = arith.index_cast %468 : i32 to index
    %c0_115 = arith.constant 0 : index
    %535 = vector.load %arg7[%534, %c0_115] : memref<128x32xf32, #tpu.memory_space<vmem>>, vector<8x32xf32>
    tpu.vector_store %arg7[%534, %c0_115], %529 {strides = array<i32>} : memref<128x32xf32, #tpu.memory_space<vmem>>, vector<8x32xf32>,
    %536 = arith.index_cast %470 : i32 to index
    %c0_116 = arith.constant 0 : index
    %537 = vector.load %arg11[%536, %c0_116] : memref<128x32xf32, #tpu.memory_space<vmem>>, vector<8x32xf32>
    tpu.vector_store %arg11[%536, %c0_116], %533 {strides = array<i32>} : memref<128x32xf32, #tpu.memory_space<vmem>>, vector<8x32xf32>,
    %538 = tpu.concatenate %522, %525 in 1 : vector<8x32xf32>, vector<8x32xf32> -> vector<8x64xf32>
    %c7_i32 = arith.constant 7 : i32
    %c16_i32_117 = arith.constant 16 : i32
    %539 = arith.muli %arg0, %c16_i32_117 : i32
    %540 = arith.addi %539, %c7_i32 : i32
    %c15_i32_118 = arith.constant 15 : i32
    %541 = arith.subi %c15_i32_118, %540 : i32
    %c8_i32_119 = arith.constant 8 : i32
    %542 = arith.muli %c7_i32, %c8_i32_119 : i32
    %c15_i32_120 = arith.constant 15 : i32
    %543 = arith.subi %c15_i32_120, %c7_i32 : i32
    %c8_i32_121 = arith.constant 8 : i32
    %544 = arith.muli %543, %c8_i32_121 : i32
    %cst_122 = arith.constant dense<0.000000e+00> : vector<8x192xf32>
    %545 = tpu.matmul %538, %14, %cst_122 {dimension_numbers = #tpu.dot_dimension_numbers<[1], [0], [0], [1], [0, 0, 1, 1], [], []>} : vector<8x64xf32>, vector<64x192xf32>, vector<8x192xf32> -> vector<8x192xf32>
    %546 = vector.broadcast %15 : vector<1x192xf32> to vector<8x192xf32>
    %547 = arith.addf %545, %546 : vector<8x192xf32>
    %548 = arith.index_cast %542 : i32 to index
    %c0_123 = arith.constant 0 : index
    %549 = vector.load %arg9[%548, %c0_123] : memref<128x96xf32, #tpu.memory_space<vmem>>, vector<8x96xf32>
    %550 = arith.index_cast %544 : i32 to index
    %c0_124 = arith.constant 0 : index
    %551 = vector.load %arg10[%550, %c0_124] : memref<128x96xf32, #tpu.memory_space<vmem>>, vector<8x96xf32>
    %552 = vector.extract_strided_slice %549 {offsets = [0, 0], sizes = [8, 64], strides = [1, 1]} : vector<8x96xf32> to vector<8x64xf32>
    %553 = vector.extract_strided_slice %547 {offsets = [0, 0], sizes = [8, 64], strides = [1, 1]} : vector<8x192xf32> to vector<8x64xf32>
    %554 = arith.addf %552, %553 : vector<8x64xf32>
    %555 = arith.negf %554 : vector<8x64xf32>
    %556 = math.exp %555 : vector<8x64xf32>
    %cst_125 = arith.constant 1.000000e+00 : f32
    %557 = vector.broadcast %cst_125 : f32 to vector<8x64xf32>
    %558 = arith.addf %557, %556 : vector<8x64xf32>
    %559 = arith.divf %557, %558 : vector<8x64xf32>
    %560 = vector.extract_strided_slice %551 {offsets = [0, 0], sizes = [8, 64], strides = [1, 1]} : vector<8x96xf32> to vector<8x64xf32>
    %561 = vector.extract_strided_slice %547 {offsets = [0, 96], sizes = [8, 64], strides = [1, 1]} : vector<8x192xf32> to vector<8x64xf32>
    %562 = arith.addf %560, %561 : vector<8x64xf32>
    %563 = arith.negf %562 : vector<8x64xf32>
    %564 = math.exp %563 : vector<8x64xf32>
    %cst_126 = arith.constant 1.000000e+00 : f32
    %565 = vector.broadcast %cst_126 : f32 to vector<8x64xf32>
    %566 = arith.addf %565, %564 : vector<8x64xf32>
    %567 = arith.divf %565, %566 : vector<8x64xf32>
    %568 = vector.extract_strided_slice %549 {offsets = [0, 64], sizes = [8, 32], strides = [1, 1]} : vector<8x96xf32> to vector<8x32xf32>
    %569 = vector.extract_strided_slice %559 {offsets = [0, 0], sizes = [8, 32], strides = [1, 1]} : vector<8x64xf32> to vector<8x32xf32>
    %570 = vector.extract_strided_slice %547 {offsets = [0, 64], sizes = [8, 32], strides = [1, 1]} : vector<8x192xf32> to vector<8x32xf32>
    %571 = arith.mulf %569, %570 : vector<8x32xf32>
    %572 = arith.addf %568, %571 : vector<8x32xf32>
    %573 = math.tanh %572 : vector<8x32xf32>
    %574 = vector.extract_strided_slice %551 {offsets = [0, 64], sizes = [8, 32], strides = [1, 1]} : vector<8x96xf32> to vector<8x32xf32>
    %575 = vector.extract_strided_slice %567 {offsets = [0, 0], sizes = [8, 32], strides = [1, 1]} : vector<8x64xf32> to vector<8x32xf32>
    %576 = vector.extract_strided_slice %547 {offsets = [0, 160], sizes = [8, 32], strides = [1, 1]} : vector<8x192xf32> to vector<8x32xf32>
    %577 = arith.mulf %575, %576 : vector<8x32xf32>
    %578 = arith.addf %574, %577 : vector<8x32xf32>
    %579 = math.tanh %578 : vector<8x32xf32>
    %580 = vector.extract_strided_slice %538 {offsets = [0, 0], sizes = [8, 32], strides = [1, 1]} : vector<8x64xf32> to vector<8x32xf32>
    %581 = vector.extract_strided_slice %538 {offsets = [0, 32], sizes = [8, 32], strides = [1, 1]} : vector<8x64xf32> to vector<8x32xf32>
    %582 = vector.extract_strided_slice %559 {offsets = [0, 32], sizes = [8, 32], strides = [1, 1]} : vector<8x64xf32> to vector<8x32xf32>
    %583 = arith.subf %580, %573 : vector<8x32xf32>
    %584 = arith.mulf %582, %583 : vector<8x32xf32>
    %585 = arith.addf %573, %584 : vector<8x32xf32>
    %586 = vector.extract_strided_slice %567 {offsets = [0, 32], sizes = [8, 32], strides = [1, 1]} : vector<8x64xf32> to vector<8x32xf32>
    %587 = arith.subf %581, %579 : vector<8x32xf32>
    %588 = arith.mulf %586, %587 : vector<8x32xf32>
    %589 = arith.addf %579, %588 : vector<8x32xf32>
    %590 = vector.broadcast %540 : i32 to vector<8x1xi32>
    %591 = arith.cmpi sgt, %13, %590 : vector<8x1xi32>
    %592 = vector.broadcast %541 : i32 to vector<8x1xi32>
    %593 = arith.cmpi sgt, %13, %592 : vector<8x1xi32>
    %594 = vector.shape_cast %591 : vector<8x1xi1> to vector<8x1xi1>
    %595 = vector.broadcast %594 : vector<8x1xi1> to vector<8x32xi1>
    %596 = arith.select %595, %585, %580 : vector<8x32xi1>, vector<8x32xf32>
    %597 = vector.shape_cast %593 : vector<8x1xi1> to vector<8x1xi1>
    %598 = vector.broadcast %597 : vector<8x1xi1> to vector<8x32xi1>
    %599 = arith.select %598, %589, %581 : vector<8x32xi1>, vector<8x32xf32>
    %cst_127 = arith.constant 0.000000e+00 : f32
    %600 = vector.shape_cast %591 : vector<8x1xi1> to vector<8x1xi1>
    %601 = vector.broadcast %600 : vector<8x1xi1> to vector<8x32xi1>
    %602 = vector.broadcast %cst_127 : f32 to vector<8x32xf32>
    %603 = arith.select %601, %596, %602 : vector<8x32xi1>, vector<8x32xf32>
    %cst_128 = arith.constant 0.000000e+00 : f32
    %604 = vector.shape_cast %593 : vector<8x1xi1> to vector<8x1xi1>
    %605 = vector.broadcast %604 : vector<8x1xi1> to vector<8x32xi1>
    %606 = vector.broadcast %cst_128 : f32 to vector<8x32xf32>
    %607 = arith.select %605, %599, %606 : vector<8x32xi1>, vector<8x32xf32>
    %608 = arith.index_cast %542 : i32 to index
    %c0_129 = arith.constant 0 : index
    %609 = vector.load %arg7[%608, %c0_129] : memref<128x32xf32, #tpu.memory_space<vmem>>, vector<8x32xf32>
    tpu.vector_store %arg7[%608, %c0_129], %603 {strides = array<i32>} : memref<128x32xf32, #tpu.memory_space<vmem>>, vector<8x32xf32>,
    %610 = arith.index_cast %544 : i32 to index
    %c0_130 = arith.constant 0 : index
    %611 = vector.load %arg11[%610, %c0_130] : memref<128x32xf32, #tpu.memory_space<vmem>>, vector<8x32xf32>
    tpu.vector_store %arg11[%610, %c0_130], %607 {strides = array<i32>} : memref<128x32xf32, #tpu.memory_space<vmem>>, vector<8x32xf32>,
    %612 = tpu.concatenate %596, %599 in 1 : vector<8x32xf32>, vector<8x32xf32> -> vector<8x64xf32>
    %c8_i32_131 = arith.constant 8 : i32
    %c16_i32_132 = arith.constant 16 : i32
    %613 = arith.muli %arg0, %c16_i32_132 : i32
    %614 = arith.addi %613, %c8_i32_131 : i32
    %c15_i32_133 = arith.constant 15 : i32
    %615 = arith.subi %c15_i32_133, %614 : i32
    %c8_i32_134 = arith.constant 8 : i32
    %616 = arith.muli %c8_i32_131, %c8_i32_134 : i32
    %c15_i32_135 = arith.constant 15 : i32
    %617 = arith.subi %c15_i32_135, %c8_i32_131 : i32
    %c8_i32_136 = arith.constant 8 : i32
    %618 = arith.muli %617, %c8_i32_136 : i32
    %cst_137 = arith.constant dense<0.000000e+00> : vector<8x192xf32>
    %619 = tpu.matmul %612, %14, %cst_137 {dimension_numbers = #tpu.dot_dimension_numbers<[1], [0], [0], [1], [0, 0, 1, 1], [], []>} : vector<8x64xf32>, vector<64x192xf32>, vector<8x192xf32> -> vector<8x192xf32>
    %620 = vector.broadcast %15 : vector<1x192xf32> to vector<8x192xf32>
    %621 = arith.addf %619, %620 : vector<8x192xf32>
    %622 = arith.index_cast %616 : i32 to index
    %c0_138 = arith.constant 0 : index
    %623 = vector.load %arg9[%622, %c0_138] : memref<128x96xf32, #tpu.memory_space<vmem>>, vector<8x96xf32>
    %624 = arith.index_cast %618 : i32 to index
    %c0_139 = arith.constant 0 : index
    %625 = vector.load %arg10[%624, %c0_139] : memref<128x96xf32, #tpu.memory_space<vmem>>, vector<8x96xf32>
    %626 = vector.extract_strided_slice %623 {offsets = [0, 0], sizes = [8, 64], strides = [1, 1]} : vector<8x96xf32> to vector<8x64xf32>
    %627 = vector.extract_strided_slice %621 {offsets = [0, 0], sizes = [8, 64], strides = [1, 1]} : vector<8x192xf32> to vector<8x64xf32>
    %628 = arith.addf %626, %627 : vector<8x64xf32>
    %629 = arith.negf %628 : vector<8x64xf32>
    %630 = math.exp %629 : vector<8x64xf32>
    %cst_140 = arith.constant 1.000000e+00 : f32
    %631 = vector.broadcast %cst_140 : f32 to vector<8x64xf32>
    %632 = arith.addf %631, %630 : vector<8x64xf32>
    %633 = arith.divf %631, %632 : vector<8x64xf32>
    %634 = vector.extract_strided_slice %625 {offsets = [0, 0], sizes = [8, 64], strides = [1, 1]} : vector<8x96xf32> to vector<8x64xf32>
    %635 = vector.extract_strided_slice %621 {offsets = [0, 96], sizes = [8, 64], strides = [1, 1]} : vector<8x192xf32> to vector<8x64xf32>
    %636 = arith.addf %634, %635 : vector<8x64xf32>
    %637 = arith.negf %636 : vector<8x64xf32>
    %638 = math.exp %637 : vector<8x64xf32>
    %cst_141 = arith.constant 1.000000e+00 : f32
    %639 = vector.broadcast %cst_141 : f32 to vector<8x64xf32>
    %640 = arith.addf %639, %638 : vector<8x64xf32>
    %641 = arith.divf %639, %640 : vector<8x64xf32>
    %642 = vector.extract_strided_slice %623 {offsets = [0, 64], sizes = [8, 32], strides = [1, 1]} : vector<8x96xf32> to vector<8x32xf32>
    %643 = vector.extract_strided_slice %633 {offsets = [0, 0], sizes = [8, 32], strides = [1, 1]} : vector<8x64xf32> to vector<8x32xf32>
    %644 = vector.extract_strided_slice %621 {offsets = [0, 64], sizes = [8, 32], strides = [1, 1]} : vector<8x192xf32> to vector<8x32xf32>
    %645 = arith.mulf %643, %644 : vector<8x32xf32>
    %646 = arith.addf %642, %645 : vector<8x32xf32>
    %647 = math.tanh %646 : vector<8x32xf32>
    %648 = vector.extract_strided_slice %625 {offsets = [0, 64], sizes = [8, 32], strides = [1, 1]} : vector<8x96xf32> to vector<8x32xf32>
    %649 = vector.extract_strided_slice %641 {offsets = [0, 0], sizes = [8, 32], strides = [1, 1]} : vector<8x64xf32> to vector<8x32xf32>
    %650 = vector.extract_strided_slice %621 {offsets = [0, 160], sizes = [8, 32], strides = [1, 1]} : vector<8x192xf32> to vector<8x32xf32>
    %651 = arith.mulf %649, %650 : vector<8x32xf32>
    %652 = arith.addf %648, %651 : vector<8x32xf32>
    %653 = math.tanh %652 : vector<8x32xf32>
    %654 = vector.extract_strided_slice %612 {offsets = [0, 0], sizes = [8, 32], strides = [1, 1]} : vector<8x64xf32> to vector<8x32xf32>
    %655 = vector.extract_strided_slice %612 {offsets = [0, 32], sizes = [8, 32], strides = [1, 1]} : vector<8x64xf32> to vector<8x32xf32>
    %656 = vector.extract_strided_slice %633 {offsets = [0, 32], sizes = [8, 32], strides = [1, 1]} : vector<8x64xf32> to vector<8x32xf32>
    %657 = arith.subf %654, %647 : vector<8x32xf32>
    %658 = arith.mulf %656, %657 : vector<8x32xf32>
    %659 = arith.addf %647, %658 : vector<8x32xf32>
    %660 = vector.extract_strided_slice %641 {offsets = [0, 32], sizes = [8, 32], strides = [1, 1]} : vector<8x64xf32> to vector<8x32xf32>
    %661 = arith.subf %655, %653 : vector<8x32xf32>
    %662 = arith.mulf %660, %661 : vector<8x32xf32>
    %663 = arith.addf %653, %662 : vector<8x32xf32>
    %664 = vector.broadcast %614 : i32 to vector<8x1xi32>
    %665 = arith.cmpi sgt, %13, %664 : vector<8x1xi32>
    %666 = vector.broadcast %615 : i32 to vector<8x1xi32>
    %667 = arith.cmpi sgt, %13, %666 : vector<8x1xi32>
    %668 = vector.shape_cast %665 : vector<8x1xi1> to vector<8x1xi1>
    %669 = vector.broadcast %668 : vector<8x1xi1> to vector<8x32xi1>
    %670 = arith.select %669, %659, %654 : vector<8x32xi1>, vector<8x32xf32>
    %671 = vector.shape_cast %667 : vector<8x1xi1> to vector<8x1xi1>
    %672 = vector.broadcast %671 : vector<8x1xi1> to vector<8x32xi1>
    %673 = arith.select %672, %663, %655 : vector<8x32xi1>, vector<8x32xf32>
    %cst_142 = arith.constant 0.000000e+00 : f32
    %674 = vector.shape_cast %665 : vector<8x1xi1> to vector<8x1xi1>
    %675 = vector.broadcast %674 : vector<8x1xi1> to vector<8x32xi1>
    %676 = vector.broadcast %cst_142 : f32 to vector<8x32xf32>
    %677 = arith.select %675, %670, %676 : vector<8x32xi1>, vector<8x32xf32>
    %cst_143 = arith.constant 0.000000e+00 : f32
    %678 = vector.shape_cast %667 : vector<8x1xi1> to vector<8x1xi1>
    %679 = vector.broadcast %678 : vector<8x1xi1> to vector<8x32xi1>
    %680 = vector.broadcast %cst_143 : f32 to vector<8x32xf32>
    %681 = arith.select %679, %673, %680 : vector<8x32xi1>, vector<8x32xf32>
    %682 = arith.index_cast %616 : i32 to index
    %c0_144 = arith.constant 0 : index
    %683 = vector.load %arg7[%682, %c0_144] : memref<128x32xf32, #tpu.memory_space<vmem>>, vector<8x32xf32>
    tpu.vector_store %arg7[%682, %c0_144], %677 {strides = array<i32>} : memref<128x32xf32, #tpu.memory_space<vmem>>, vector<8x32xf32>,
    %684 = arith.index_cast %618 : i32 to index
    %c0_145 = arith.constant 0 : index
    %685 = vector.load %arg11[%684, %c0_145] : memref<128x32xf32, #tpu.memory_space<vmem>>, vector<8x32xf32>
    tpu.vector_store %arg11[%684, %c0_145], %681 {strides = array<i32>} : memref<128x32xf32, #tpu.memory_space<vmem>>, vector<8x32xf32>,
    %686 = tpu.concatenate %670, %673 in 1 : vector<8x32xf32>, vector<8x32xf32> -> vector<8x64xf32>
    %c9_i32 = arith.constant 9 : i32
    %c16_i32_146 = arith.constant 16 : i32
    %687 = arith.muli %arg0, %c16_i32_146 : i32
    %688 = arith.addi %687, %c9_i32 : i32
    %c15_i32_147 = arith.constant 15 : i32
    %689 = arith.subi %c15_i32_147, %688 : i32
    %c8_i32_148 = arith.constant 8 : i32
    %690 = arith.muli %c9_i32, %c8_i32_148 : i32
    %c15_i32_149 = arith.constant 15 : i32
    %691 = arith.subi %c15_i32_149, %c9_i32 : i32
    %c8_i32_150 = arith.constant 8 : i32
    %692 = arith.muli %691, %c8_i32_150 : i32
    %cst_151 = arith.constant dense<0.000000e+00> : vector<8x192xf32>
    %693 = tpu.matmul %686, %14, %cst_151 {dimension_numbers = #tpu.dot_dimension_numbers<[1], [0], [0], [1], [0, 0, 1, 1], [], []>} : vector<8x64xf32>, vector<64x192xf32>, vector<8x192xf32> -> vector<8x192xf32>
    %694 = vector.broadcast %15 : vector<1x192xf32> to vector<8x192xf32>
    %695 = arith.addf %693, %694 : vector<8x192xf32>
    %696 = arith.index_cast %690 : i32 to index
    %c0_152 = arith.constant 0 : index
    %697 = vector.load %arg9[%696, %c0_152] : memref<128x96xf32, #tpu.memory_space<vmem>>, vector<8x96xf32>
    %698 = arith.index_cast %692 : i32 to index
    %c0_153 = arith.constant 0 : index
    %699 = vector.load %arg10[%698, %c0_153] : memref<128x96xf32, #tpu.memory_space<vmem>>, vector<8x96xf32>
    %700 = vector.extract_strided_slice %697 {offsets = [0, 0], sizes = [8, 64], strides = [1, 1]} : vector<8x96xf32> to vector<8x64xf32>
    %701 = vector.extract_strided_slice %695 {offsets = [0, 0], sizes = [8, 64], strides = [1, 1]} : vector<8x192xf32> to vector<8x64xf32>
    %702 = arith.addf %700, %701 : vector<8x64xf32>
    %703 = arith.negf %702 : vector<8x64xf32>
    %704 = math.exp %703 : vector<8x64xf32>
    %cst_154 = arith.constant 1.000000e+00 : f32
    %705 = vector.broadcast %cst_154 : f32 to vector<8x64xf32>
    %706 = arith.addf %705, %704 : vector<8x64xf32>
    %707 = arith.divf %705, %706 : vector<8x64xf32>
    %708 = vector.extract_strided_slice %699 {offsets = [0, 0], sizes = [8, 64], strides = [1, 1]} : vector<8x96xf32> to vector<8x64xf32>
    %709 = vector.extract_strided_slice %695 {offsets = [0, 96], sizes = [8, 64], strides = [1, 1]} : vector<8x192xf32> to vector<8x64xf32>
    %710 = arith.addf %708, %709 : vector<8x64xf32>
    %711 = arith.negf %710 : vector<8x64xf32>
    %712 = math.exp %711 : vector<8x64xf32>
    %cst_155 = arith.constant 1.000000e+00 : f32
    %713 = vector.broadcast %cst_155 : f32 to vector<8x64xf32>
    %714 = arith.addf %713, %712 : vector<8x64xf32>
    %715 = arith.divf %713, %714 : vector<8x64xf32>
    %716 = vector.extract_strided_slice %697 {offsets = [0, 64], sizes = [8, 32], strides = [1, 1]} : vector<8x96xf32> to vector<8x32xf32>
    %717 = vector.extract_strided_slice %707 {offsets = [0, 0], sizes = [8, 32], strides = [1, 1]} : vector<8x64xf32> to vector<8x32xf32>
    %718 = vector.extract_strided_slice %695 {offsets = [0, 64], sizes = [8, 32], strides = [1, 1]} : vector<8x192xf32> to vector<8x32xf32>
    %719 = arith.mulf %717, %718 : vector<8x32xf32>
    %720 = arith.addf %716, %719 : vector<8x32xf32>
    %721 = math.tanh %720 : vector<8x32xf32>
    %722 = vector.extract_strided_slice %699 {offsets = [0, 64], sizes = [8, 32], strides = [1, 1]} : vector<8x96xf32> to vector<8x32xf32>
    %723 = vector.extract_strided_slice %715 {offsets = [0, 0], sizes = [8, 32], strides = [1, 1]} : vector<8x64xf32> to vector<8x32xf32>
    %724 = vector.extract_strided_slice %695 {offsets = [0, 160], sizes = [8, 32], strides = [1, 1]} : vector<8x192xf32> to vector<8x32xf32>
    %725 = arith.mulf %723, %724 : vector<8x32xf32>
    %726 = arith.addf %722, %725 : vector<8x32xf32>
    %727 = math.tanh %726 : vector<8x32xf32>
    %728 = vector.extract_strided_slice %686 {offsets = [0, 0], sizes = [8, 32], strides = [1, 1]} : vector<8x64xf32> to vector<8x32xf32>
    %729 = vector.extract_strided_slice %686 {offsets = [0, 32], sizes = [8, 32], strides = [1, 1]} : vector<8x64xf32> to vector<8x32xf32>
    %730 = vector.extract_strided_slice %707 {offsets = [0, 32], sizes = [8, 32], strides = [1, 1]} : vector<8x64xf32> to vector<8x32xf32>
    %731 = arith.subf %728, %721 : vector<8x32xf32>
    %732 = arith.mulf %730, %731 : vector<8x32xf32>
    %733 = arith.addf %721, %732 : vector<8x32xf32>
    %734 = vector.extract_strided_slice %715 {offsets = [0, 32], sizes = [8, 32], strides = [1, 1]} : vector<8x64xf32> to vector<8x32xf32>
    %735 = arith.subf %729, %727 : vector<8x32xf32>
    %736 = arith.mulf %734, %735 : vector<8x32xf32>
    %737 = arith.addf %727, %736 : vector<8x32xf32>
    %738 = vector.broadcast %688 : i32 to vector<8x1xi32>
    %739 = arith.cmpi sgt, %13, %738 : vector<8x1xi32>
    %740 = vector.broadcast %689 : i32 to vector<8x1xi32>
    %741 = arith.cmpi sgt, %13, %740 : vector<8x1xi32>
    %742 = vector.shape_cast %739 : vector<8x1xi1> to vector<8x1xi1>
    %743 = vector.broadcast %742 : vector<8x1xi1> to vector<8x32xi1>
    %744 = arith.select %743, %733, %728 : vector<8x32xi1>, vector<8x32xf32>
    %745 = vector.shape_cast %741 : vector<8x1xi1> to vector<8x1xi1>
    %746 = vector.broadcast %745 : vector<8x1xi1> to vector<8x32xi1>
    %747 = arith.select %746, %737, %729 : vector<8x32xi1>, vector<8x32xf32>
    %cst_156 = arith.constant 0.000000e+00 : f32
    %748 = vector.shape_cast %739 : vector<8x1xi1> to vector<8x1xi1>
    %749 = vector.broadcast %748 : vector<8x1xi1> to vector<8x32xi1>
    %750 = vector.broadcast %cst_156 : f32 to vector<8x32xf32>
    %751 = arith.select %749, %744, %750 : vector<8x32xi1>, vector<8x32xf32>
    %cst_157 = arith.constant 0.000000e+00 : f32
    %752 = vector.shape_cast %741 : vector<8x1xi1> to vector<8x1xi1>
    %753 = vector.broadcast %752 : vector<8x1xi1> to vector<8x32xi1>
    %754 = vector.broadcast %cst_157 : f32 to vector<8x32xf32>
    %755 = arith.select %753, %747, %754 : vector<8x32xi1>, vector<8x32xf32>
    %756 = arith.index_cast %690 : i32 to index
    %c0_158 = arith.constant 0 : index
    %757 = vector.load %arg7[%756, %c0_158] : memref<128x32xf32, #tpu.memory_space<vmem>>, vector<8x32xf32>
    tpu.vector_store %arg7[%756, %c0_158], %751 {strides = array<i32>} : memref<128x32xf32, #tpu.memory_space<vmem>>, vector<8x32xf32>,
    %758 = arith.index_cast %692 : i32 to index
    %c0_159 = arith.constant 0 : index
    %759 = vector.load %arg11[%758, %c0_159] : memref<128x32xf32, #tpu.memory_space<vmem>>, vector<8x32xf32>
    tpu.vector_store %arg11[%758, %c0_159], %755 {strides = array<i32>} : memref<128x32xf32, #tpu.memory_space<vmem>>, vector<8x32xf32>,
    %760 = tpu.concatenate %744, %747 in 1 : vector<8x32xf32>, vector<8x32xf32> -> vector<8x64xf32>
    %c10_i32 = arith.constant 10 : i32
    %c16_i32_160 = arith.constant 16 : i32
    %761 = arith.muli %arg0, %c16_i32_160 : i32
    %762 = arith.addi %761, %c10_i32 : i32
    %c15_i32_161 = arith.constant 15 : i32
    %763 = arith.subi %c15_i32_161, %762 : i32
    %c8_i32_162 = arith.constant 8 : i32
    %764 = arith.muli %c10_i32, %c8_i32_162 : i32
    %c15_i32_163 = arith.constant 15 : i32
    %765 = arith.subi %c15_i32_163, %c10_i32 : i32
    %c8_i32_164 = arith.constant 8 : i32
    %766 = arith.muli %765, %c8_i32_164 : i32
    %cst_165 = arith.constant dense<0.000000e+00> : vector<8x192xf32>
    %767 = tpu.matmul %760, %14, %cst_165 {dimension_numbers = #tpu.dot_dimension_numbers<[1], [0], [0], [1], [0, 0, 1, 1], [], []>} : vector<8x64xf32>, vector<64x192xf32>, vector<8x192xf32> -> vector<8x192xf32>
    %768 = vector.broadcast %15 : vector<1x192xf32> to vector<8x192xf32>
    %769 = arith.addf %767, %768 : vector<8x192xf32>
    %770 = arith.index_cast %764 : i32 to index
    %c0_166 = arith.constant 0 : index
    %771 = vector.load %arg9[%770, %c0_166] : memref<128x96xf32, #tpu.memory_space<vmem>>, vector<8x96xf32>
    %772 = arith.index_cast %766 : i32 to index
    %c0_167 = arith.constant 0 : index
    %773 = vector.load %arg10[%772, %c0_167] : memref<128x96xf32, #tpu.memory_space<vmem>>, vector<8x96xf32>
    %774 = vector.extract_strided_slice %771 {offsets = [0, 0], sizes = [8, 64], strides = [1, 1]} : vector<8x96xf32> to vector<8x64xf32>
    %775 = vector.extract_strided_slice %769 {offsets = [0, 0], sizes = [8, 64], strides = [1, 1]} : vector<8x192xf32> to vector<8x64xf32>
    %776 = arith.addf %774, %775 : vector<8x64xf32>
    %777 = arith.negf %776 : vector<8x64xf32>
    %778 = math.exp %777 : vector<8x64xf32>
    %cst_168 = arith.constant 1.000000e+00 : f32
    %779 = vector.broadcast %cst_168 : f32 to vector<8x64xf32>
    %780 = arith.addf %779, %778 : vector<8x64xf32>
    %781 = arith.divf %779, %780 : vector<8x64xf32>
    %782 = vector.extract_strided_slice %773 {offsets = [0, 0], sizes = [8, 64], strides = [1, 1]} : vector<8x96xf32> to vector<8x64xf32>
    %783 = vector.extract_strided_slice %769 {offsets = [0, 96], sizes = [8, 64], strides = [1, 1]} : vector<8x192xf32> to vector<8x64xf32>
    %784 = arith.addf %782, %783 : vector<8x64xf32>
    %785 = arith.negf %784 : vector<8x64xf32>
    %786 = math.exp %785 : vector<8x64xf32>
    %cst_169 = arith.constant 1.000000e+00 : f32
    %787 = vector.broadcast %cst_169 : f32 to vector<8x64xf32>
    %788 = arith.addf %787, %786 : vector<8x64xf32>
    %789 = arith.divf %787, %788 : vector<8x64xf32>
    %790 = vector.extract_strided_slice %771 {offsets = [0, 64], sizes = [8, 32], strides = [1, 1]} : vector<8x96xf32> to vector<8x32xf32>
    %791 = vector.extract_strided_slice %781 {offsets = [0, 0], sizes = [8, 32], strides = [1, 1]} : vector<8x64xf32> to vector<8x32xf32>
    %792 = vector.extract_strided_slice %769 {offsets = [0, 64], sizes = [8, 32], strides = [1, 1]} : vector<8x192xf32> to vector<8x32xf32>
    %793 = arith.mulf %791, %792 : vector<8x32xf32>
    %794 = arith.addf %790, %793 : vector<8x32xf32>
    %795 = math.tanh %794 : vector<8x32xf32>
    %796 = vector.extract_strided_slice %773 {offsets = [0, 64], sizes = [8, 32], strides = [1, 1]} : vector<8x96xf32> to vector<8x32xf32>
    %797 = vector.extract_strided_slice %789 {offsets = [0, 0], sizes = [8, 32], strides = [1, 1]} : vector<8x64xf32> to vector<8x32xf32>
    %798 = vector.extract_strided_slice %769 {offsets = [0, 160], sizes = [8, 32], strides = [1, 1]} : vector<8x192xf32> to vector<8x32xf32>
    %799 = arith.mulf %797, %798 : vector<8x32xf32>
    %800 = arith.addf %796, %799 : vector<8x32xf32>
    %801 = math.tanh %800 : vector<8x32xf32>
    %802 = vector.extract_strided_slice %760 {offsets = [0, 0], sizes = [8, 32], strides = [1, 1]} : vector<8x64xf32> to vector<8x32xf32>
    %803 = vector.extract_strided_slice %760 {offsets = [0, 32], sizes = [8, 32], strides = [1, 1]} : vector<8x64xf32> to vector<8x32xf32>
    %804 = vector.extract_strided_slice %781 {offsets = [0, 32], sizes = [8, 32], strides = [1, 1]} : vector<8x64xf32> to vector<8x32xf32>
    %805 = arith.subf %802, %795 : vector<8x32xf32>
    %806 = arith.mulf %804, %805 : vector<8x32xf32>
    %807 = arith.addf %795, %806 : vector<8x32xf32>
    %808 = vector.extract_strided_slice %789 {offsets = [0, 32], sizes = [8, 32], strides = [1, 1]} : vector<8x64xf32> to vector<8x32xf32>
    %809 = arith.subf %803, %801 : vector<8x32xf32>
    %810 = arith.mulf %808, %809 : vector<8x32xf32>
    %811 = arith.addf %801, %810 : vector<8x32xf32>
    %812 = vector.broadcast %762 : i32 to vector<8x1xi32>
    %813 = arith.cmpi sgt, %13, %812 : vector<8x1xi32>
    %814 = vector.broadcast %763 : i32 to vector<8x1xi32>
    %815 = arith.cmpi sgt, %13, %814 : vector<8x1xi32>
    %816 = vector.shape_cast %813 : vector<8x1xi1> to vector<8x1xi1>
    %817 = vector.broadcast %816 : vector<8x1xi1> to vector<8x32xi1>
    %818 = arith.select %817, %807, %802 : vector<8x32xi1>, vector<8x32xf32>
    %819 = vector.shape_cast %815 : vector<8x1xi1> to vector<8x1xi1>
    %820 = vector.broadcast %819 : vector<8x1xi1> to vector<8x32xi1>
    %821 = arith.select %820, %811, %803 : vector<8x32xi1>, vector<8x32xf32>
    %cst_170 = arith.constant 0.000000e+00 : f32
    %822 = vector.shape_cast %813 : vector<8x1xi1> to vector<8x1xi1>
    %823 = vector.broadcast %822 : vector<8x1xi1> to vector<8x32xi1>
    %824 = vector.broadcast %cst_170 : f32 to vector<8x32xf32>
    %825 = arith.select %823, %818, %824 : vector<8x32xi1>, vector<8x32xf32>
    %cst_171 = arith.constant 0.000000e+00 : f32
    %826 = vector.shape_cast %815 : vector<8x1xi1> to vector<8x1xi1>
    %827 = vector.broadcast %826 : vector<8x1xi1> to vector<8x32xi1>
    %828 = vector.broadcast %cst_171 : f32 to vector<8x32xf32>
    %829 = arith.select %827, %821, %828 : vector<8x32xi1>, vector<8x32xf32>
    %830 = arith.index_cast %764 : i32 to index
    %c0_172 = arith.constant 0 : index
    %831 = vector.load %arg7[%830, %c0_172] : memref<128x32xf32, #tpu.memory_space<vmem>>, vector<8x32xf32>
    tpu.vector_store %arg7[%830, %c0_172], %825 {strides = array<i32>} : memref<128x32xf32, #tpu.memory_space<vmem>>, vector<8x32xf32>,
    %832 = arith.index_cast %766 : i32 to index
    %c0_173 = arith.constant 0 : index
    %833 = vector.load %arg11[%832, %c0_173] : memref<128x32xf32, #tpu.memory_space<vmem>>, vector<8x32xf32>
    tpu.vector_store %arg11[%832, %c0_173], %829 {strides = array<i32>} : memref<128x32xf32, #tpu.memory_space<vmem>>, vector<8x32xf32>,
    %834 = tpu.concatenate %818, %821 in 1 : vector<8x32xf32>, vector<8x32xf32> -> vector<8x64xf32>
    %c11_i32 = arith.constant 11 : i32
    %c16_i32_174 = arith.constant 16 : i32
    %835 = arith.muli %arg0, %c16_i32_174 : i32
    %836 = arith.addi %835, %c11_i32 : i32
    %c15_i32_175 = arith.constant 15 : i32
    %837 = arith.subi %c15_i32_175, %836 : i32
    %c8_i32_176 = arith.constant 8 : i32
    %838 = arith.muli %c11_i32, %c8_i32_176 : i32
    %c15_i32_177 = arith.constant 15 : i32
    %839 = arith.subi %c15_i32_177, %c11_i32 : i32
    %c8_i32_178 = arith.constant 8 : i32
    %840 = arith.muli %839, %c8_i32_178 : i32
    %cst_179 = arith.constant dense<0.000000e+00> : vector<8x192xf32>
    %841 = tpu.matmul %834, %14, %cst_179 {dimension_numbers = #tpu.dot_dimension_numbers<[1], [0], [0], [1], [0, 0, 1, 1], [], []>} : vector<8x64xf32>, vector<64x192xf32>, vector<8x192xf32> -> vector<8x192xf32>
    %842 = vector.broadcast %15 : vector<1x192xf32> to vector<8x192xf32>
    %843 = arith.addf %841, %842 : vector<8x192xf32>
    %844 = arith.index_cast %838 : i32 to index
    %c0_180 = arith.constant 0 : index
    %845 = vector.load %arg9[%844, %c0_180] : memref<128x96xf32, #tpu.memory_space<vmem>>, vector<8x96xf32>
    %846 = arith.index_cast %840 : i32 to index
    %c0_181 = arith.constant 0 : index
    %847 = vector.load %arg10[%846, %c0_181] : memref<128x96xf32, #tpu.memory_space<vmem>>, vector<8x96xf32>
    %848 = vector.extract_strided_slice %845 {offsets = [0, 0], sizes = [8, 64], strides = [1, 1]} : vector<8x96xf32> to vector<8x64xf32>
    %849 = vector.extract_strided_slice %843 {offsets = [0, 0], sizes = [8, 64], strides = [1, 1]} : vector<8x192xf32> to vector<8x64xf32>
    %850 = arith.addf %848, %849 : vector<8x64xf32>
    %851 = arith.negf %850 : vector<8x64xf32>
    %852 = math.exp %851 : vector<8x64xf32>
    %cst_182 = arith.constant 1.000000e+00 : f32
    %853 = vector.broadcast %cst_182 : f32 to vector<8x64xf32>
    %854 = arith.addf %853, %852 : vector<8x64xf32>
    %855 = arith.divf %853, %854 : vector<8x64xf32>
    %856 = vector.extract_strided_slice %847 {offsets = [0, 0], sizes = [8, 64], strides = [1, 1]} : vector<8x96xf32> to vector<8x64xf32>
    %857 = vector.extract_strided_slice %843 {offsets = [0, 96], sizes = [8, 64], strides = [1, 1]} : vector<8x192xf32> to vector<8x64xf32>
    %858 = arith.addf %856, %857 : vector<8x64xf32>
    %859 = arith.negf %858 : vector<8x64xf32>
    %860 = math.exp %859 : vector<8x64xf32>
    %cst_183 = arith.constant 1.000000e+00 : f32
    %861 = vector.broadcast %cst_183 : f32 to vector<8x64xf32>
    %862 = arith.addf %861, %860 : vector<8x64xf32>
    %863 = arith.divf %861, %862 : vector<8x64xf32>
    %864 = vector.extract_strided_slice %845 {offsets = [0, 64], sizes = [8, 32], strides = [1, 1]} : vector<8x96xf32> to vector<8x32xf32>
    %865 = vector.extract_strided_slice %855 {offsets = [0, 0], sizes = [8, 32], strides = [1, 1]} : vector<8x64xf32> to vector<8x32xf32>
    %866 = vector.extract_strided_slice %843 {offsets = [0, 64], sizes = [8, 32], strides = [1, 1]} : vector<8x192xf32> to vector<8x32xf32>
    %867 = arith.mulf %865, %866 : vector<8x32xf32>
    %868 = arith.addf %864, %867 : vector<8x32xf32>
    %869 = math.tanh %868 : vector<8x32xf32>
    %870 = vector.extract_strided_slice %847 {offsets = [0, 64], sizes = [8, 32], strides = [1, 1]} : vector<8x96xf32> to vector<8x32xf32>
    %871 = vector.extract_strided_slice %863 {offsets = [0, 0], sizes = [8, 32], strides = [1, 1]} : vector<8x64xf32> to vector<8x32xf32>
    %872 = vector.extract_strided_slice %843 {offsets = [0, 160], sizes = [8, 32], strides = [1, 1]} : vector<8x192xf32> to vector<8x32xf32>
    %873 = arith.mulf %871, %872 : vector<8x32xf32>
    %874 = arith.addf %870, %873 : vector<8x32xf32>
    %875 = math.tanh %874 : vector<8x32xf32>
    %876 = vector.extract_strided_slice %834 {offsets = [0, 0], sizes = [8, 32], strides = [1, 1]} : vector<8x64xf32> to vector<8x32xf32>
    %877 = vector.extract_strided_slice %834 {offsets = [0, 32], sizes = [8, 32], strides = [1, 1]} : vector<8x64xf32> to vector<8x32xf32>
    %878 = vector.extract_strided_slice %855 {offsets = [0, 32], sizes = [8, 32], strides = [1, 1]} : vector<8x64xf32> to vector<8x32xf32>
    %879 = arith.subf %876, %869 : vector<8x32xf32>
    %880 = arith.mulf %878, %879 : vector<8x32xf32>
    %881 = arith.addf %869, %880 : vector<8x32xf32>
    %882 = vector.extract_strided_slice %863 {offsets = [0, 32], sizes = [8, 32], strides = [1, 1]} : vector<8x64xf32> to vector<8x32xf32>
    %883 = arith.subf %877, %875 : vector<8x32xf32>
    %884 = arith.mulf %882, %883 : vector<8x32xf32>
    %885 = arith.addf %875, %884 : vector<8x32xf32>
    %886 = vector.broadcast %836 : i32 to vector<8x1xi32>
    %887 = arith.cmpi sgt, %13, %886 : vector<8x1xi32>
    %888 = vector.broadcast %837 : i32 to vector<8x1xi32>
    %889 = arith.cmpi sgt, %13, %888 : vector<8x1xi32>
    %890 = vector.shape_cast %887 : vector<8x1xi1> to vector<8x1xi1>
    %891 = vector.broadcast %890 : vector<8x1xi1> to vector<8x32xi1>
    %892 = arith.select %891, %881, %876 : vector<8x32xi1>, vector<8x32xf32>
    %893 = vector.shape_cast %889 : vector<8x1xi1> to vector<8x1xi1>
    %894 = vector.broadcast %893 : vector<8x1xi1> to vector<8x32xi1>
    %895 = arith.select %894, %885, %877 : vector<8x32xi1>, vector<8x32xf32>
    %cst_184 = arith.constant 0.000000e+00 : f32
    %896 = vector.shape_cast %887 : vector<8x1xi1> to vector<8x1xi1>
    %897 = vector.broadcast %896 : vector<8x1xi1> to vector<8x32xi1>
    %898 = vector.broadcast %cst_184 : f32 to vector<8x32xf32>
    %899 = arith.select %897, %892, %898 : vector<8x32xi1>, vector<8x32xf32>
    %cst_185 = arith.constant 0.000000e+00 : f32
    %900 = vector.shape_cast %889 : vector<8x1xi1> to vector<8x1xi1>
    %901 = vector.broadcast %900 : vector<8x1xi1> to vector<8x32xi1>
    %902 = vector.broadcast %cst_185 : f32 to vector<8x32xf32>
    %903 = arith.select %901, %895, %902 : vector<8x32xi1>, vector<8x32xf32>
    %904 = arith.index_cast %838 : i32 to index
    %c0_186 = arith.constant 0 : index
    %905 = vector.load %arg7[%904, %c0_186] : memref<128x32xf32, #tpu.memory_space<vmem>>, vector<8x32xf32>
    tpu.vector_store %arg7[%904, %c0_186], %899 {strides = array<i32>} : memref<128x32xf32, #tpu.memory_space<vmem>>, vector<8x32xf32>,
    %906 = arith.index_cast %840 : i32 to index
    %c0_187 = arith.constant 0 : index
    %907 = vector.load %arg11[%906, %c0_187] : memref<128x32xf32, #tpu.memory_space<vmem>>, vector<8x32xf32>
    tpu.vector_store %arg11[%906, %c0_187], %903 {strides = array<i32>} : memref<128x32xf32, #tpu.memory_space<vmem>>, vector<8x32xf32>,
    %908 = tpu.concatenate %892, %895 in 1 : vector<8x32xf32>, vector<8x32xf32> -> vector<8x64xf32>
    %c12_i32 = arith.constant 12 : i32
    %c16_i32_188 = arith.constant 16 : i32
    %909 = arith.muli %arg0, %c16_i32_188 : i32
    %910 = arith.addi %909, %c12_i32 : i32
    %c15_i32_189 = arith.constant 15 : i32
    %911 = arith.subi %c15_i32_189, %910 : i32
    %c8_i32_190 = arith.constant 8 : i32
    %912 = arith.muli %c12_i32, %c8_i32_190 : i32
    %c15_i32_191 = arith.constant 15 : i32
    %913 = arith.subi %c15_i32_191, %c12_i32 : i32
    %c8_i32_192 = arith.constant 8 : i32
    %914 = arith.muli %913, %c8_i32_192 : i32
    %cst_193 = arith.constant dense<0.000000e+00> : vector<8x192xf32>
    %915 = tpu.matmul %908, %14, %cst_193 {dimension_numbers = #tpu.dot_dimension_numbers<[1], [0], [0], [1], [0, 0, 1, 1], [], []>} : vector<8x64xf32>, vector<64x192xf32>, vector<8x192xf32> -> vector<8x192xf32>
    %916 = vector.broadcast %15 : vector<1x192xf32> to vector<8x192xf32>
    %917 = arith.addf %915, %916 : vector<8x192xf32>
    %918 = arith.index_cast %912 : i32 to index
    %c0_194 = arith.constant 0 : index
    %919 = vector.load %arg9[%918, %c0_194] : memref<128x96xf32, #tpu.memory_space<vmem>>, vector<8x96xf32>
    %920 = arith.index_cast %914 : i32 to index
    %c0_195 = arith.constant 0 : index
    %921 = vector.load %arg10[%920, %c0_195] : memref<128x96xf32, #tpu.memory_space<vmem>>, vector<8x96xf32>
    %922 = vector.extract_strided_slice %919 {offsets = [0, 0], sizes = [8, 64], strides = [1, 1]} : vector<8x96xf32> to vector<8x64xf32>
    %923 = vector.extract_strided_slice %917 {offsets = [0, 0], sizes = [8, 64], strides = [1, 1]} : vector<8x192xf32> to vector<8x64xf32>
    %924 = arith.addf %922, %923 : vector<8x64xf32>
    %925 = arith.negf %924 : vector<8x64xf32>
    %926 = math.exp %925 : vector<8x64xf32>
    %cst_196 = arith.constant 1.000000e+00 : f32
    %927 = vector.broadcast %cst_196 : f32 to vector<8x64xf32>
    %928 = arith.addf %927, %926 : vector<8x64xf32>
    %929 = arith.divf %927, %928 : vector<8x64xf32>
    %930 = vector.extract_strided_slice %921 {offsets = [0, 0], sizes = [8, 64], strides = [1, 1]} : vector<8x96xf32> to vector<8x64xf32>
    %931 = vector.extract_strided_slice %917 {offsets = [0, 96], sizes = [8, 64], strides = [1, 1]} : vector<8x192xf32> to vector<8x64xf32>
    %932 = arith.addf %930, %931 : vector<8x64xf32>
    %933 = arith.negf %932 : vector<8x64xf32>
    %934 = math.exp %933 : vector<8x64xf32>
    %cst_197 = arith.constant 1.000000e+00 : f32
    %935 = vector.broadcast %cst_197 : f32 to vector<8x64xf32>
    %936 = arith.addf %935, %934 : vector<8x64xf32>
    %937 = arith.divf %935, %936 : vector<8x64xf32>
    %938 = vector.extract_strided_slice %919 {offsets = [0, 64], sizes = [8, 32], strides = [1, 1]} : vector<8x96xf32> to vector<8x32xf32>
    %939 = vector.extract_strided_slice %929 {offsets = [0, 0], sizes = [8, 32], strides = [1, 1]} : vector<8x64xf32> to vector<8x32xf32>
    %940 = vector.extract_strided_slice %917 {offsets = [0, 64], sizes = [8, 32], strides = [1, 1]} : vector<8x192xf32> to vector<8x32xf32>
    %941 = arith.mulf %939, %940 : vector<8x32xf32>
    %942 = arith.addf %938, %941 : vector<8x32xf32>
    %943 = math.tanh %942 : vector<8x32xf32>
    %944 = vector.extract_strided_slice %921 {offsets = [0, 64], sizes = [8, 32], strides = [1, 1]} : vector<8x96xf32> to vector<8x32xf32>
    %945 = vector.extract_strided_slice %937 {offsets = [0, 0], sizes = [8, 32], strides = [1, 1]} : vector<8x64xf32> to vector<8x32xf32>
    %946 = vector.extract_strided_slice %917 {offsets = [0, 160], sizes = [8, 32], strides = [1, 1]} : vector<8x192xf32> to vector<8x32xf32>
    %947 = arith.mulf %945, %946 : vector<8x32xf32>
    %948 = arith.addf %944, %947 : vector<8x32xf32>
    %949 = math.tanh %948 : vector<8x32xf32>
    %950 = vector.extract_strided_slice %908 {offsets = [0, 0], sizes = [8, 32], strides = [1, 1]} : vector<8x64xf32> to vector<8x32xf32>
    %951 = vector.extract_strided_slice %908 {offsets = [0, 32], sizes = [8, 32], strides = [1, 1]} : vector<8x64xf32> to vector<8x32xf32>
    %952 = vector.extract_strided_slice %929 {offsets = [0, 32], sizes = [8, 32], strides = [1, 1]} : vector<8x64xf32> to vector<8x32xf32>
    %953 = arith.subf %950, %943 : vector<8x32xf32>
    %954 = arith.mulf %952, %953 : vector<8x32xf32>
    %955 = arith.addf %943, %954 : vector<8x32xf32>
    %956 = vector.extract_strided_slice %937 {offsets = [0, 32], sizes = [8, 32], strides = [1, 1]} : vector<8x64xf32> to vector<8x32xf32>
    %957 = arith.subf %951, %949 : vector<8x32xf32>
    %958 = arith.mulf %956, %957 : vector<8x32xf32>
    %959 = arith.addf %949, %958 : vector<8x32xf32>
    %960 = vector.broadcast %910 : i32 to vector<8x1xi32>
    %961 = arith.cmpi sgt, %13, %960 : vector<8x1xi32>
    %962 = vector.broadcast %911 : i32 to vector<8x1xi32>
    %963 = arith.cmpi sgt, %13, %962 : vector<8x1xi32>
    %964 = vector.shape_cast %961 : vector<8x1xi1> to vector<8x1xi1>
    %965 = vector.broadcast %964 : vector<8x1xi1> to vector<8x32xi1>
    %966 = arith.select %965, %955, %950 : vector<8x32xi1>, vector<8x32xf32>
    %967 = vector.shape_cast %963 : vector<8x1xi1> to vector<8x1xi1>
    %968 = vector.broadcast %967 : vector<8x1xi1> to vector<8x32xi1>
    %969 = arith.select %968, %959, %951 : vector<8x32xi1>, vector<8x32xf32>
    %cst_198 = arith.constant 0.000000e+00 : f32
    %970 = vector.shape_cast %961 : vector<8x1xi1> to vector<8x1xi1>
    %971 = vector.broadcast %970 : vector<8x1xi1> to vector<8x32xi1>
    %972 = vector.broadcast %cst_198 : f32 to vector<8x32xf32>
    %973 = arith.select %971, %966, %972 : vector<8x32xi1>, vector<8x32xf32>
    %cst_199 = arith.constant 0.000000e+00 : f32
    %974 = vector.shape_cast %963 : vector<8x1xi1> to vector<8x1xi1>
    %975 = vector.broadcast %974 : vector<8x1xi1> to vector<8x32xi1>
    %976 = vector.broadcast %cst_199 : f32 to vector<8x32xf32>
    %977 = arith.select %975, %969, %976 : vector<8x32xi1>, vector<8x32xf32>
    %978 = arith.index_cast %912 : i32 to index
    %c0_200 = arith.constant 0 : index
    %979 = vector.load %arg7[%978, %c0_200] : memref<128x32xf32, #tpu.memory_space<vmem>>, vector<8x32xf32>
    tpu.vector_store %arg7[%978, %c0_200], %973 {strides = array<i32>} : memref<128x32xf32, #tpu.memory_space<vmem>>, vector<8x32xf32>,
    %980 = arith.index_cast %914 : i32 to index
    %c0_201 = arith.constant 0 : index
    %981 = vector.load %arg11[%980, %c0_201] : memref<128x32xf32, #tpu.memory_space<vmem>>, vector<8x32xf32>
    tpu.vector_store %arg11[%980, %c0_201], %977 {strides = array<i32>} : memref<128x32xf32, #tpu.memory_space<vmem>>, vector<8x32xf32>,
    %982 = tpu.concatenate %966, %969 in 1 : vector<8x32xf32>, vector<8x32xf32> -> vector<8x64xf32>
    %c13_i32 = arith.constant 13 : i32
    %c16_i32_202 = arith.constant 16 : i32
    %983 = arith.muli %arg0, %c16_i32_202 : i32
    %984 = arith.addi %983, %c13_i32 : i32
    %c15_i32_203 = arith.constant 15 : i32
    %985 = arith.subi %c15_i32_203, %984 : i32
    %c8_i32_204 = arith.constant 8 : i32
    %986 = arith.muli %c13_i32, %c8_i32_204 : i32
    %c15_i32_205 = arith.constant 15 : i32
    %987 = arith.subi %c15_i32_205, %c13_i32 : i32
    %c8_i32_206 = arith.constant 8 : i32
    %988 = arith.muli %987, %c8_i32_206 : i32
    %cst_207 = arith.constant dense<0.000000e+00> : vector<8x192xf32>
    %989 = tpu.matmul %982, %14, %cst_207 {dimension_numbers = #tpu.dot_dimension_numbers<[1], [0], [0], [1], [0, 0, 1, 1], [], []>} : vector<8x64xf32>, vector<64x192xf32>, vector<8x192xf32> -> vector<8x192xf32>
    %990 = vector.broadcast %15 : vector<1x192xf32> to vector<8x192xf32>
    %991 = arith.addf %989, %990 : vector<8x192xf32>
    %992 = arith.index_cast %986 : i32 to index
    %c0_208 = arith.constant 0 : index
    %993 = vector.load %arg9[%992, %c0_208] : memref<128x96xf32, #tpu.memory_space<vmem>>, vector<8x96xf32>
    %994 = arith.index_cast %988 : i32 to index
    %c0_209 = arith.constant 0 : index
    %995 = vector.load %arg10[%994, %c0_209] : memref<128x96xf32, #tpu.memory_space<vmem>>, vector<8x96xf32>
    %996 = vector.extract_strided_slice %993 {offsets = [0, 0], sizes = [8, 64], strides = [1, 1]} : vector<8x96xf32> to vector<8x64xf32>
    %997 = vector.extract_strided_slice %991 {offsets = [0, 0], sizes = [8, 64], strides = [1, 1]} : vector<8x192xf32> to vector<8x64xf32>
    %998 = arith.addf %996, %997 : vector<8x64xf32>
    %999 = arith.negf %998 : vector<8x64xf32>
    %1000 = math.exp %999 : vector<8x64xf32>
    %cst_210 = arith.constant 1.000000e+00 : f32
    %1001 = vector.broadcast %cst_210 : f32 to vector<8x64xf32>
    %1002 = arith.addf %1001, %1000 : vector<8x64xf32>
    %1003 = arith.divf %1001, %1002 : vector<8x64xf32>
    %1004 = vector.extract_strided_slice %995 {offsets = [0, 0], sizes = [8, 64], strides = [1, 1]} : vector<8x96xf32> to vector<8x64xf32>
    %1005 = vector.extract_strided_slice %991 {offsets = [0, 96], sizes = [8, 64], strides = [1, 1]} : vector<8x192xf32> to vector<8x64xf32>
    %1006 = arith.addf %1004, %1005 : vector<8x64xf32>
    %1007 = arith.negf %1006 : vector<8x64xf32>
    %1008 = math.exp %1007 : vector<8x64xf32>
    %cst_211 = arith.constant 1.000000e+00 : f32
    %1009 = vector.broadcast %cst_211 : f32 to vector<8x64xf32>
    %1010 = arith.addf %1009, %1008 : vector<8x64xf32>
    %1011 = arith.divf %1009, %1010 : vector<8x64xf32>
    %1012 = vector.extract_strided_slice %993 {offsets = [0, 64], sizes = [8, 32], strides = [1, 1]} : vector<8x96xf32> to vector<8x32xf32>
    %1013 = vector.extract_strided_slice %1003 {offsets = [0, 0], sizes = [8, 32], strides = [1, 1]} : vector<8x64xf32> to vector<8x32xf32>
    %1014 = vector.extract_strided_slice %991 {offsets = [0, 64], sizes = [8, 32], strides = [1, 1]} : vector<8x192xf32> to vector<8x32xf32>
    %1015 = arith.mulf %1013, %1014 : vector<8x32xf32>
    %1016 = arith.addf %1012, %1015 : vector<8x32xf32>
    %1017 = math.tanh %1016 : vector<8x32xf32>
    %1018 = vector.extract_strided_slice %995 {offsets = [0, 64], sizes = [8, 32], strides = [1, 1]} : vector<8x96xf32> to vector<8x32xf32>
    %1019 = vector.extract_strided_slice %1011 {offsets = [0, 0], sizes = [8, 32], strides = [1, 1]} : vector<8x64xf32> to vector<8x32xf32>
    %1020 = vector.extract_strided_slice %991 {offsets = [0, 160], sizes = [8, 32], strides = [1, 1]} : vector<8x192xf32> to vector<8x32xf32>
    %1021 = arith.mulf %1019, %1020 : vector<8x32xf32>
    %1022 = arith.addf %1018, %1021 : vector<8x32xf32>
    %1023 = math.tanh %1022 : vector<8x32xf32>
    %1024 = vector.extract_strided_slice %982 {offsets = [0, 0], sizes = [8, 32], strides = [1, 1]} : vector<8x64xf32> to vector<8x32xf32>
    %1025 = vector.extract_strided_slice %982 {offsets = [0, 32], sizes = [8, 32], strides = [1, 1]} : vector<8x64xf32> to vector<8x32xf32>
    %1026 = vector.extract_strided_slice %1003 {offsets = [0, 32], sizes = [8, 32], strides = [1, 1]} : vector<8x64xf32> to vector<8x32xf32>
    %1027 = arith.subf %1024, %1017 : vector<8x32xf32>
    %1028 = arith.mulf %1026, %1027 : vector<8x32xf32>
    %1029 = arith.addf %1017, %1028 : vector<8x32xf32>
    %1030 = vector.extract_strided_slice %1011 {offsets = [0, 32], sizes = [8, 32], strides = [1, 1]} : vector<8x64xf32> to vector<8x32xf32>
    %1031 = arith.subf %1025, %1023 : vector<8x32xf32>
    %1032 = arith.mulf %1030, %1031 : vector<8x32xf32>
    %1033 = arith.addf %1023, %1032 : vector<8x32xf32>
    %1034 = vector.broadcast %984 : i32 to vector<8x1xi32>
    %1035 = arith.cmpi sgt, %13, %1034 : vector<8x1xi32>
    %1036 = vector.broadcast %985 : i32 to vector<8x1xi32>
    %1037 = arith.cmpi sgt, %13, %1036 : vector<8x1xi32>
    %1038 = vector.shape_cast %1035 : vector<8x1xi1> to vector<8x1xi1>
    %1039 = vector.broadcast %1038 : vector<8x1xi1> to vector<8x32xi1>
    %1040 = arith.select %1039, %1029, %1024 : vector<8x32xi1>, vector<8x32xf32>
    %1041 = vector.shape_cast %1037 : vector<8x1xi1> to vector<8x1xi1>
    %1042 = vector.broadcast %1041 : vector<8x1xi1> to vector<8x32xi1>
    %1043 = arith.select %1042, %1033, %1025 : vector<8x32xi1>, vector<8x32xf32>
    %cst_212 = arith.constant 0.000000e+00 : f32
    %1044 = vector.shape_cast %1035 : vector<8x1xi1> to vector<8x1xi1>
    %1045 = vector.broadcast %1044 : vector<8x1xi1> to vector<8x32xi1>
    %1046 = vector.broadcast %cst_212 : f32 to vector<8x32xf32>
    %1047 = arith.select %1045, %1040, %1046 : vector<8x32xi1>, vector<8x32xf32>
    %cst_213 = arith.constant 0.000000e+00 : f32
    %1048 = vector.shape_cast %1037 : vector<8x1xi1> to vector<8x1xi1>
    %1049 = vector.broadcast %1048 : vector<8x1xi1> to vector<8x32xi1>
    %1050 = vector.broadcast %cst_213 : f32 to vector<8x32xf32>
    %1051 = arith.select %1049, %1043, %1050 : vector<8x32xi1>, vector<8x32xf32>
    %1052 = arith.index_cast %986 : i32 to index
    %c0_214 = arith.constant 0 : index
    %1053 = vector.load %arg7[%1052, %c0_214] : memref<128x32xf32, #tpu.memory_space<vmem>>, vector<8x32xf32>
    tpu.vector_store %arg7[%1052, %c0_214], %1047 {strides = array<i32>} : memref<128x32xf32, #tpu.memory_space<vmem>>, vector<8x32xf32>,
    %1054 = arith.index_cast %988 : i32 to index
    %c0_215 = arith.constant 0 : index
    %1055 = vector.load %arg11[%1054, %c0_215] : memref<128x32xf32, #tpu.memory_space<vmem>>, vector<8x32xf32>
    tpu.vector_store %arg11[%1054, %c0_215], %1051 {strides = array<i32>} : memref<128x32xf32, #tpu.memory_space<vmem>>, vector<8x32xf32>,
    %1056 = tpu.concatenate %1040, %1043 in 1 : vector<8x32xf32>, vector<8x32xf32> -> vector<8x64xf32>
    %c14_i32 = arith.constant 14 : i32
    %c16_i32_216 = arith.constant 16 : i32
    %1057 = arith.muli %arg0, %c16_i32_216 : i32
    %1058 = arith.addi %1057, %c14_i32 : i32
    %c15_i32_217 = arith.constant 15 : i32
    %1059 = arith.subi %c15_i32_217, %1058 : i32
    %c8_i32_218 = arith.constant 8 : i32
    %1060 = arith.muli %c14_i32, %c8_i32_218 : i32
    %c15_i32_219 = arith.constant 15 : i32
    %1061 = arith.subi %c15_i32_219, %c14_i32 : i32
    %c8_i32_220 = arith.constant 8 : i32
    %1062 = arith.muli %1061, %c8_i32_220 : i32
    %cst_221 = arith.constant dense<0.000000e+00> : vector<8x192xf32>
    %1063 = tpu.matmul %1056, %14, %cst_221 {dimension_numbers = #tpu.dot_dimension_numbers<[1], [0], [0], [1], [0, 0, 1, 1], [], []>} : vector<8x64xf32>, vector<64x192xf32>, vector<8x192xf32> -> vector<8x192xf32>
    %1064 = vector.broadcast %15 : vector<1x192xf32> to vector<8x192xf32>
    %1065 = arith.addf %1063, %1064 : vector<8x192xf32>
    %1066 = arith.index_cast %1060 : i32 to index
    %c0_222 = arith.constant 0 : index
    %1067 = vector.load %arg9[%1066, %c0_222] : memref<128x96xf32, #tpu.memory_space<vmem>>, vector<8x96xf32>
    %1068 = arith.index_cast %1062 : i32 to index
    %c0_223 = arith.constant 0 : index
    %1069 = vector.load %arg10[%1068, %c0_223] : memref<128x96xf32, #tpu.memory_space<vmem>>, vector<8x96xf32>
    %1070 = vector.extract_strided_slice %1067 {offsets = [0, 0], sizes = [8, 64], strides = [1, 1]} : vector<8x96xf32> to vector<8x64xf32>
    %1071 = vector.extract_strided_slice %1065 {offsets = [0, 0], sizes = [8, 64], strides = [1, 1]} : vector<8x192xf32> to vector<8x64xf32>
    %1072 = arith.addf %1070, %1071 : vector<8x64xf32>
    %1073 = arith.negf %1072 : vector<8x64xf32>
    %1074 = math.exp %1073 : vector<8x64xf32>
    %cst_224 = arith.constant 1.000000e+00 : f32
    %1075 = vector.broadcast %cst_224 : f32 to vector<8x64xf32>
    %1076 = arith.addf %1075, %1074 : vector<8x64xf32>
    %1077 = arith.divf %1075, %1076 : vector<8x64xf32>
    %1078 = vector.extract_strided_slice %1069 {offsets = [0, 0], sizes = [8, 64], strides = [1, 1]} : vector<8x96xf32> to vector<8x64xf32>
    %1079 = vector.extract_strided_slice %1065 {offsets = [0, 96], sizes = [8, 64], strides = [1, 1]} : vector<8x192xf32> to vector<8x64xf32>
    %1080 = arith.addf %1078, %1079 : vector<8x64xf32>
    %1081 = arith.negf %1080 : vector<8x64xf32>
    %1082 = math.exp %1081 : vector<8x64xf32>
    %cst_225 = arith.constant 1.000000e+00 : f32
    %1083 = vector.broadcast %cst_225 : f32 to vector<8x64xf32>
    %1084 = arith.addf %1083, %1082 : vector<8x64xf32>
    %1085 = arith.divf %1083, %1084 : vector<8x64xf32>
    %1086 = vector.extract_strided_slice %1067 {offsets = [0, 64], sizes = [8, 32], strides = [1, 1]} : vector<8x96xf32> to vector<8x32xf32>
    %1087 = vector.extract_strided_slice %1077 {offsets = [0, 0], sizes = [8, 32], strides = [1, 1]} : vector<8x64xf32> to vector<8x32xf32>
    %1088 = vector.extract_strided_slice %1065 {offsets = [0, 64], sizes = [8, 32], strides = [1, 1]} : vector<8x192xf32> to vector<8x32xf32>
    %1089 = arith.mulf %1087, %1088 : vector<8x32xf32>
    %1090 = arith.addf %1086, %1089 : vector<8x32xf32>
    %1091 = math.tanh %1090 : vector<8x32xf32>
    %1092 = vector.extract_strided_slice %1069 {offsets = [0, 64], sizes = [8, 32], strides = [1, 1]} : vector<8x96xf32> to vector<8x32xf32>
    %1093 = vector.extract_strided_slice %1085 {offsets = [0, 0], sizes = [8, 32], strides = [1, 1]} : vector<8x64xf32> to vector<8x32xf32>
    %1094 = vector.extract_strided_slice %1065 {offsets = [0, 160], sizes = [8, 32], strides = [1, 1]} : vector<8x192xf32> to vector<8x32xf32>
    %1095 = arith.mulf %1093, %1094 : vector<8x32xf32>
    %1096 = arith.addf %1092, %1095 : vector<8x32xf32>
    %1097 = math.tanh %1096 : vector<8x32xf32>
    %1098 = vector.extract_strided_slice %1056 {offsets = [0, 0], sizes = [8, 32], strides = [1, 1]} : vector<8x64xf32> to vector<8x32xf32>
    %1099 = vector.extract_strided_slice %1056 {offsets = [0, 32], sizes = [8, 32], strides = [1, 1]} : vector<8x64xf32> to vector<8x32xf32>
    %1100 = vector.extract_strided_slice %1077 {offsets = [0, 32], sizes = [8, 32], strides = [1, 1]} : vector<8x64xf32> to vector<8x32xf32>
    %1101 = arith.subf %1098, %1091 : vector<8x32xf32>
    %1102 = arith.mulf %1100, %1101 : vector<8x32xf32>
    %1103 = arith.addf %1091, %1102 : vector<8x32xf32>
    %1104 = vector.extract_strided_slice %1085 {offsets = [0, 32], sizes = [8, 32], strides = [1, 1]} : vector<8x64xf32> to vector<8x32xf32>
    %1105 = arith.subf %1099, %1097 : vector<8x32xf32>
    %1106 = arith.mulf %1104, %1105 : vector<8x32xf32>
    %1107 = arith.addf %1097, %1106 : vector<8x32xf32>
    %1108 = vector.broadcast %1058 : i32 to vector<8x1xi32>
    %1109 = arith.cmpi sgt, %13, %1108 : vector<8x1xi32>
    %1110 = vector.broadcast %1059 : i32 to vector<8x1xi32>
    %1111 = arith.cmpi sgt, %13, %1110 : vector<8x1xi32>
    %1112 = vector.shape_cast %1109 : vector<8x1xi1> to vector<8x1xi1>
    %1113 = vector.broadcast %1112 : vector<8x1xi1> to vector<8x32xi1>
    %1114 = arith.select %1113, %1103, %1098 : vector<8x32xi1>, vector<8x32xf32>
    %1115 = vector.shape_cast %1111 : vector<8x1xi1> to vector<8x1xi1>
    %1116 = vector.broadcast %1115 : vector<8x1xi1> to vector<8x32xi1>
    %1117 = arith.select %1116, %1107, %1099 : vector<8x32xi1>, vector<8x32xf32>
    %cst_226 = arith.constant 0.000000e+00 : f32
    %1118 = vector.shape_cast %1109 : vector<8x1xi1> to vector<8x1xi1>
    %1119 = vector.broadcast %1118 : vector<8x1xi1> to vector<8x32xi1>
    %1120 = vector.broadcast %cst_226 : f32 to vector<8x32xf32>
    %1121 = arith.select %1119, %1114, %1120 : vector<8x32xi1>, vector<8x32xf32>
    %cst_227 = arith.constant 0.000000e+00 : f32
    %1122 = vector.shape_cast %1111 : vector<8x1xi1> to vector<8x1xi1>
    %1123 = vector.broadcast %1122 : vector<8x1xi1> to vector<8x32xi1>
    %1124 = vector.broadcast %cst_227 : f32 to vector<8x32xf32>
    %1125 = arith.select %1123, %1117, %1124 : vector<8x32xi1>, vector<8x32xf32>
    %1126 = arith.index_cast %1060 : i32 to index
    %c0_228 = arith.constant 0 : index
    %1127 = vector.load %arg7[%1126, %c0_228] : memref<128x32xf32, #tpu.memory_space<vmem>>, vector<8x32xf32>
    tpu.vector_store %arg7[%1126, %c0_228], %1121 {strides = array<i32>} : memref<128x32xf32, #tpu.memory_space<vmem>>, vector<8x32xf32>,
    %1128 = arith.index_cast %1062 : i32 to index
    %c0_229 = arith.constant 0 : index
    %1129 = vector.load %arg11[%1128, %c0_229] : memref<128x32xf32, #tpu.memory_space<vmem>>, vector<8x32xf32>
    tpu.vector_store %arg11[%1128, %c0_229], %1125 {strides = array<i32>} : memref<128x32xf32, #tpu.memory_space<vmem>>, vector<8x32xf32>,
    %1130 = tpu.concatenate %1114, %1117 in 1 : vector<8x32xf32>, vector<8x32xf32> -> vector<8x64xf32>
    %c15_i32_230 = arith.constant 15 : i32
    %c16_i32_231 = arith.constant 16 : i32
    %1131 = arith.muli %arg0, %c16_i32_231 : i32
    %1132 = arith.addi %1131, %c15_i32_230 : i32
    %c15_i32_232 = arith.constant 15 : i32
    %1133 = arith.subi %c15_i32_232, %1132 : i32
    %c8_i32_233 = arith.constant 8 : i32
    %1134 = arith.muli %c15_i32_230, %c8_i32_233 : i32
    %c15_i32_234 = arith.constant 15 : i32
    %1135 = arith.subi %c15_i32_234, %c15_i32_230 : i32
    %c8_i32_235 = arith.constant 8 : i32
    %1136 = arith.muli %1135, %c8_i32_235 : i32
    %cst_236 = arith.constant dense<0.000000e+00> : vector<8x192xf32>
    %1137 = tpu.matmul %1130, %14, %cst_236 {dimension_numbers = #tpu.dot_dimension_numbers<[1], [0], [0], [1], [0, 0, 1, 1], [], []>} : vector<8x64xf32>, vector<64x192xf32>, vector<8x192xf32> -> vector<8x192xf32>
    %1138 = vector.broadcast %15 : vector<1x192xf32> to vector<8x192xf32>
    %1139 = arith.addf %1137, %1138 : vector<8x192xf32>
    %1140 = arith.index_cast %1134 : i32 to index
    %c0_237 = arith.constant 0 : index
    %1141 = vector.load %arg9[%1140, %c0_237] : memref<128x96xf32, #tpu.memory_space<vmem>>, vector<8x96xf32>
    %1142 = arith.index_cast %1136 : i32 to index
    %c0_238 = arith.constant 0 : index
    %1143 = vector.load %arg10[%1142, %c0_238] : memref<128x96xf32, #tpu.memory_space<vmem>>, vector<8x96xf32>
    %1144 = vector.extract_strided_slice %1141 {offsets = [0, 0], sizes = [8, 64], strides = [1, 1]} : vector<8x96xf32> to vector<8x64xf32>
    %1145 = vector.extract_strided_slice %1139 {offsets = [0, 0], sizes = [8, 64], strides = [1, 1]} : vector<8x192xf32> to vector<8x64xf32>
    %1146 = arith.addf %1144, %1145 : vector<8x64xf32>
    %1147 = arith.negf %1146 : vector<8x64xf32>
    %1148 = math.exp %1147 : vector<8x64xf32>
    %cst_239 = arith.constant 1.000000e+00 : f32
    %1149 = vector.broadcast %cst_239 : f32 to vector<8x64xf32>
    %1150 = arith.addf %1149, %1148 : vector<8x64xf32>
    %1151 = arith.divf %1149, %1150 : vector<8x64xf32>
    %1152 = vector.extract_strided_slice %1143 {offsets = [0, 0], sizes = [8, 64], strides = [1, 1]} : vector<8x96xf32> to vector<8x64xf32>
    %1153 = vector.extract_strided_slice %1139 {offsets = [0, 96], sizes = [8, 64], strides = [1, 1]} : vector<8x192xf32> to vector<8x64xf32>
    %1154 = arith.addf %1152, %1153 : vector<8x64xf32>
    %1155 = arith.negf %1154 : vector<8x64xf32>
    %1156 = math.exp %1155 : vector<8x64xf32>
    %cst_240 = arith.constant 1.000000e+00 : f32
    %1157 = vector.broadcast %cst_240 : f32 to vector<8x64xf32>
    %1158 = arith.addf %1157, %1156 : vector<8x64xf32>
    %1159 = arith.divf %1157, %1158 : vector<8x64xf32>
    %1160 = vector.extract_strided_slice %1141 {offsets = [0, 64], sizes = [8, 32], strides = [1, 1]} : vector<8x96xf32> to vector<8x32xf32>
    %1161 = vector.extract_strided_slice %1151 {offsets = [0, 0], sizes = [8, 32], strides = [1, 1]} : vector<8x64xf32> to vector<8x32xf32>
    %1162 = vector.extract_strided_slice %1139 {offsets = [0, 64], sizes = [8, 32], strides = [1, 1]} : vector<8x192xf32> to vector<8x32xf32>
    %1163 = arith.mulf %1161, %1162 : vector<8x32xf32>
    %1164 = arith.addf %1160, %1163 : vector<8x32xf32>
    %1165 = math.tanh %1164 : vector<8x32xf32>
    %1166 = vector.extract_strided_slice %1143 {offsets = [0, 64], sizes = [8, 32], strides = [1, 1]} : vector<8x96xf32> to vector<8x32xf32>
    %1167 = vector.extract_strided_slice %1159 {offsets = [0, 0], sizes = [8, 32], strides = [1, 1]} : vector<8x64xf32> to vector<8x32xf32>
    %1168 = vector.extract_strided_slice %1139 {offsets = [0, 160], sizes = [8, 32], strides = [1, 1]} : vector<8x192xf32> to vector<8x32xf32>
    %1169 = arith.mulf %1167, %1168 : vector<8x32xf32>
    %1170 = arith.addf %1166, %1169 : vector<8x32xf32>
    %1171 = math.tanh %1170 : vector<8x32xf32>
    %1172 = vector.extract_strided_slice %1130 {offsets = [0, 0], sizes = [8, 32], strides = [1, 1]} : vector<8x64xf32> to vector<8x32xf32>
    %1173 = vector.extract_strided_slice %1130 {offsets = [0, 32], sizes = [8, 32], strides = [1, 1]} : vector<8x64xf32> to vector<8x32xf32>
    %1174 = vector.extract_strided_slice %1151 {offsets = [0, 32], sizes = [8, 32], strides = [1, 1]} : vector<8x64xf32> to vector<8x32xf32>
    %1175 = arith.subf %1172, %1165 : vector<8x32xf32>
    %1176 = arith.mulf %1174, %1175 : vector<8x32xf32>
    %1177 = arith.addf %1165, %1176 : vector<8x32xf32>
    %1178 = vector.extract_strided_slice %1159 {offsets = [0, 32], sizes = [8, 32], strides = [1, 1]} : vector<8x64xf32> to vector<8x32xf32>
    %1179 = arith.subf %1173, %1171 : vector<8x32xf32>
    %1180 = arith.mulf %1178, %1179 : vector<8x32xf32>
    %1181 = arith.addf %1171, %1180 : vector<8x32xf32>
    %1182 = vector.broadcast %1132 : i32 to vector<8x1xi32>
    %1183 = arith.cmpi sgt, %13, %1182 : vector<8x1xi32>
    %1184 = vector.broadcast %1133 : i32 to vector<8x1xi32>
    %1185 = arith.cmpi sgt, %13, %1184 : vector<8x1xi32>
    %1186 = vector.shape_cast %1183 : vector<8x1xi1> to vector<8x1xi1>
    %1187 = vector.broadcast %1186 : vector<8x1xi1> to vector<8x32xi1>
    %1188 = arith.select %1187, %1177, %1172 : vector<8x32xi1>, vector<8x32xf32>
    %1189 = vector.shape_cast %1185 : vector<8x1xi1> to vector<8x1xi1>
    %1190 = vector.broadcast %1189 : vector<8x1xi1> to vector<8x32xi1>
    %1191 = arith.select %1190, %1181, %1173 : vector<8x32xi1>, vector<8x32xf32>
    %cst_241 = arith.constant 0.000000e+00 : f32
    %1192 = vector.shape_cast %1183 : vector<8x1xi1> to vector<8x1xi1>
    %1193 = vector.broadcast %1192 : vector<8x1xi1> to vector<8x32xi1>
    %1194 = vector.broadcast %cst_241 : f32 to vector<8x32xf32>
    %1195 = arith.select %1193, %1188, %1194 : vector<8x32xi1>, vector<8x32xf32>
    %cst_242 = arith.constant 0.000000e+00 : f32
    %1196 = vector.shape_cast %1185 : vector<8x1xi1> to vector<8x1xi1>
    %1197 = vector.broadcast %1196 : vector<8x1xi1> to vector<8x32xi1>
    %1198 = vector.broadcast %cst_242 : f32 to vector<8x32xf32>
    %1199 = arith.select %1197, %1191, %1198 : vector<8x32xi1>, vector<8x32xf32>
    %1200 = arith.index_cast %1134 : i32 to index
    %c0_243 = arith.constant 0 : index
    %1201 = vector.load %arg7[%1200, %c0_243] : memref<128x32xf32, #tpu.memory_space<vmem>>, vector<8x32xf32>
    tpu.vector_store %arg7[%1200, %c0_243], %1195 {strides = array<i32>} : memref<128x32xf32, #tpu.memory_space<vmem>>, vector<8x32xf32>,
    %1202 = arith.index_cast %1136 : i32 to index
    %c0_244 = arith.constant 0 : index
    %1203 = vector.load %arg11[%1202, %c0_244] : memref<128x32xf32, #tpu.memory_space<vmem>>, vector<8x32xf32>
    tpu.vector_store %arg11[%1202, %c0_244], %1199 {strides = array<i32>} : memref<128x32xf32, #tpu.memory_space<vmem>>, vector<8x32xf32>,
    %1204 = tpu.concatenate %1188, %1191 in 1 : vector<8x32xf32>, vector<8x32xf32> -> vector<8x64xf32>
    %c16_i32_245 = arith.constant 16 : i32
    %1205 = vector.extract_strided_slice %1204 {offsets = [0, 0], sizes = [8, 32], strides = [1, 1]} : vector<8x64xf32> to vector<8x32xf32>
    %c0_246 = arith.constant 0 : index
    %c0_247 = arith.constant 0 : index
    %c0_248 = arith.constant 0 : index
    %1206 = vector.load %arg8[%c0_246, %c0_247, %c0_248] : memref<2x8x32xf32, #tpu.memory_space<vmem>>, vector<1x8x32xf32>
    %1207 = vector.shape_cast %1206 : vector<1x8x32xf32> to vector<8x32xf32>
    %1208 = vector.shape_cast %1205 : vector<8x32xf32> to vector<1x8x32xf32>
    tpu.vector_store %arg8[%c0_246, %c0_247, %c0_248], %1208 {strides = array<i32>} : memref<2x8x32xf32, #tpu.memory_space<vmem>>, vector<1x8x32xf32>,
    %1209 = vector.extract_strided_slice %1204 {offsets = [0, 32], sizes = [8, 32], strides = [1, 1]} : vector<8x64xf32> to vector<8x32xf32>
    %c1_249 = arith.constant 1 : index
    %c0_250 = arith.constant 0 : index
    %c0_251 = arith.constant 0 : index
    %1210 = vector.load %arg8[%c1_249, %c0_250, %c0_251] : memref<2x8x32xf32, #tpu.memory_space<vmem>>, vector<1x8x32xf32>
    %1211 = vector.shape_cast %1210 : vector<1x8x32xf32> to vector<8x32xf32>
    %1212 = vector.shape_cast %1209 : vector<8x32xf32> to vector<1x8x32xf32>
    tpu.vector_store %arg8[%c1_249, %c0_250, %c0_251], %1212 {strides = array<i32>} : memref<2x8x32xf32, #tpu.memory_space<vmem>>, vector<1x8x32xf32>,
    %c0_252 = arith.constant 0 : index
    %c0_253 = arith.constant 0 : index
    %1213 = vector.load %arg7[%c0_252, %c0_253] : memref<128x32xf32, #tpu.memory_space<vmem>>, vector<128x32xf32>
    %c0_254 = arith.constant 0 : index
    %c0_255 = arith.constant 0 : index
    %1214 = vector.load %arg11[%c0_254, %c0_255] : memref<128x32xf32, #tpu.memory_space<vmem>>, vector<128x32xf32>
    %1215 = arith.addf %1213, %1214 : vector<128x32xf32>
    %c0_256 = arith.constant 0 : index
    %c0_257 = arith.constant 0 : index
    %1216 = vector.load %arg7[%c0_256, %c0_257] : memref<128x32xf32, #tpu.memory_space<vmem>>, vector<128x32xf32>
    tpu.vector_store %arg7[%c0_256, %c0_257], %1215 {strides = array<i32>} : memref<128x32xf32, #tpu.memory_space<vmem>>, vector<128x32xf32>,
    return
  }
  func.func @transform_0(%arg0: i32) -> (i32, i32) {
    %c0_i32 = arith.constant 0 : i32
    %c0_i32_0 = arith.constant 0 : i32
    %c0_i32_1 = arith.constant 0 : i32
    return %c0_i32, %c0_i32_0 : i32, i32
  }
  func.func @transform_1(%arg0: i32) -> (i32, i32) {
    %c0_i32 = arith.constant 0 : i32
    %c0_i32_0 = arith.constant 0 : i32
    return %arg0, %c0_i32 : i32, i32
  }
  func.func @transform_2(%arg0: i32) -> (i32, i32) {
    %c0_i32 = arith.constant 0 : i32
    %c0_i32_0 = arith.constant 0 : i32
    %c0_i32_1 = arith.constant 0 : i32
    return %c0_i32, %c0_i32_0 : i32, i32
  }
  func.func @transform_3(%arg0: i32) -> (i32, i32) {
    %c0_i32 = arith.constant 0 : i32
    %c0_i32_0 = arith.constant 0 : i32
    %c0_i32_1 = arith.constant 0 : i32
    return %c0_i32, %c0_i32_0 : i32, i32
  }
  func.func @transform_4(%arg0: i32) -> (i32, i32) {
    %c0_i32 = arith.constant 0 : i32
    %c0_i32_0 = arith.constant 0 : i32
    %c0_i32_1 = arith.constant 0 : i32
    return %c0_i32, %c0_i32_0 : i32, i32
  }
  func.func @transform_5(%arg0: i32) -> (i32, i32) {
    %c0_i32 = arith.constant 0 : i32
    %c0_i32_0 = arith.constant 0 : i32
    %c0_i32_1 = arith.constant 0 : i32
    return %c0_i32, %c0_i32_0 : i32, i32
  }
  func.func @transform_6(%arg0: i32) -> (i32, i32) {
    %c0_i32 = arith.constant 0 : i32
    %c0_i32_0 = arith.constant 0 : i32
    return %arg0, %c0_i32 : i32, i32
  }
  func.func @transform_7(%arg0: i32) -> (i32, i32, i32) {
    %c0_i32 = arith.constant 0 : i32
    %c0_i32_0 = arith.constant 0 : i32
    %c0_i32_1 = arith.constant 0 : i32
    %c0_i32_2 = arith.constant 0 : i32
    return %c0_i32, %c0_i32_0, %c0_i32_1 : i32, i32, i32
  }
}

</mosaic_0001>

<llo_original>
// kernel: tpu_custom_call.1
$region0: #{tpu_custom_call.1}
  #allocation0 [shape = 'u32[]', space=smem, size = 0x4, offset = 0x4, fixed_abs, tag = 'smem constant byte address 0x4 - core index']
  #allocation1 [shape = 'u32[144,128]{1,0:T(1,128)}', space=vmem, size = 0x12000, scoped, tag = 'internal scratch']
  #allocation2 [shape = 'f32[128,96]{1,0:T(8,128)}', space=vmem, size = 0x10000, scoped, tag = 'scratch operand']
  #allocation3 [shape = 'f32[128,96]{1,0:T(8,128)}', space=vmem, size = 0x10000, scoped, tag = 'scratch operand']
  #allocation4 [shape = 'f32[128,32]{1,0:T(8,128)}', space=vmem, size = 0x10000, scoped, tag = 'scratch operand']
  %s0 = inlined_call_operand.vmem [shape: s32[8,1], index: 0, kind: input, shape index: {}]
  %s1 = inlined_call_operand.vmem [shape: f32[128,32], index: 1, kind: input, shape index: {}]
  %s2 = inlined_call_operand.hbm [shape: f32[32,192], index: 2, kind: input, shape index: {}]
  %s3 = inlined_call_operand.vmem [shape: f32[64,192], index: 3, kind: input, shape index: {}]
  %s4 = inlined_call_operand.vmem [shape: f32[1,192], index: 4, kind: input, shape index: {}]
  %s5 = inlined_call_operand.vmem [shape: f32[1,192], index: 5, kind: input, shape index: {}]
  %s6 = inlined_call_operand.vmem [shape: f32[128,32], index: 6, kind: output, shape index: {0}]
  %s7 = inlined_call_operand.hbm [shape: f32[2,8,32], index: 7, kind: output, shape index: {1}]
  %8 = xla_tuple %s6, %s7
  %s9 = sld [smem:[#allocation0]]
  $region50: #{tpu_custom_call.1} parent=0
    _
  %s11 = ssub.s32 1, %s9
  %s12 = scalar_select 0, %s11, %s9
  $region1: #{tpu_custom_call.1} parent=0
    #allocation5 [shape = 'u8[32768]{0}', space=vmem, size = 0x8000, scoped, tag = 'input window, operand 2, single buffered']
    #allocation6 [shape = 's32[1]{0}', space=sflag, size = 0x4, scoped, tag = 'scoped memory for tpu_custom_call.1']
    #allocation7 [shape = 's32[1]{0}', space=sflag, size = 0x4, scoped, tag = 'scoped memory for tpu_custom_call.1']
    #allocation8 [shape = 'u8[8192]{0}', space=vmem, size = 0x2000, scoped, tag = 'output window, operand 1, single buffered']
    %13 = vsyncpa [#allocation6], 0
    %14 = vsyncpa [#allocation7], 0
    // Predicated region
    $region2: #{tpu_custom_call.1} parent=1 // pred_check
      _
    $region3: #{tpu_custom_call.1} parent=1 // pred_check_branch
      %16 = sbr.rel (0) target = $region5
    $region4: #{tpu_custom_call.1} parent=1 // pred_region
      _
    $region5: #{tpu_custom_call.1} parent=1 // pred_fallthru
      _
    // Predicated region
    $region6: #{tpu_custom_call.1} parent=1 // pred_check
      _
    $region7: #{tpu_custom_call.1} parent=1 // pred_check_branch
      %18 = sbr.rel (0) target = $region9
    $region8: #{tpu_custom_call.1} parent=1 // pred_region
      _
    $region9: #{tpu_custom_call.1} parent=1 // pred_fallthru
      _
    // Predicated region
    $region10: #{tpu_custom_call.1} parent=1 // pred_check
      _
    $region11: #{tpu_custom_call.1} parent=1 // pred_check_branch
      %20 = sbr.rel (0) target = $region13
    $region12: #{tpu_custom_call.1} parent=1 // pred_region
      %s22 = ssub.s32 1024, 1024
      %23 = vsyncadd [#allocation6], %s22
      %s24 = sshll.u32 [#allocation5], 4
      %s25 = int_to_ptr.vmem [resolvable:$true] %s24
      %30 = dma.hbm_to_vmem [thread:$0]  %s2, 1024, %s25, [#allocation6], 256, 256, 16
    $region13: #{tpu_custom_call.1} parent=1 // pred_fallthru
      _
    // Predicated region
    $region14: #{tpu_custom_call.1} parent=1 // pred_check
      _
    $region15: #{tpu_custom_call.1} parent=1 // pred_check_branch
      %32 = sbr.rel (0) target = $region17
    $region16: #{tpu_custom_call.1} parent=1 // pred_region
      _
    $region17: #{tpu_custom_call.1} parent=1 // pred_fallthru
      _
    // Predicated region
    $region18: #{tpu_custom_call.1} parent=1 // pred_check
      _
    $region19: #{tpu_custom_call.1} parent=1 // pred_check_branch
      %34 = sbr.rel (0) target = $region21
    $region20: #{tpu_custom_call.1} parent=1 // pred_region
      _
    $region21: #{tpu_custom_call.1} parent=1 // pred_fallthru
      _
    // Predicated region
    $region22: #{tpu_custom_call.1} parent=1 // pred_check
      _
    $region23: #{tpu_custom_call.1} parent=1 // pred_check_branch
      %36 = sbr.rel (0) target = $region25
    $region24: #{tpu_custom_call.1} parent=1 // pred_region
      _
    $region25: #{tpu_custom_call.1} parent=1 // pred_fallthru
      _
    // Predicated region
    $region26: #{tpu_custom_call.1} parent=1 // pred_check
      _
    $region27: #{tpu_custom_call.1} parent=1 // pred_check_branch
      %38 = sbr.rel (0) target = $region29
    $region28: #{tpu_custom_call.1} parent=1 // pred_region
      %39 = dma.done [#allocation6], 1024
    $region29: #{tpu_custom_call.1} parent=1 // pred_fallthru
      _
    %p40 = scmp.eq.s32.totalorder 0, 0
    // Predicated region
    $region30: #{tpu_custom_call.1} parent=1 // pred_check
      %p41 = pneg %p40
    $region31: #{tpu_custom_call.1} parent=1 // pred_check_branch
      %43 = sbr.rel (%p41) target = $region33
    $region32: #{tpu_custom_call.1} parent=1 // pred_region
      %vm44 = vcmask 261120
      %45 = vst.msk [vmem:[#allocation8] sm:$0xff] %vm44, 0.0
      %46 = vst.msk [vmem:[#allocation8 + $0x8] sm:$0xff] %vm44, 0.0
    $region33: #{tpu_custom_call.1} parent=1 // pred_fallthru
      _
    %v47 = vld [vmem:[%s4] sm:$0x3]
    %v48 = vld [vmem:[%s1] sm:$0xff]
    %v49 = vld [vmem:[%s1 + $0x8] sm:$0xff]
    %v50 = vld [vmem:[%s1 + $0x10] sm:$0xff]
    %v51 = vld [vmem:[%s1 + $0x18] sm:$0xff]
    %v52 = vld [vmem:[%s1 + $0x20] sm:$0xff]
    %v53 = vld [vmem:[%s1 + $0x28] sm:$0xff]
    %v54 = vld [vmem:[%s1 + $0x30] sm:$0xff]
    %v55 = vld [vmem:[%s1 + $0x38] sm:$0xff]
    %v56 = vld [vmem:[%s1 + $0x40] sm:$0xff]
    %v57 = vld [vmem:[%s1 + $0x48] sm:$0xff]
    %v58 = vld [vmem:[%s1 + $0x50] sm:$0xff]
    %v59 = vld [vmem:[%s1 + $0x58] sm:$0xff]
    %v60 = vld [vmem:[%s1 + $0x60] sm:$0xff]
    %v61 = vld [vmem:[%s1 + $0x68] sm:$0xff]
    %v62 = vld [vmem:[%s1 + $0x70] sm:$0xff]
    %v63 = vld [vmem:[%s1 + $0x78] sm:$0xff]
    %v64 = vld [vmem:[#allocation5] sm:$0xff]
    %v65 = vld [vmem:[#allocation5 + $0x8] sm:$0xff]
    %v66 = vld [vmem:[#allocation5 + $0x10] sm:$0xff]
    %v67 = vld [vmem:[#allocation5 + $0x18] sm:$0xff]
    %v68 = vld [vmem:[#allocation5 + $0x20] sm:$0xff]
    %v69 = vld [vmem:[#allocation5 + $0x28] sm:$0xff]
    %v70 = vld [vmem:[#allocation5 + $0x30] sm:$0xff]
    %v71 = vld [vmem:[#allocation5 + $0x38] sm:$0xff]
    %v73 = vlaneseq
    %v74 = vshrl.u32 %v73, 7
    %v75 = vsub.s32 0, %v74
    %v76 = vrot.slane %v47, %v75
    %v77 = vlaneseq
    %v78 = vshrl.u32 %v77, 7
    %v79 = vsub.s32 1, %v78
    %v80 = vrot.slane %v47, %v79
    %vm83 = vcmask 261120
    %v85 = vsel %vm83, %v48, 0
    %v88 = vsel %vm83, %v49, 0
    %v91 = vsel %vm83, %v50, 0
    %v94 = vsel %vm83, %v51, 0
    %v97 = vsel %vm83, %v52, 0
    %v100 = vsel %vm83, %v53, 0
    %v103 = vsel %vm83, %v54, 0
    %v106 = vsel %vm83, %v55, 0
    %v109 = vsel %vm83, %v56, 0
    %v112 = vsel %vm83, %v57, 0
    %v115 = vsel %vm83, %v58, 0
    %v118 = vsel %vm83, %v59, 0
    %v121 = vsel %vm83, %v60, 0
    %v124 = vsel %vm83, %v61, 0
    %v127 = vsel %vm83, %v62, 0
    %v130 = vsel %vm83, %v63, 0
    %132 = vmatprep.subr.mxu0 %v65
    %133 = vmatpush1.msra.mxu0 %v64
    %134 = vmatprep.subr.mxu0 %v67
    %135 = vmatpush1.msra.mxu0 %v66
    %136 = vmatprep.subr.mxu0 %v69
    %137 = vmatpush1.msra.mxu0 %v68
    %138 = vmatprep.subr.mxu0 %v71
    %139 = vmatpush1.msra.mxu0 %v70
    %140 = vmatprep.subr.mxu0 0.0
    %141 = vmatpush1.msra.mxu0 0.0
    %142 = vmatprep.subr.mxu0 0.0
    %143 = vmatpush1.msra.mxu0 0.0
    %144 = vmatprep.subr.mxu0 0.0
    %145 = vmatpush1.msra.mxu0 0.0
    %146 = vmatprep.subr.mxu0 0.0
    %147 = vmatpush1.msra.mxu0 0.0
    %148 = vmatprep.subr.mxu0 0.0
    %149 = vmatpush1.msra.mxu0 0.0
    %150 = vmatprep.subr.mxu0 0.0
    %151 = vmatpush1.msra.mxu0 0.0
    %152 = vmatprep.subr.mxu0 0.0
    %153 = vmatpush1.msra.mxu0 0.0
    %154 = vmatprep.subr.mxu0 0.0
    %155 = vmatpush1.msra.mxu0 0.0
    %156 = vmatprep.subr.mxu0 0.0
    %157 = vmatpush1.msra.mxu0 0.0
    %158 = vmatprep.subr.mxu0 0.0
    %159 = vmatpush1.msra.mxu0 0.0
    %160 = vmatprep.subr.mxu0 0.0
    %161 = vmatpush1.msra.mxu0 0.0
    %162 = vmatprep.subr.mxu0 0.0
    %163 = vmatpush1.msra.mxu0 0.0
    %164 = vmatprep.subr.mxu0 0.0
    %165 = vmatpush1.msra.mxu0 0.0
    %166 = vmatprep.subr.mxu0 0.0
    %167 = vmatpush1.msra.mxu0 0.0
    %168 = vmatprep.subr.mxu0 0.0
    %169 = vmatpush1.msra.mxu0 0.0
    %170 = vmatprep.subr.mxu0 0.0
    %171 = vmatpush1.msra.mxu0 0.0
    %172 = vmatprep.subr.mxu0 0.0
    %173 = vmatpush1.msra.mxu0 0.0
    %174 = vmatprep.subr.mxu0 0.0
    %175 = vmatpush1.msra.mxu0 0.0
    %176 = vmatprep.subr.mxu0 0.0
    %177 = vmatpush1.msra.mxu0 0.0
    %178 = vmatprep.subr.mxu0 0.0
    %179 = vmatpush1.msra.mxu0 0.0
    %180 = vmatprep.subr.mxu0 0.0
    %181 = vmatpush1.msra.mxu0 0.0
    %182 = vmatprep.subr.mxu0 0.0
    %183 = vmatpush1.msra.mxu0 0.0
    %184 = vmatprep.subr.mxu0 0.0
    %185 = vmatpush1.msra.mxu0 0.0
    %186 = vmatprep.subr.mxu0 0.0
    %187 = vmatpush1.msra.mxu0 0.0
    %188 = vmatprep.subr.mxu0 0.0
    %189 = vmatpush1.msra.mxu0 0.0
    %190 = vmatprep.subr.mxu0 0.0
    %191 = vmatpush1.msra.mxu0 0.0
    %192 = vmatprep.subr.mxu0 0.0
    %193 = vmatpush1.msra.mxu0 0.0
    %194 = vmatprep.subr.mxu0 0.0
    %195 = vmatpush1.msra.mxu0 0.0
    %196 = vmatprep.mubr.f32.mxu0 0.0
    %197 = vmatmul.mubr.f32.gmra.mrb[0].mxu0 %v85
    %v198 = vpop.f32.mrb[0].mxu0
    %v199 = vadd.f32 %v76, %v198
    %v200 = vpop.f32.mrb[0].mxu0
    %v201 = vadd.f32 %v80, %v200
    %202 = vmatprep.mubr.f32.mxu0 0.0
    %203 = vmatmul.mubr.f32.gmra.mrb[0].mxu0 %v88
    %v204 = vpop.f32.mrb[0].mxu0
    %v205 = vadd.f32 %v76, %v204
    %v206 = vpop.f32.mrb[0].mxu0
    %v207 = vadd.f32 %v80, %v206
    %208 = vmatprep.mubr.f32.mxu0 0.0
    %209 = vmatmul.mubr.f32.gmra.mrb[0].mxu0 %v91
    %v210 = vpop.f32.mrb[0].mxu0
    %v211 = vadd.f32 %v76, %v210
    %v212 = vpop.f32.mrb[0].mxu0
    %v213 = vadd.f32 %v80, %v212
    %214 = vmatprep.mubr.f32.mxu0 0.0
    %215 = vmatmul.mubr.f32.gmra.mrb[0].mxu0 %v94
    %v216 = vpop.f32.mrb[0].mxu0
    %v217 = vadd.f32 %v76, %v216
    %v218 = vpop.f32.mrb[0].mxu0
    %v219 = vadd.f32 %v80, %v218
    %220 = vmatprep.mubr.f32.mxu0 0.0
    %221 = vmatmul.mubr.f32.gmra.mrb[0].mxu0 %v97
    %v222 = vpop.f32.mrb[0].mxu0
    %v223 = vadd.f32 %v76, %v222
    %v224 = vpop.f32.mrb[0].mxu0
    %v225 = vadd.f32 %v80, %v224
    %226 = vmatprep.mubr.f32.mxu0 0.0
    %227 = vmatmul.mubr.f32.gmra.mrb[0].mxu0 %v100
    %v228 = vpop.f32.mrb[0].mxu0
    %v229 = vadd.f32 %v76, %v228
    %v230 = vpop.f32.mrb[0].mxu0
    %v231 = vadd.f32 %v80, %v230
    %232 = vmatprep.mubr.f32.mxu0 0.0
    %233 = vmatmul.mubr.f32.gmra.mrb[0].mxu0 %v103
    %v234 = vpop.f32.mrb[0].mxu0
    %v235 = vadd.f32 %v76, %v234
    %v236 = vpop.f32.mrb[0].mxu0
    %v237 = vadd.f32 %v80, %v236
    %238 = vmatprep.mubr.f32.mxu0 0.0
    %239 = vmatmul.mubr.f32.gmra.mrb[0].mxu0 %v106
    %v240 = vpop.f32.mrb[0].mxu0
    %v241 = vadd.f32 %v76, %v240
    %v242 = vpop.f32.mrb[0].mxu0
    %v243 = vadd.f32 %v80, %v242
    %244 = vmatprep.mubr.f32.mxu0 0.0
    %245 = vmatmul.mubr.f32.gmra.mrb[0].mxu0 %v109
    %v246 = vpop.f32.mrb[0].mxu0
    %v247 = vadd.f32 %v76, %v246
    %v248 = vpop.f32.mrb[0].mxu0
    %v249 = vadd.f32 %v80, %v248
    %250 = vmatprep.mubr.f32.mxu0 0.0
    %251 = vmatmul.mubr.f32.gmra.mrb[0].mxu0 %v112
    %v252 = vpop.f32.mrb[0].mxu0
    %v253 = vadd.f32 %v76, %v252
    %v254 = vpop.f32.mrb[0].mxu0
    %v255 = vadd.f32 %v80, %v254
    %256 = vmatprep.mubr.f32.mxu0 0.0
    %257 = vmatmul.mubr.f32.gmra.mrb[0].mxu0 %v115
    %v258 = vpop.f32.mrb[0].mxu0
    %v259 = vadd.f32 %v76, %v258
    %v260 = vpop.f32.mrb[0].mxu0
    %v261 = vadd.f32 %v80, %v260
    %262 = vmatprep.mubr.f32.mxu0 0.0
    %263 = vmatmul.mubr.f32.gmra.mrb[0].mxu0 %v118
    %v264 = vpop.f32.mrb[0].mxu0
    %v265 = vadd.f32 %v76, %v264
    %v266 = vpop.f32.mrb[0].mxu0
    %v267 = vadd.f32 %v80, %v266
    %268 = vmatprep.mubr.f32.mxu0 0.0
    %269 = vmatmul.mubr.f32.gmra.mrb[0].mxu0 %v121
    %v270 = vpop.f32.mrb[0].mxu0
    %v271 = vadd.f32 %v76, %v270
    %v272 = vpop.f32.mrb[0].mxu0
    %v273 = vadd.f32 %v80, %v272
    %274 = vmatprep.mubr.f32.mxu0 0.0
    %275 = vmatmul.mubr.f32.gmra.mrb[0].mxu0 %v124
    %v276 = vpop.f32.mrb[0].mxu0
    %v277 = vadd.f32 %v76, %v276
    %v278 = vpop.f32.mrb[0].mxu0
    %v279 = vadd.f32 %v80, %v278
    %280 = vmatprep.mubr.f32.mxu0 0.0
    %281 = vmatmul.mubr.f32.gmra.mrb[0].mxu0 %v127
    %v282 = vpop.f32.mrb[0].mxu0
    %v283 = vadd.f32 %v76, %v282
    %v284 = vpop.f32.mrb[0].mxu0
    %v285 = vadd.f32 %v80, %v284
    %286 = vmatprep.mubr.f32.mxu0 0.0
    %287 = vmatmul.mubr.f32.gmra.mrb[0].mxu0 %v130
    %v288 = vpop.f32.mrb[0].mxu0
    %v289 = vadd.f32 %v76, %v288
    %v290 = vpop.f32.mrb[0].mxu0
    %v291 = vadd.f32 %v80, %v290
    %292 = vdwg.mxu0
    %vm293 = vcmask 785408
    %294 = vst.msk [vmem:[#allocation2] sm:$0xff] %vm293, %v199
    %295 = vst.msk [vmem:[#allocation2 + $0x8] sm:$0xff] %vm293, %v205
    %296 = vst.msk [vmem:[#allocation2 + $0x10] sm:$0xff] %vm293, %v211
    %297 = vst.msk [vmem:[#allocation2 + $0x18] sm:$0xff] %vm293, %v217
    %298 = vst.msk [vmem:[#allocation2 + $0x20] sm:$0xff] %vm293, %v223
    %299 = vst.msk [vmem:[#allocation2 + $0x28] sm:$0xff] %vm293, %v229
    %300 = vst.msk [vmem:[#allocation2 + $0x30] sm:$0xff] %vm293, %v235
    %301 = vst.msk [vmem:[#allocation2 + $0x38] sm:$0xff] %vm293, %v241
    %302 = vst.msk [vmem:[#allocation2 + $0x40] sm:$0xff] %vm293, %v247
    %303 = vst.msk [vmem:[#allocation2 + $0x48] sm:$0xff] %vm293, %v253
    %304 = vst.msk [vmem:[#allocation2 + $0x50] sm:$0xff] %vm293, %v259
    %305 = vst.msk [vmem:[#allocation2 + $0x58] sm:$0xff] %vm293, %v265
    %306 = vst.msk [vmem:[#allocation2 + $0x60] sm:$0xff] %vm293, %v271
    %307 = vst.msk [vmem:[#allocation2 + $0x68] sm:$0xff] %vm293, %v277
    %308 = vst.msk [vmem:[#allocation2 + $0x70] sm:$0xff] %vm293, %v283
    %309 = vst.msk [vmem:[#allocation2 + $0x78] sm:$0xff] %vm293, %v289
    %342 = vrot.lane.b32.xlu0 %v199, 32
    %v343 = vpop.permute.xlu0 %342
    %344 = vrot.lane.b32.xlu0 %v201, 32
    %v345 = vpop.permute.xlu0 %344
    %346 = vrot.lane.b32.xlu0 %v205, 32
    %v347 = vpop.permute.xlu0 %346
    %348 = vrot.lane.b32.xlu0 %v207, 32
    %v349 = vpop.permute.xlu0 %348
    %350 = vrot.lane.b32.xlu0 %v211, 32
    %v351 = vpop.permute.xlu0 %350
    %352 = vrot.lane.b32.xlu0 %v213, 32
    %v353 = vpop.permute.xlu0 %352
    %354 = vrot.lane.b32.xlu0 %v217, 32
    %v355 = vpop.permute.xlu0 %354
    %356 = vrot.lane.b32.xlu0 %v219, 32
    %v357 = vpop.permute.xlu0 %356
    %358 = vrot.lane.b32.xlu0 %v223, 32
    %v359 = vpop.permute.xlu0 %358
    %360 = vrot.lane.b32.xlu0 %v225, 32
    %v361 = vpop.permute.xlu0 %360
    %362 = vrot.lane.b32.xlu0 %v229, 32
    %v363 = vpop.permute.xlu0 %362
    %364 = vrot.lane.b32.xlu0 %v231, 32
    %v365 = vpop.permute.xlu0 %364
    %366 = vrot.lane.b32.xlu0 %v235, 32
    %v367 = vpop.permute.xlu0 %366
    %368 = vrot.lane.b32.xlu0 %v237, 32
    %v369 = vpop.permute.xlu0 %368
    %370 = vrot.lane.b32.xlu0 %v241, 32
    %v371 = vpop.permute.xlu0 %370
    %372 = vrot.lane.b32.xlu0 %v243, 32
    %v373 = vpop.permute.xlu0 %372
    %374 = vrot.lane.b32.xlu0 %v247, 32
    %v375 = vpop.permute.xlu0 %374
    %376 = vrot.lane.b32.xlu0 %v249, 32
    %v377 = vpop.permute.xlu0 %376
    %378 = vrot.lane.b32.xlu0 %v253, 32
    %v379 = vpop.permute.xlu0 %378
    %380 = vrot.lane.b32.xlu0 %v255, 32
    %v381 = vpop.permute.xlu0 %380
    %382 = vrot.lane.b32.xlu0 %v259, 32
    %v383 = vpop.permute.xlu0 %382
    %384 = vrot.lane.b32.xlu0 %v261, 32
    %v385 = vpop.permute.xlu0 %384
    %386 = vrot.lane.b32.xlu0 %v265, 32
    %v387 = vpop.permute.xlu0 %386
    %388 = vrot.lane.b32.xlu0 %v267, 32
    %v389 = vpop.permute.xlu0 %388
    %390 = vrot.lane.b32.xlu0 %v271, 32
    %v391 = vpop.permute.xlu0 %390
    %392 = vrot.lane.b32.xlu0 %v273, 32
    %v393 = vpop.permute.xlu0 %392
    %394 = vrot.lane.b32.xlu0 %v277, 32
    %v395 = vpop.permute.xlu0 %394
    %396 = vrot.lane.b32.xlu0 %v279, 32
    %v397 = vpop.permute.xlu0 %396
    %398 = vrot.lane.b32.xlu0 %v283, 32
    %v399 = vpop.permute.xlu0 %398
    %400 = vrot.lane.b32.xlu0 %v285, 32
    %v401 = vpop.permute.xlu0 %400
    %402 = vrot.lane.b32.xlu0 %v289, 32
    %v403 = vpop.permute.xlu0 %402
    %404 = vrot.lane.b32.xlu0 %v291, 32
    %v405 = vpop.permute.xlu0 %404
    %v406 = vsel %vm83, %v343, %v345
    %v407 = vsel %vm83, %v347, %v349
    %v408 = vsel %vm83, %v351, %v353
    %v409 = vsel %vm83, %v355, %v357
    %v410 = vsel %vm83, %v359, %v361
    %v411 = vsel %vm83, %v363, %v365
    %v412 = vsel %vm83, %v367, %v369
    %v413 = vsel %vm83, %v371, %v373
    %v414 = vsel %vm83, %v375, %v377
    %v415 = vsel %vm83, %v379, %v381
    %v416 = vsel %vm83, %v383, %v385
    %v417 = vsel %vm83, %v387, %v389
    %v418 = vsel %vm83, %v391, %v393
    %v419 = vsel %vm83, %v395, %v397
    %v420 = vsel %vm83, %v399, %v401
    %v421 = vsel %vm83, %v403, %v405
    %438 = vst.msk [vmem:[#allocation3] sm:$0xff] %vm293, %v406
    %439 = vst.msk [vmem:[#allocation3 + $0x8] sm:$0xff] %vm293, %v407
    %440 = vst.msk [vmem:[#allocation3 + $0x10] sm:$0xff] %vm293, %v408
    %441 = vst.msk [vmem:[#allocation3 + $0x18] sm:$0xff] %vm293, %v409
    %442 = vst.msk [vmem:[#allocation3 + $0x20] sm:$0xff] %vm293, %v410
    %443 = vst.msk [vmem:[#allocation3 + $0x28] sm:$0xff] %vm293, %v411
    %444 = vst.msk [vmem:[#allocation3 + $0x30] sm:$0xff] %vm293, %v412
    %445 = vst.msk [vmem:[#allocation3 + $0x38] sm:$0xff] %vm293, %v413
    %446 = vst.msk [vmem:[#allocation3 + $0x40] sm:$0xff] %vm293, %v414
    %447 = vst.msk [vmem:[#allocation3 + $0x48] sm:$0xff] %vm293, %v415
    %448 = vst.msk [vmem:[#allocation3 + $0x50] sm:$0xff] %vm293, %v416
    %449 = vst.msk [vmem:[#allocation3 + $0x58] sm:$0xff] %vm293, %v417
    %450 = vst.msk [vmem:[#allocation3 + $0x60] sm:$0xff] %vm293, %v418
    %451 = vst.msk [vmem:[#allocation3 + $0x68] sm:$0xff] %vm293, %v419
    %452 = vst.msk [vmem:[#allocation3 + $0x70] sm:$0xff] %vm293, %v420
    %453 = vst.msk [vmem:[#allocation3 + $0x78] sm:$0xff] %vm293, %v421
    %v454 = vld [vmem:[%s0] sm:$0xff]
    %v455 = vld [vmem:[%s3] sm:$0xff]
    %v456 = vld [vmem:[%s3 + $0x8] sm:$0xff]
    %v457 = vld [vmem:[%s3 + $0x10] sm:$0xff]
    %v458 = vld [vmem:[%s3 + $0x18] sm:$0xff]
    %v459 = vld [vmem:[%s3 + $0x20] sm:$0xff]
    %v460 = vld [vmem:[%s3 + $0x28] sm:$0xff]
    %v461 = vld [vmem:[%s3 + $0x30] sm:$0xff]
    %v462 = vld [vmem:[%s3 + $0x38] sm:$0xff]
    %v463 = vld [vmem:[%s3 + $0x40] sm:$0xff]
    %v464 = vld [vmem:[%s3 + $0x48] sm:$0xff]
    %v465 = vld [vmem:[%s3 + $0x50] sm:$0xff]
    %v466 = vld [vmem:[%s3 + $0x58] sm:$0xff]
    %v467 = vld [vmem:[%s3 + $0x60] sm:$0xff]
    %v468 = vld [vmem:[%s3 + $0x68] sm:$0xff]
    %v469 = vld [vmem:[%s3 + $0x70] sm:$0xff]
    %v470 = vld [vmem:[%s3 + $0x78] sm:$0xff]
    %v471 = vld [vmem:[%s5] sm:$0x3]
    %v472 = vld [vmem:[#allocation8] sm:$0xff]
    %s473 = scalar_lea.vmem [#allocation8], 8
    %v474 = vld [vmem:[%s473] sm:$0xff]
    %476 = vrot.lane.b32.xlu0 %v474, 32
    %v477 = vpop.permute.xlu0 %476
    %v479 = vsel %vm83, %v472, %v477
    %s480 = smul.u32 0, 16
    %s481 = ssub.s32 15, %s480
    %v483 = vlaneseq
    %v484 = vshrl.u32 %v483, 7
    %v485 = vsub.s32 0, %v484
    %v486 = vrot.slane %v471, %v485
    %v487 = vlaneseq
    %v488 = vshrl.u32 %v487, 7
    %v489 = vsub.s32 1, %v488
    %v490 = vrot.slane %v471, %v489
    %vm493 = vcmask 523264
    %v495 = vsel %vm493, %v479, 0
    %497 = vmatprep.subr.mxu0 %v456
    %498 = vmatpush1.msra.mxu0 %v455
    %499 = vmatprep.subr.mxu0 %v458
    %500 = vmatpush1.msra.mxu0 %v457
    %501 = vmatprep.subr.mxu0 %v460
    %502 = vmatpush1.msra.mxu0 %v459
    %503 = vmatprep.subr.mxu0 %v462
    %504 = vmatpush1.msra.mxu0 %v461
    %505 = vmatprep.subr.mxu0 %v464
    %506 = vmatpush1.msra.mxu0 %v463
    %507 = vmatprep.subr.mxu0 %v466
    %508 = vmatpush1.msra.mxu0 %v465
    %509 = vmatprep.subr.mxu0 %v468
    %510 = vmatpush1.msra.mxu0 %v467
    %511 = vmatprep.subr.mxu0 %v470
    %512 = vmatpush1.msra.mxu0 %v469
    %513 = vmatprep.subr.mxu0 0.0
    %514 = vmatpush1.msra.mxu0 0.0
    %515 = vmatprep.subr.mxu0 0.0
    %516 = vmatpush1.msra.mxu0 0.0
    %517 = vmatprep.subr.mxu0 0.0
    %518 = vmatpush1.msra.mxu0 0.0
    %519 = vmatprep.subr.mxu0 0.0
    %520 = vmatpush1.msra.mxu0 0.0
    %521 = vmatprep.subr.mxu0 0.0
    %522 = vmatpush1.msra.mxu0 0.0
    %523 = vmatprep.subr.mxu0 0.0
    %524 = vmatpush1.msra.mxu0 0.0
    %525 = vmatprep.subr.mxu0 0.0
    %526 = vmatpush1.msra.mxu0 0.0
    %527 = vmatprep.subr.mxu0 0.0
    %528 = vmatpush1.msra.mxu0 0.0
    %529 = vmatprep.subr.mxu0 0.0
    %530 = vmatpush1.msra.mxu0 0.0
    %531 = vmatprep.subr.mxu0 0.0
    %532 = vmatpush1.msra.mxu0 0.0
    %533 = vmatprep.subr.mxu0 0.0
    %534 = vmatpush1.msra.mxu0 0.0
    %535 = vmatprep.subr.mxu0 0.0
    %536 = vmatpush1.msra.mxu0 0.0
    %537 = vmatprep.subr.mxu0 0.0
    %538 = vmatpush1.msra.mxu0 0.0
    %539 = vmatprep.subr.mxu0 0.0
    %540 = vmatpush1.msra.mxu0 0.0
    %541 = vmatprep.subr.mxu0 0.0
    %542 = vmatpush1.msra.mxu0 0.0
    %543 = vmatprep.subr.mxu0 0.0
    %544 = vmatpush1.msra.mxu0 0.0
    %545 = vmatprep.subr.mxu0 0.0
    %546 = vmatpush1.msra.mxu0 0.0
    %547 = vmatprep.subr.mxu0 0.0
    %548 = vmatpush1.msra.mxu0 0.0
    %549 = vmatprep.subr.mxu0 0.0
    %550 = vmatpush1.msra.mxu0 0.0
    %551 = vmatprep.subr.mxu0 0.0
    %552 = vmatpush1.msra.mxu0 0.0
    %553 = vmatprep.subr.mxu0 0.0
    %554 = vmatpush1.msra.mxu0 0.0
    %555 = vmatprep.subr.mxu0 0.0
    %556 = vmatpush1.msra.mxu0 0.0
    %557 = vmatprep.subr.mxu0 0.0
    %558 = vmatpush1.msra.mxu0 0.0
    %559 = vmatprep.subr.mxu0 0.0
    %560 = vmatpush1.msra.mxu0 0.0
    %561 = vmatprep.mubr.f32.mxu0 0.0
    %562 = vmatmul.mubr.f32.gmra.mrb[0].mxu0 %v495
    %v563 = vpop.f32.mrb[0].mxu0
    %v564 = vadd.f32 %v486, %v563
    %v565 = vpop.f32.mrb[0].mxu0
    %v566 = vadd.f32 %v490, %v565
    %567 = vdwg.mxu0
    %v568 = vld [vmem:[#allocation2] sm:$0xff]
    %v569 = vld [vmem:[#allocation3 + $0x78] sm:$0xff]
    %v570 = vadd.f32 %v568, %v564
    %v571 = vxor.u32 %v570, 2147483648
    %v572 = vmul.f32 %v571, 1.442695
    %v573 = vpow.pop %v572
    %v574 = vadd.f32 %v573, 1.0
    %v575 = vrcp.pop %v574
    %v576 = vmul.f32 1.0, %v575
    %579 = vrot.lane.b32.xlu0 %v564, 32
    %v580 = vpop.permute.xlu0 %579
    %581 = vrot.lane.b32.xlu0 %v566, 32
    %v582 = vpop.permute.xlu0 %581
    %v583 = vsel %vm83, %v580, %v582
    %v585 = vadd.f32 %v569, %v583
    %v586 = vxor.u32 %v585, 2147483648
    %v587 = vmul.f32 %v586, 1.442695
    %v588 = vpow.pop %v587
    %v589 = vadd.f32 %v588, 1.0
    %v590 = vrcp.pop %v589
    %v591 = vmul.f32 1.0, %v590
    %592 = vrot.lane.b32.xlu0 %v564, 64
    %v593 = vpop.permute.xlu0 %592
    %v595 = vmul.f32 %v576, %v593
    %597 = vrot.lane.b32.xlu0 %v595, 64
    %v598 = vpop.permute.xlu0 %597
    %v600 = vadd.f32 %v568, %v598
    %v601 = vtanh.pop %v600
    %602 = vrot.lane.b32.xlu0 %v566, 96
    %v603 = vpop.permute.xlu0 %602
    %v605 = vmul.f32 %v591, %v603
    %607 = vrot.lane.b32.xlu0 %v605, 64
    %v608 = vpop.permute.xlu0 %607
    %v610 = vadd.f32 %v569, %v608
    %v611 = vtanh.pop %v610
    %613 = vrot.lane.b32.xlu0 %v601, 64
    %v614 = vpop.permute.xlu0 %613
    %v616 = vsub.f32 %v479, %v614
    %618 = vrot.lane.b32.xlu0 %v616, 32
    %v619 = vpop.permute.xlu0 %618
    %v621 = vmul.f32 %v576, %v619
    %623 = vrot.lane.b32.xlu0 %v621, 32
    %v624 = vpop.permute.xlu0 %623
    %v626 = vadd.f32 %v601, %v624
    %628 = vrot.lane.b32.xlu0 %v611, 96
    %v629 = vpop.permute.xlu0 %628
    %v631 = vsub.f32 %v479, %v629
    %v632 = vmul.f32 %v591, %v631
    %634 = vrot.lane.b32.xlu0 %v632, 32
    %v635 = vpop.permute.xlu0 %634
    %v637 = vadd.f32 %v611, %v635
    %v638 = vstv %s480
    %vm639 = vcmp.gt.s32.totalorder %v454, %v638
    %v640 = vstv %s481
    %vm641 = vcmp.gt.s32.totalorder %v454, %v640
    %v642 = vsel %vm639, 1, 0
    %643 = vset.pattern.permute.xlu0 0
    %644 = vperm.xlu0 %643, %v642
    %v645 = vpop.permute.xlu0 %644
    %vm646 = vcmp.eq.s32.totalorder %v645, 1
    %647 = vrot.lane.b32.xlu0 %v479, 64
    %v648 = vpop.permute.xlu0 %647
    %v650 = vsel %vm646, %v626, %v648
    %v651 = vsel %vm641, 1, 0
    %652 = vset.pattern.permute.xlu0 0
    %653 = vperm.xlu0 %652, %v651
    %v654 = vpop.permute.xlu0 %653
    %vm655 = vcmp.eq.s32.totalorder %v654, 1
    %656 = vrot.lane.b32.xlu0 %v479, 32
    %v657 = vpop.permute.xlu0 %656
    %v659 = vsel %vm655, %v637, %v657
    %v660 = vsel %vm646, %v626, 0.0
    %v661 = vsel %vm655, %v637, 0.0
    %663 = vrot.lane.b32.xlu0 %v660, 64
    %v664 = vpop.permute.xlu0 %663
    %666 = vst.msk [vmem:[%s6] sm:$0xff] %vm83, %v664
    %668 = vrot.lane.b32.xlu0 %v661, 64
    %v669 = vpop.permute.xlu0 %668
    %671 = vst.msk [vmem:[#allocation4 + $0x78] sm:$0xff] %vm83, %v669
    %673 = vrot.lane.b32.xlu0 %v650, 64
    %v674 = vpop.permute.xlu0 %673
    %677 = vrot.lane.b32.xlu0 %v659, 96
    %v678 = vpop.permute.xlu0 %677
    %v680 = vsel %vm83, %v674, %v678
    %s681 = sadd.s32 %s480, 1
    %s682 = ssub.s32 14, %s480
    %v684 = vsel %vm493, %v680, 0
    %686 = vmatprep.subr.mxu0 %v456
    %687 = vmatpush1.msra.mxu0 %v455
    %688 = vmatprep.subr.mxu0 %v458
    %689 = vmatpush1.msra.mxu0 %v457
    %690 = vmatprep.subr.mxu0 %v460
    %691 = vmatpush1.msra.mxu0 %v459
    %692 = vmatprep.subr.mxu0 %v462
    %693 = vmatpush1.msra.mxu0 %v461
    %694 = vmatprep.subr.mxu0 %v464
    %695 = vmatpush1.msra.mxu0 %v463
    %696 = vmatprep.subr.mxu0 %v466
    %697 = vmatpush1.msra.mxu0 %v465
    %698 = vmatprep.subr.mxu0 %v468
    %699 = vmatpush1.msra.mxu0 %v467
    %700 = vmatprep.subr.mxu0 %v470
    %701 = vmatpush1.msra.mxu0 %v469
    %702 = vmatprep.subr.mxu0 0.0
    %703 = vmatpush1.msra.mxu0 0.0
    %704 = vmatprep.subr.mxu0 0.0
    %705 = vmatpush1.msra.mxu0 0.0
    %706 = vmatprep.subr.mxu0 0.0
    %707 = vmatpush1.msra.mxu0 0.0
    %708 = vmatprep.subr.mxu0 0.0
    %709 = vmatpush1.msra.mxu0 0.0
    %710 = vmatprep.subr.mxu0 0.0
    %711 = vmatpush1.msra.mxu0 0.0
    %712 = vmatprep.subr.mxu0 0.0
    %713 = vmatpush1.msra.mxu0 0.0
    %714 = vmatprep.subr.mxu0 0.0
    %715 = vmatpush1.msra.mxu0 0.0
    %716 = vmatprep.subr.mxu0 0.0
    %717 = vmatpush1.msra.mxu0 0.0
    %718 = vmatprep.subr.mxu0 0.0
    %719 = vmatpush1.msra.mxu0 0.0
    %720 = vmatprep.subr.mxu0 0.0
    %721 = vmatpush1.msra.mxu0 0.0
    %722 = vmatprep.subr.mxu0 0.0
    %723 = vmatpush1.msra.mxu0 0.0
    %724 = vmatprep.subr.mxu0 0.0
    %725 = vmatpush1.msra.mxu0 0.0
    %726 = vmatprep.subr.mxu0 0.0
    %727 = vmatpush1.msra.mxu0 0.0
    %728 = vmatprep.subr.mxu0 0.0
    %729 = vmatpush1.msra.mxu0 0.0
    %730 = vmatprep.subr.mxu0 0.0
    %731 = vmatpush1.msra.mxu0 0.0
    %732 = vmatprep.subr.mxu0 0.0
    %733 = vmatpush1.msra.mxu0 0.0
    %734 = vmatprep.subr.mxu0 0.0
    %735 = vmatpush1.msra.mxu0 0.0
    %736 = vmatprep.subr.mxu0 0.0
    %737 = vmatpush1.msra.mxu0 0.0
    %738 = vmatprep.subr.mxu0 0.0
    %739 = vmatpush1.msra.mxu0 0.0
    %740 = vmatprep.subr.mxu0 0.0
    %741 = vmatpush1.msra.mxu0 0.0
    %742 = vmatprep.subr.mxu0 0.0
    %743 = vmatpush1.msra.mxu0 0.0
    %744 = vmatprep.subr.mxu0 0.0
    %745 = vmatpush1.msra.mxu0 0.0
    %746 = vmatprep.subr.mxu0 0.0
    %747 = vmatpush1.msra.mxu0 0.0
    %748 = vmatprep.subr.mxu0 0.0
    %749 = vmatpush1.msra.mxu0 0.0
    %750 = vmatprep.mubr.f32.mxu0 0.0
    %751 = vmatmul.mubr.f32.gmra.mrb[0].mxu0 %v684
    %v752 = vpop.f32.mrb[0].mxu0
    %v753 = vadd.f32 %v486, %v752
    %v754 = vpop.f32.mrb[0].mxu0
    %v755 = vadd.f32 %v490, %v754
    %756 = vdwg.mxu0
    %v757 = vld [vmem:[#allocation2 + $0x8] sm:$0xff]
    %v758 = vld [vmem:[#allocation3 + $0x70] sm:$0xff]
    %v759 = vadd.f32 %v757, %v753
    %v760 = vxor.u32 %v759, 2147483648
    %v761 = vmul.f32 %v760, 1.442695
    %v762 = vpow.pop %v761
    %v763 = vadd.f32 %v762, 1.0
    %v764 = vrcp.pop %v763
    %v765 = vmul.f32 1.0, %v764
    %768 = vrot.lane.b32.xlu0 %v753, 32
    %v769 = vpop.permute.xlu0 %768
    %770 = vrot.lane.b32.xlu0 %v755, 32
    %v771 = vpop.permute.xlu0 %770
    %v772 = vsel %vm83, %v769, %v771
    %v774 = vadd.f32 %v758, %v772
    %v775 = vxor.u32 %v774, 2147483648
    %v776 = vmul.f32 %v775, 1.442695
    %v777 = vpow.pop %v776
    %v778 = vadd.f32 %v777, 1.0
    %v779 = vrcp.pop %v778
    %v780 = vmul.f32 1.0, %v779
    %781 = vrot.lane.b32.xlu0 %v753, 64
    %v782 = vpop.permute.xlu0 %781
    %v784 = vmul.f32 %v765, %v782
    %786 = vrot.lane.b32.xlu0 %v784, 64
    %v787 = vpop.permute.xlu0 %786
    %v789 = vadd.f32 %v757, %v787
    %v790 = vtanh.pop %v789
    %791 = vrot.lane.b32.xlu0 %v755, 96
    %v792 = vpop.permute.xlu0 %791
    %v794 = vmul.f32 %v780, %v792
    %796 = vrot.lane.b32.xlu0 %v794, 64
    %v797 = vpop.permute.xlu0 %796
    %v799 = vadd.f32 %v758, %v797
    %v800 = vtanh.pop %v799
    %802 = vrot.lane.b32.xlu0 %v790, 64
    %v803 = vpop.permute.xlu0 %802
    %v805 = vsub.f32 %v680, %v803
    %807 = vrot.lane.b32.xlu0 %v805, 32
    %v808 = vpop.permute.xlu0 %807
    %v810 = vmul.f32 %v765, %v808
    %812 = vrot.lane.b32.xlu0 %v810, 32
    %v813 = vpop.permute.xlu0 %812
    %v815 = vadd.f32 %v790, %v813
    %817 = vrot.lane.b32.xlu0 %v800, 96
    %v818 = vpop.permute.xlu0 %817
    %v820 = vsub.f32 %v680, %v818
    %v821 = vmul.f32 %v780, %v820
    %823 = vrot.lane.b32.xlu0 %v821, 32
    %v824 = vpop.permute.xlu0 %823
    %v826 = vadd.f32 %v800, %v824
    %v827 = vstv %s681
    %vm828 = vcmp.gt.s32.totalorder %v454, %v827
    %v829 = vstv %s682
    %vm830 = vcmp.gt.s32.totalorder %v454, %v829
    %v831 = vsel %vm828, 1, 0
    %832 = vset.pattern.permute.xlu0 0
    %833 = vperm.xlu0 %832, %v831
    %v834 = vpop.permute.xlu0 %833
    %vm835 = vcmp.eq.s32.totalorder %v834, 1
    %836 = vrot.lane.b32.xlu0 %v680, 64
    %v837 = vpop.permute.xlu0 %836
    %v839 = vsel %vm835, %v815, %v837
    %v840 = vsel %vm830, 1, 0
    %841 = vset.pattern.permute.xlu0 0
    %842 = vperm.xlu0 %841, %v840
    %v843 = vpop.permute.xlu0 %842
    %vm844 = vcmp.eq.s32.totalorder %v843, 1
    %845 = vrot.lane.b32.xlu0 %v680, 32
    %v846 = vpop.permute.xlu0 %845
    %v848 = vsel %vm844, %v826, %v846
    %v849 = vsel %vm835, %v815, 0.0
    %v850 = vsel %vm844, %v826, 0.0
    %852 = vrot.lane.b32.xlu0 %v849, 64
    %v853 = vpop.permute.xlu0 %852
    %855 = vst.msk [vmem:[%s6 + $0x8] sm:$0xff] %vm83, %v853
    %857 = vrot.lane.b32.xlu0 %v850, 64
    %v858 = vpop.permute.xlu0 %857
    %860 = vst.msk [vmem:[#allocation4 + $0x70] sm:$0xff] %vm83, %v858
    %862 = vrot.lane.b32.xlu0 %v839, 64
    %v863 = vpop.permute.xlu0 %862
    %866 = vrot.lane.b32.xlu0 %v848, 96
    %v867 = vpop.permute.xlu0 %866
    %v869 = vsel %vm83, %v863, %v867
    %s870 = sadd.s32 %s480, 2
    %s871 = ssub.s32 13, %s480
    %v873 = vsel %vm493, %v869, 0
    %875 = vmatprep.subr.mxu0 %v456
    %876 = vmatpush1.msra.mxu0 %v455
    %877 = vmatprep.subr.mxu0 %v458
    %878 = vmatpush1.msra.mxu0 %v457
    %879 = vmatprep.subr.mxu0 %v460
    %880 = vmatpush1.msra.mxu0 %v459
    %881 = vmatprep.subr.mxu0 %v462
    %882 = vmatpush1.msra.mxu0 %v461
    %883 = vmatprep.subr.mxu0 %v464
    %884 = vmatpush1.msra.mxu0 %v463
    %885 = vmatprep.subr.mxu0 %v466
    %886 = vmatpush1.msra.mxu0 %v465
    %887 = vmatprep.subr.mxu0 %v468
    %888 = vmatpush1.msra.mxu0 %v467
    %889 = vmatprep.subr.mxu0 %v470
    %890 = vmatpush1.msra.mxu0 %v469
    %891 = vmatprep.subr.mxu0 0.0
    %892 = vmatpush1.msra.mxu0 0.0
    %893 = vmatprep.subr.mxu0 0.0
    %894 = vmatpush1.msra.mxu0 0.0
    %895 = vmatprep.subr.mxu0 0.0
    %896 = vmatpush1.msra.mxu0 0.0
    %897 = vmatprep.subr.mxu0 0.0
    %898 = vmatpush1.msra.mxu0 0.0
    %899 = vmatprep.subr.mxu0 0.0
    %900 = vmatpush1.msra.mxu0 0.0
    %901 = vmatprep.subr.mxu0 0.0
    %902 = vmatpush1.msra.mxu0 0.0
    %903 = vmatprep.subr.mxu0 0.0
    %904 = vmatpush1.msra.mxu0 0.0
    %905 = vmatprep.subr.mxu0 0.0
    %906 = vmatpush1.msra.mxu0 0.0
    %907 = vmatprep.subr.mxu0 0.0
    %908 = vmatpush1.msra.mxu0 0.0
    %909 = vmatprep.subr.mxu0 0.0
    %910 = vmatpush1.msra.mxu0 0.0
    %911 = vmatprep.subr.mxu0 0.0
    %912 = vmatpush1.msra.mxu0 0.0
    %913 = vmatprep.subr.mxu0 0.0
    %914 = vmatpush1.msra.mxu0 0.0
    %915 = vmatprep.subr.mxu0 0.0
    %916 = vmatpush1.msra.mxu0 0.0
    %917 = vmatprep.subr.mxu0 0.0
    %918 = vmatpush1.msra.mxu0 0.0
    %919 = vmatprep.subr.mxu0 0.0
    %920 = vmatpush1.msra.mxu0 0.0
    %921 = vmatprep.subr.mxu0 0.0
    %922 = vmatpush1.msra.mxu0 0.0
    %923 = vmatprep.subr.mxu0 0.0
    %924 = vmatpush1.msra.mxu0 0.0
    %925 = vmatprep.subr.mxu0 0.0
    %926 = vmatpush1.msra.mxu0 0.0
    %927 = vmatprep.subr.mxu0 0.0
    %928 = vmatpush1.msra.mxu0 0.0
    %929 = vmatprep.subr.mxu0 0.0
    %930 = vmatpush1.msra.mxu0 0.0
    %931 = vmatprep.subr.mxu0 0.0
    %932 = vmatpush1.msra.mxu0 0.0
    %933 = vmatprep.subr.mxu0 0.0
    %934 = vmatpush1.msra.mxu0 0.0
    %935 = vmatprep.subr.mxu0 0.0
    %936 = vmatpush1.msra.mxu0 0.0
    %937 = vmatprep.subr.mxu0 0.0
    %938 = vmatpush1.msra.mxu0 0.0
    %939 = vmatprep.mubr.f32.mxu0 0.0
    %940 = vmatmul.mubr.f32.gmra.mrb[0].mxu0 %v873
    %v941 = vpop.f32.mrb[0].mxu0
    %v942 = vadd.f32 %v486, %v941
    %v943 = vpop.f32.mrb[0].mxu0
    %v944 = vadd.f32 %v490, %v943
    %945 = vdwg.mxu0
    %v946 = vld [vmem:[#allocation2 + $0x10] sm:$0xff]
    %v947 = vld [vmem:[#allocation3 + $0x68] sm:$0xff]
    %v948 = vadd.f32 %v946, %v942
    %v949 = vxor.u32 %v948, 2147483648
    %v950 = vmul.f32 %v949, 1.442695
    %v951 = vpow.pop %v950
    %v952 = vadd.f32 %v951, 1.0
    %v953 = vrcp.pop %v952
    %v954 = vmul.f32 1.0, %v953
    %957 = vrot.lane.b32.xlu0 %v942, 32
    %v958 = vpop.permute.xlu0 %957
    %959 = vrot.lane.b32.xlu0 %v944, 32
    %v960 = vpop.permute.xlu0 %959
    %v961 = vsel %vm83, %v958, %v960
    %v963 = vadd.f32 %v947, %v961
    %v964 = vxor.u32 %v963, 2147483648
    %v965 = vmul.f32 %v964, 1.442695
    %v966 = vpow.pop %v965
    %v967 = vadd.f32 %v966, 1.0
    %v968 = vrcp.pop %v967
    %v969 = vmul.f32 1.0, %v968
    %970 = vrot.lane.b32.xlu0 %v942, 64
    %v971 = vpop.permute.xlu0 %970
    %v973 = vmul.f32 %v954, %v971
    %975 = vrot.lane.b32.xlu0 %v973, 64
    %v976 = vpop.permute.xlu0 %975
    %v978 = vadd.f32 %v946, %v976
    %v979 = vtanh.pop %v978
    %980 = vrot.lane.b32.xlu0 %v944, 96
    %v981 = vpop.permute.xlu0 %980
    %v983 = vmul.f32 %v969, %v981
    %985 = vrot.lane.b32.xlu0 %v983, 64
    %v986 = vpop.permute.xlu0 %985
    %v988 = vadd.f32 %v947, %v986
    %v989 = vtanh.pop %v988
    %991 = vrot.lane.b32.xlu0 %v979, 64
    %v992 = vpop.permute.xlu0 %991
    %v994 = vsub.f32 %v869, %v992
    %996 = vrot.lane.b32.xlu0 %v994, 32
    %v997 = vpop.permute.xlu0 %996
    %v999 = vmul.f32 %v954, %v997
    %1001 = vrot.lane.b32.xlu0 %v999, 32
    %v1002 = vpop.permute.xlu0 %1001
    %v1004 = vadd.f32 %v979, %v1002
    %1006 = vrot.lane.b32.xlu0 %v989, 96
    %v1007 = vpop.permute.xlu0 %1006
    %v1009 = vsub.f32 %v869, %v1007
    %v1010 = vmul.f32 %v969, %v1009
    %1012 = vrot.lane.b32.xlu0 %v1010, 32
    %v1013 = vpop.permute.xlu0 %1012
    %v1015 = vadd.f32 %v989, %v1013
    %v1016 = vstv %s870
    %vm1017 = vcmp.gt.s32.totalorder %v454, %v1016
    %v1018 = vstv %s871
    %vm1019 = vcmp.gt.s32.totalorder %v454, %v1018
    %v1020 = vsel %vm1017, 1, 0
    %1021 = vset.pattern.permute.xlu0 0
    %1022 = vperm.xlu0 %1021, %v1020
    %v1023 = vpop.permute.xlu0 %1022
    %vm1024 = vcmp.eq.s32.totalorder %v1023, 1
    %1025 = vrot.lane.b32.xlu0 %v869, 64
    %v1026 = vpop.permute.xlu0 %1025
    %v1028 = vsel %vm1024, %v1004, %v1026
    %v1029 = vsel %vm1019, 1, 0
    %1030 = vset.pattern.permute.xlu0 0
    %1031 = vperm.xlu0 %1030, %v1029
    %v1032 = vpop.permute.xlu0 %1031
    %vm1033 = vcmp.eq.s32.totalorder %v1032, 1
    %1034 = vrot.lane.b32.xlu0 %v869, 32
    %v1035 = vpop.permute.xlu0 %1034
    %v1037 = vsel %vm1033, %v1015, %v1035
    %v1038 = vsel %vm1024, %v1004, 0.0
    %v1039 = vsel %vm1033, %v1015, 0.0
    %1041 = vrot.lane.b32.xlu0 %v1038, 64
    %v1042 = vpop.permute.xlu0 %1041
    %1044 = vst.msk [vmem:[%s6 + $0x10] sm:$0xff] %vm83, %v1042
    %1046 = vrot.lane.b32.xlu0 %v1039, 64
    %v1047 = vpop.permute.xlu0 %1046
    %1049 = vst.msk [vmem:[#allocation4 + $0x68] sm:$0xff] %vm83, %v1047
    %1051 = vrot.lane.b32.xlu0 %v1028, 64
    %v1052 = vpop.permute.xlu0 %1051
    %1055 = vrot.lane.b32.xlu0 %v1037, 96
    %v1056 = vpop.permute.xlu0 %1055
    %v1058 = vsel %vm83, %v1052, %v1056
    %s1059 = sadd.s32 %s480, 3
    %s1060 = ssub.s32 12, %s480
    %v1062 = vsel %vm493, %v1058, 0
    %1064 = vmatprep.subr.mxu0 %v456
    %1065 = vmatpush1.msra.mxu0 %v455
    %1066 = vmatprep.subr.mxu0 %v458
    %1067 = vmatpush1.msra.mxu0 %v457
    %1068 = vmatprep.subr.mxu0 %v460
    %1069 = vmatpush1.msra.mxu0 %v459
    %1070 = vmatprep.subr.mxu0 %v462
    %1071 = vmatpush1.msra.mxu0 %v461
    %1072 = vmatprep.subr.mxu0 %v464
    %1073 = vmatpush1.msra.mxu0 %v463
    %1074 = vmatprep.subr.mxu0 %v466
    %1075 = vmatpush1.msra.mxu0 %v465
    %1076 = vmatprep.subr.mxu0 %v468
    %1077 = vmatpush1.msra.mxu0 %v467
    %1078 = vmatprep.subr.mxu0 %v470
    %1079 = vmatpush1.msra.mxu0 %v469
    %1080 = vmatprep.subr.mxu0 0.0
    %1081 = vmatpush1.msra.mxu0 0.0
    %1082 = vmatprep.subr.mxu0 0.0
    %1083 = vmatpush1.msra.mxu0 0.0
    %1084 = vmatprep.subr.mxu0 0.0
    %1085 = vmatpush1.msra.mxu0 0.0
    %1086 = vmatprep.subr.mxu0 0.0
    %1087 = vmatpush1.msra.mxu0 0.0
    %1088 = vmatprep.subr.mxu0 0.0
    %1089 = vmatpush1.msra.mxu0 0.0
    %1090 = vmatprep.subr.mxu0 0.0
    %1091 = vmatpush1.msra.mxu0 0.0
    %1092 = vmatprep.subr.mxu0 0.0
    %1093 = vmatpush1.msra.mxu0 0.0
    %1094 = vmatprep.subr.mxu0 0.0
    %1095 = vmatpush1.msra.mxu0 0.0
    %1096 = vmatprep.subr.mxu0 0.0
    %1097 = vmatpush1.msra.mxu0 0.0
    %1098 = vmatprep.subr.mxu0 0.0
    %1099 = vmatpush1.msra.mxu0 0.0
    %1100 = vmatprep.subr.mxu0 0.0
    %1101 = vmatpush1.msra.mxu0 0.0
    %1102 = vmatprep.subr.mxu0 0.0
    %1103 = vmatpush1.msra.mxu0 0.0
    %1104 = vmatprep.subr.mxu0 0.0
    %1105 = vmatpush1.msra.mxu0 0.0
    %1106 = vmatprep.subr.mxu0 0.0
    %1107 = vmatpush1.msra.mxu0 0.0
    %1108 = vmatprep.subr.mxu0 0.0
    %1109 = vmatpush1.msra.mxu0 0.0
    %1110 = vmatprep.subr.mxu0 0.0
    %1111 = vmatpush1.msra.mxu0 0.0
    %1112 = vmatprep.subr.mxu0 0.0
    %1113 = vmatpush1.msra.mxu0 0.0
    %1114 = vmatprep.subr.mxu0 0.0
    %1115 = vmatpush1.msra.mxu0 0.0
    %1116 = vmatprep.subr.mxu0 0.0
    %1117 = vmatpush1.msra.mxu0 0.0
    %1118 = vmatprep.subr.mxu0 0.0
    %1119 = vmatpush1.msra.mxu0 0.0
    %1120 = vmatprep.subr.mxu0 0.0
    %1121 = vmatpush1.msra.mxu0 0.0
    %1122 = vmatprep.subr.mxu0 0.0
    %1123 = vmatpush1.msra.mxu0 0.0
    %1124 = vmatprep.subr.mxu0 0.0
    %1125 = vmatpush1.msra.mxu0 0.0
    %1126 = vmatprep.subr.mxu0 0.0
    %1127 = vmatpush1.msra.mxu0 0.0
    %1128 = vmatprep.mubr.f32.mxu0 0.0
    %1129 = vmatmul.mubr.f32.gmra.mrb[0].mxu0 %v1062
    %v1130 = vpop.f32.mrb[0].mxu0
    %v1131 = vadd.f32 %v486, %v1130
    %v1132 = vpop.f32.mrb[0].mxu0
    %v1133 = vadd.f32 %v490, %v1132
    %1134 = vdwg.mxu0
    %v1135 = vld [vmem:[#allocation2 + $0x18] sm:$0xff]
    %v1136 = vld [vmem:[#allocation3 + $0x60] sm:$0xff]
    %v1137 = vadd.f32 %v1135, %v1131
    %v1138 = vxor.u32 %v1137, 2147483648
    %v1139 = vmul.f32 %v1138, 1.442695
    %v1140 = vpow.pop %v1139
    %v1141 = vadd.f32 %v1140, 1.0
    %v1142 = vrcp.pop %v1141
    %v1143 = vmul.f32 1.0, %v1142
    %1146 = vrot.lane.b32.xlu0 %v1131, 32
    %v1147 = vpop.permute.xlu0 %1146
    %1148 = vrot.lane.b32.xlu0 %v1133, 32
    %v1149 = vpop.permute.xlu0 %1148
    %v1150 = vsel %vm83, %v1147, %v1149
    %v1152 = vadd.f32 %v1136, %v1150
    %v1153 = vxor.u32 %v1152, 2147483648
    %v1154 = vmul.f32 %v1153, 1.442695
    %v1155 = vpow.pop %v1154
    %v1156 = vadd.f32 %v1155, 1.0
    %v1157 = vrcp.pop %v1156
    %v1158 = vmul.f32 1.0, %v1157
    %1159 = vrot.lane.b32.xlu0 %v1131, 64
    %v1160 = vpop.permute.xlu0 %1159
    %v1162 = vmul.f32 %v1143, %v1160
    %1164 = vrot.lane.b32.xlu0 %v1162, 64
    %v1165 = vpop.permute.xlu0 %1164
    %v1167 = vadd.f32 %v1135, %v1165
    %v1168 = vtanh.pop %v1167
    %1169 = vrot.lane.b32.xlu0 %v1133, 96
    %v1170 = vpop.permute.xlu0 %1169
    %v1172 = vmul.f32 %v1158, %v1170
    %1174 = vrot.lane.b32.xlu0 %v1172, 64
    %v1175 = vpop.permute.xlu0 %1174
    %v1177 = vadd.f32 %v1136, %v1175
    %v1178 = vtanh.pop %v1177
    %1180 = vrot.lane.b32.xlu0 %v1168, 64
    %v1181 = vpop.permute.xlu0 %1180
    %v1183 = vsub.f32 %v1058, %v1181
    %1185 = vrot.lane.b32.xlu0 %v1183, 32
    %v1186 = vpop.permute.xlu0 %1185
    %v1188 = vmul.f32 %v1143, %v1186
    %1190 = vrot.lane.b32.xlu0 %v1188, 32
    %v1191 = vpop.permute.xlu0 %1190
    %v1193 = vadd.f32 %v1168, %v1191
    %1195 = vrot.lane.b32.xlu0 %v1178, 96
    %v1196 = vpop.permute.xlu0 %1195
    %v1198 = vsub.f32 %v1058, %v1196
    %v1199 = vmul.f32 %v1158, %v1198
    %1201 = vrot.lane.b32.xlu0 %v1199, 32
    %v1202 = vpop.permute.xlu0 %1201
    %v1204 = vadd.f32 %v1178, %v1202
    %v1205 = vstv %s1059
    %vm1206 = vcmp.gt.s32.totalorder %v454, %v1205
    %v1207 = vstv %s1060
    %vm1208 = vcmp.gt.s32.totalorder %v454, %v1207
    %v1209 = vsel %vm1206, 1, 0
    %1210 = vset.pattern.permute.xlu0 0
    %1211 = vperm.xlu0 %1210, %v1209
    %v1212 = vpop.permute.xlu0 %1211
    %vm1213 = vcmp.eq.s32.totalorder %v1212, 1
    %1214 = vrot.lane.b32.xlu0 %v1058, 64
    %v1215 = vpop.permute.xlu0 %1214
    %v1217 = vsel %vm1213, %v1193, %v1215
    %v1218 = vsel %vm1208, 1, 0
    %1219 = vset.pattern.permute.xlu0 0
    %1220 = vperm.xlu0 %1219, %v1218
    %v1221 = vpop.permute.xlu0 %1220
    %vm1222 = vcmp.eq.s32.totalorder %v1221, 1
    %1223 = vrot.lane.b32.xlu0 %v1058, 32
    %v1224 = vpop.permute.xlu0 %1223
    %v1226 = vsel %vm1222, %v1204, %v1224
    %v1227 = vsel %vm1213, %v1193, 0.0
    %v1228 = vsel %vm1222, %v1204, 0.0
    %1230 = vrot.lane.b32.xlu0 %v1227, 64
    %v1231 = vpop.permute.xlu0 %1230
    %1233 = vst.msk [vmem:[%s6 + $0x18] sm:$0xff] %vm83, %v1231
    %1235 = vrot.lane.b32.xlu0 %v1228, 64
    %v1236 = vpop.permute.xlu0 %1235
    %1238 = vst.msk [vmem:[#allocation4 + $0x60] sm:$0xff] %vm83, %v1236
    %1240 = vrot.lane.b32.xlu0 %v1217, 64
    %v1241 = vpop.permute.xlu0 %1240
    %1244 = vrot.lane.b32.xlu0 %v1226, 96
    %v1245 = vpop.permute.xlu0 %1244
    %v1247 = vsel %vm83, %v1241, %v1245
    %s1248 = sadd.s32 %s480, 4
    %s1249 = ssub.s32 11, %s480
    %v1251 = vsel %vm493, %v1247, 0
    %1253 = vmatprep.subr.mxu0 %v456
    %1254 = vmatpush1.msra.mxu0 %v455
    %1255 = vmatprep.subr.mxu0 %v458
    %1256 = vmatpush1.msra.mxu0 %v457
    %1257 = vmatprep.subr.mxu0 %v460
    %1258 = vmatpush1.msra.mxu0 %v459
    %1259 = vmatprep.subr.mxu0 %v462
    %1260 = vmatpush1.msra.mxu0 %v461
    %1261 = vmatprep.subr.mxu0 %v464
    %1262 = vmatpush1.msra.mxu0 %v463
    %1263 = vmatprep.subr.mxu0 %v466
    %1264 = vmatpush1.msra.mxu0 %v465
    %1265 = vmatprep.subr.mxu0 %v468
    %1266 = vmatpush1.msra.mxu0 %v467
    %1267 = vmatprep.subr.mxu0 %v470
    %1268 = vmatpush1.msra.mxu0 %v469
    %1269 = vmatprep.subr.mxu0 0.0
    %1270 = vmatpush1.msra.mxu0 0.0
    %1271 = vmatprep.subr.mxu0 0.0
    %1272 = vmatpush1.msra.mxu0 0.0
    %1273 = vmatprep.subr.mxu0 0.0
    %1274 = vmatpush1.msra.mxu0 0.0
    %1275 = vmatprep.subr.mxu0 0.0
    %1276 = vmatpush1.msra.mxu0 0.0
    %1277 = vmatprep.subr.mxu0 0.0
    %1278 = vmatpush1.msra.mxu0 0.0
    %1279 = vmatprep.subr.mxu0 0.0
    %1280 = vmatpush1.msra.mxu0 0.0
    %1281 = vmatprep.subr.mxu0 0.0
    %1282 = vmatpush1.msra.mxu0 0.0
    %1283 = vmatprep.subr.mxu0 0.0
    %1284 = vmatpush1.msra.mxu0 0.0
    %1285 = vmatprep.subr.mxu0 0.0
    %1286 = vmatpush1.msra.mxu0 0.0
    %1287 = vmatprep.subr.mxu0 0.0
    %1288 = vmatpush1.msra.mxu0 0.0
    %1289 = vmatprep.subr.mxu0 0.0
    %1290 = vmatpush1.msra.mxu0 0.0
    %1291 = vmatprep.subr.mxu0 0.0
    %1292 = vmatpush1.msra.mxu0 0.0
    %1293 = vmatprep.subr.mxu0 0.0
    %1294 = vmatpush1.msra.mxu0 0.0
    %1295 = vmatprep.subr.mxu0 0.0
    %1296 = vmatpush1.msra.mxu0 0.0
    %1297 = vmatprep.subr.mxu0 0.0
    %1298 = vmatpush1.msra.mxu0 0.0
    %1299 = vmatprep.subr.mxu0 0.0
    %1300 = vmatpush1.msra.mxu0 0.0
    %1301 = vmatprep.subr.mxu0 0.0
    %1302 = vmatpush1.msra.mxu0 0.0
    %1303 = vmatprep.subr.mxu0 0.0
    %1304 = vmatpush1.msra.mxu0 0.0
    %1305 = vmatprep.subr.mxu0 0.0
    %1306 = vmatpush1.msra.mxu0 0.0
    %1307 = vmatprep.subr.mxu0 0.0
    %1308 = vmatpush1.msra.mxu0 0.0
    %1309 = vmatprep.subr.mxu0 0.0
    %1310 = vmatpush1.msra.mxu0 0.0
    %1311 = vmatprep.subr.mxu0 0.0
    %1312 = vmatpush1.msra.mxu0 0.0
    %1313 = vmatprep.subr.mxu0 0.0
    %1314 = vmatpush1.msra.mxu0 0.0
    %1315 = vmatprep.subr.mxu0 0.0
    %1316 = vmatpush1.msra.mxu0 0.0
    %1317 = vmatprep.mubr.f32.mxu0 0.0
    %1318 = vmatmul.mubr.f32.gmra.mrb[0].mxu0 %v1251
    %v1319 = vpop.f32.mrb[0].mxu0
    %v1320 = vadd.f32 %v486, %v1319
    %v1321 = vpop.f32.mrb[0].mxu0
    %v1322 = vadd.f32 %v490, %v1321
    %1323 = vdwg.mxu0
    %v1324 = vld [vmem:[#allocation2 + $0x20] sm:$0xff]
    %v1325 = vld [vmem:[#allocation3 + $0x58] sm:$0xff]
    %v1326 = vadd.f32 %v1324, %v1320
    %v1327 = vxor.u32 %v1326, 2147483648
    %v1328 = vmul.f32 %v1327, 1.442695
    %v1329 = vpow.pop %v1328
    %v1330 = vadd.f32 %v1329, 1.0
    %v1331 = vrcp.pop %v1330
    %v1332 = vmul.f32 1.0, %v1331
    %1335 = vrot.lane.b32.xlu0 %v1320, 32
    %v1336 = vpop.permute.xlu0 %1335
    %1337 = vrot.lane.b32.xlu0 %v1322, 32
    %v1338 = vpop.permute.xlu0 %1337
    %v1339 = vsel %vm83, %v1336, %v1338
    %v1341 = vadd.f32 %v1325, %v1339
    %v1342 = vxor.u32 %v1341, 2147483648
    %v1343 = vmul.f32 %v1342, 1.442695
    %v1344 = vpow.pop %v1343
    %v1345 = vadd.f32 %v1344, 1.0
    %v1346 = vrcp.pop %v1345
    %v1347 = vmul.f32 1.0, %v1346
    %1348 = vrot.lane.b32.xlu0 %v1320, 64
    %v1349 = vpop.permute.xlu0 %1348
    %v1351 = vmul.f32 %v1332, %v1349
    %1353 = vrot.lane.b32.xlu0 %v1351, 64
    %v1354 = vpop.permute.xlu0 %1353
    %v1356 = vadd.f32 %v1324, %v1354
    %v1357 = vtanh.pop %v1356
    %1358 = vrot.lane.b32.xlu0 %v1322, 96
    %v1359 = vpop.permute.xlu0 %1358
    %v1361 = vmul.f32 %v1347, %v1359
    %1363 = vrot.lane.b32.xlu0 %v1361, 64
    %v1364 = vpop.permute.xlu0 %1363
    %v1366 = vadd.f32 %v1325, %v1364
    %v1367 = vtanh.pop %v1366
    %1369 = vrot.lane.b32.xlu0 %v1357, 64
    %v1370 = vpop.permute.xlu0 %1369
    %v1372 = vsub.f32 %v1247, %v1370
    %1374 = vrot.lane.b32.xlu0 %v1372, 32
    %v1375 = vpop.permute.xlu0 %1374
    %v1377 = vmul.f32 %v1332, %v1375
    %1379 = vrot.lane.b32.xlu0 %v1377, 32
    %v1380 = vpop.permute.xlu0 %1379
    %v1382 = vadd.f32 %v1357, %v1380
    %1384 = vrot.lane.b32.xlu0 %v1367, 96
    %v1385 = vpop.permute.xlu0 %1384
    %v1387 = vsub.f32 %v1247, %v1385
    %v1388 = vmul.f32 %v1347, %v1387
    %1390 = vrot.lane.b32.xlu0 %v1388, 32
    %v1391 = vpop.permute.xlu0 %1390
    %v1393 = vadd.f32 %v1367, %v1391
    %v1394 = vstv %s1248
    %vm1395 = vcmp.gt.s32.totalorder %v454, %v1394
    %v1396 = vstv %s1249
    %vm1397 = vcmp.gt.s32.totalorder %v454, %v1396
    %v1398 = vsel %vm1395, 1, 0
    %1399 = vset.pattern.permute.xlu0 0
    %1400 = vperm.xlu0 %1399, %v1398
    %v1401 = vpop.permute.xlu0 %1400
    %vm1402 = vcmp.eq.s32.totalorder %v1401, 1
    %1403 = vrot.lane.b32.xlu0 %v1247, 64
    %v1404 = vpop.permute.xlu0 %1403
    %v1406 = vsel %vm1402, %v1382, %v1404
    %v1407 = vsel %vm1397, 1, 0
    %1408 = vset.pattern.permute.xlu0 0
    %1409 = vperm.xlu0 %1408, %v1407
    %v1410 = vpop.permute.xlu0 %1409
    %vm1411 = vcmp.eq.s32.totalorder %v1410, 1
    %1412 = vrot.lane.b32.xlu0 %v1247, 32
    %v1413 = vpop.permute.xlu0 %1412
    %v1415 = vsel %vm1411, %v1393, %v1413
    %v1416 = vsel %vm1402, %v1382, 0.0
    %v1417 = vsel %vm1411, %v1393, 0.0
    %1419 = vrot.lane.b32.xlu0 %v1416, 64
    %v1420 = vpop.permute.xlu0 %1419
    %1422 = vst.msk [vmem:[%s6 + $0x20] sm:$0xff] %vm83, %v1420
    %1424 = vrot.lane.b32.xlu0 %v1417, 64
    %v1425 = vpop.permute.xlu0 %1424
    %1427 = vst.msk [vmem:[#allocation4 + $0x58] sm:$0xff] %vm83, %v1425
    %1429 = vrot.lane.b32.xlu0 %v1406, 64
    %v1430 = vpop.permute.xlu0 %1429
    %1433 = vrot.lane.b32.xlu0 %v1415, 96
    %v1434 = vpop.permute.xlu0 %1433
    %v1436 = vsel %vm83, %v1430, %v1434
    %s1437 = sadd.s32 %s480, 5
    %s1438 = ssub.s32 10, %s480
    %v1440 = vsel %vm493, %v1436, 0
    %1442 = vmatprep.subr.mxu0 %v456
    %1443 = vmatpush1.msra.mxu0 %v455
    %1444 = vmatprep.subr.mxu0 %v458
    %1445 = vmatpush1.msra.mxu0 %v457
    %1446 = vmatprep.subr.mxu0 %v460
    %1447 = vmatpush1.msra.mxu0 %v459
    %1448 = vmatprep.subr.mxu0 %v462
    %1449 = vmatpush1.msra.mxu0 %v461
    %1450 = vmatprep.subr.mxu0 %v464
    %1451 = vmatpush1.msra.mxu0 %v463
    %1452 = vmatprep.subr.mxu0 %v466
    %1453 = vmatpush1.msra.mxu0 %v465
    %1454 = vmatprep.subr.mxu0 %v468
    %1455 = vmatpush1.msra.mxu0 %v467
    %1456 = vmatprep.subr.mxu0 %v470
    %1457 = vmatpush1.msra.mxu0 %v469
    %1458 = vmatprep.subr.mxu0 0.0
    %1459 = vmatpush1.msra.mxu0 0.0
    %1460 = vmatprep.subr.mxu0 0.0
    %1461 = vmatpush1.msra.mxu0 0.0
    %1462 = vmatprep.subr.mxu0 0.0
    %1463 = vmatpush1.msra.mxu0 0.0
    %1464 = vmatprep.subr.mxu0 0.0
    %1465 = vmatpush1.msra.mxu0 0.0
    %1466 = vmatprep.subr.mxu0 0.0
    %1467 = vmatpush1.msra.mxu0 0.0
    %1468 = vmatprep.subr.mxu0 0.0
    %1469 = vmatpush1.msra.mxu0 0.0
    %1470 = vmatprep.subr.mxu0 0.0
    %1471 = vmatpush1.msra.mxu0 0.0
    %1472 = vmatprep.subr.mxu0 0.0
    %1473 = vmatpush1.msra.mxu0 0.0
    %1474 = vmatprep.subr.mxu0 0.0
    %1475 = vmatpush1.msra.mxu0 0.0
    %1476 = vmatprep.subr.mxu0 0.0
    %1477 = vmatpush1.msra.mxu0 0.0
    %1478 = vmatprep.subr.mxu0 0.0
    %1479 = vmatpush1.msra.mxu0 0.0
    %1480 = vmatprep.subr.mxu0 0.0
    %1481 = vmatpush1.msra.mxu0 0.0
    %1482 = vmatprep.subr.mxu0 0.0
    %1483 = vmatpush1.msra.mxu0 0.0
    %1484 = vmatprep.subr.mxu0 0.0
    %1485 = vmatpush1.msra.mxu0 0.0
    %1486 = vmatprep.subr.mxu0 0.0
    %1487 = vmatpush1.msra.mxu0 0.0
    %1488 = vmatprep.subr.mxu0 0.0
    %1489 = vmatpush1.msra.mxu0 0.0
    %1490 = vmatprep.subr.mxu0 0.0
    %1491 = vmatpush1.msra.mxu0 0.0
    %1492 = vmatprep.subr.mxu0 0.0
    %1493 = vmatpush1.msra.mxu0 0.0
    %1494 = vmatprep.subr.mxu0 0.0
    %1495 = vmatpush1.msra.mxu0 0.0
    %1496 = vmatprep.subr.mxu0 0.0
    %1497 = vmatpush1.msra.mxu0 0.0
    %1498 = vmatprep.subr.mxu0 0.0
    %1499 = vmatpush1.msra.mxu0 0.0
    %1500 = vmatprep.subr.mxu0 0.0
    %1501 = vmatpush1.msra.mxu0 0.0
    %1502 = vmatprep.subr.mxu0 0.0
    %1503 = vmatpush1.msra.mxu0 0.0
    %1504 = vmatprep.subr.mxu0 0.0
    %1505 = vmatpush1.msra.mxu0 0.0
    %1506 = vmatprep.mubr.f32.mxu0 0.0
    %1507 = vmatmul.mubr.f32.gmra.mrb[0].mxu0 %v1440
    %v1508 = vpop.f32.mrb[0].mxu0
    %v1509 = vadd.f32 %v486, %v1508
    %v1510 = vpop.f32.mrb[0].mxu0
    %v1511 = vadd.f32 %v490, %v1510
    %1512 = vdwg.mxu0
    %v1513 = vld [vmem:[#allocation2 + $0x28] sm:$0xff]
    %v1514 = vld [vmem:[#allocation3 + $0x50] sm:$0xff]
    %v1515 = vadd.f32 %v1513, %v1509
    %v1516 = vxor.u32 %v1515, 2147483648
    %v1517 = vmul.f32 %v1516, 1.442695
    %v1518 = vpow.pop %v1517
    %v1519 = vadd.f32 %v1518, 1.0
    %v1520 = vrcp.pop %v1519
    %v1521 = vmul.f32 1.0, %v1520
    %1524 = vrot.lane.b32.xlu0 %v1509, 32
    %v1525 = vpop.permute.xlu0 %1524
    %1526 = vrot.lane.b32.xlu0 %v1511, 32
    %v1527 = vpop.permute.xlu0 %1526
    %v1528 = vsel %vm83, %v1525, %v1527
    %v1530 = vadd.f32 %v1514, %v1528
    %v1531 = vxor.u32 %v1530, 2147483648
    %v1532 = vmul.f32 %v1531, 1.442695
    %v1533 = vpow.pop %v1532
    %v1534 = vadd.f32 %v1533, 1.0
    %v1535 = vrcp.pop %v1534
    %v1536 = vmul.f32 1.0, %v1535
    %1537 = vrot.lane.b32.xlu0 %v1509, 64
    %v1538 = vpop.permute.xlu0 %1537
    %v1540 = vmul.f32 %v1521, %v1538
    %1542 = vrot.lane.b32.xlu0 %v1540, 64
    %v1543 = vpop.permute.xlu0 %1542
    %v1545 = vadd.f32 %v1513, %v1543
    %v1546 = vtanh.pop %v1545
    %1547 = vrot.lane.b32.xlu0 %v1511, 96
    %v1548 = vpop.permute.xlu0 %1547
    %v1550 = vmul.f32 %v1536, %v1548
    %1552 = vrot.lane.b32.xlu0 %v1550, 64
    %v1553 = vpop.permute.xlu0 %1552
    %v1555 = vadd.f32 %v1514, %v1553
    %v1556 = vtanh.pop %v1555
    %1558 = vrot.lane.b32.xlu0 %v1546, 64
    %v1559 = vpop.permute.xlu0 %1558
    %v1561 = vsub.f32 %v1436, %v1559
    %1563 = vrot.lane.b32.xlu0 %v1561, 32
    %v1564 = vpop.permute.xlu0 %1563
    %v1566 = vmul.f32 %v1521, %v1564
    %1568 = vrot.lane.b32.xlu0 %v1566, 32
    %v1569 = vpop.permute.xlu0 %1568
    %v1571 = vadd.f32 %v1546, %v1569
    %1573 = vrot.lane.b32.xlu0 %v1556, 96
    %v1574 = vpop.permute.xlu0 %1573
    %v1576 = vsub.f32 %v1436, %v1574
    %v1577 = vmul.f32 %v1536, %v1576
    %1579 = vrot.lane.b32.xlu0 %v1577, 32
    %v1580 = vpop.permute.xlu0 %1579
    %v1582 = vadd.f32 %v1556, %v1580
    %v1583 = vstv %s1437
    %vm1584 = vcmp.gt.s32.totalorder %v454, %v1583
    %v1585 = vstv %s1438
    %vm1586 = vcmp.gt.s32.totalorder %v454, %v1585
    %v1587 = vsel %vm1584, 1, 0
    %1588 = vset.pattern.permute.xlu0 0
    %1589 = vperm.xlu0 %1588, %v1587
    %v1590 = vpop.permute.xlu0 %1589
    %vm1591 = vcmp.eq.s32.totalorder %v1590, 1
    %1592 = vrot.lane.b32.xlu0 %v1436, 64
    %v1593 = vpop.permute.xlu0 %1592
    %v1595 = vsel %vm1591, %v1571, %v1593
    %v1596 = vsel %vm1586, 1, 0
    %1597 = vset.pattern.permute.xlu0 0
    %1598 = vperm.xlu0 %1597, %v1596
    %v1599 = vpop.permute.xlu0 %1598
    %vm1600 = vcmp.eq.s32.totalorder %v1599, 1
    %1601 = vrot.lane.b32.xlu0 %v1436, 32
    %v1602 = vpop.permute.xlu0 %1601
    %v1604 = vsel %vm1600, %v1582, %v1602
    %v1605 = vsel %vm1591, %v1571, 0.0
    %v1606 = vsel %vm1600, %v1582, 0.0
    %1608 = vrot.lane.b32.xlu0 %v1605, 64
    %v1609 = vpop.permute.xlu0 %1608
    %1611 = vst.msk [vmem:[%s6 + $0x28] sm:$0xff] %vm83, %v1609
    %1613 = vrot.lane.b32.xlu0 %v1606, 64
    %v1614 = vpop.permute.xlu0 %1613
    %1616 = vst.msk [vmem:[#allocation4 + $0x50] sm:$0xff] %vm83, %v1614
    %1618 = vrot.lane.b32.xlu0 %v1595, 64
    %v1619 = vpop.permute.xlu0 %1618
    %1622 = vrot.lane.b32.xlu0 %v1604, 96
    %v1623 = vpop.permute.xlu0 %1622
    %v1625 = vsel %vm83, %v1619, %v1623
    %s1626 = sadd.s32 %s480, 6
    %s1627 = ssub.s32 9, %s480
    %v1629 = vsel %vm493, %v1625, 0
    %1631 = vmatprep.subr.mxu0 %v456
    %1632 = vmatpush1.msra.mxu0 %v455
    %1633 = vmatprep.subr.mxu0 %v458
    %1634 = vmatpush1.msra.mxu0 %v457
    %1635 = vmatprep.subr.mxu0 %v460
    %1636 = vmatpush1.msra.mxu0 %v459
    %1637 = vmatprep.subr.mxu0 %v462
    %1638 = vmatpush1.msra.mxu0 %v461
    %1639 = vmatprep.subr.mxu0 %v464
    %1640 = vmatpush1.msra.mxu0 %v463
    %1641 = vmatprep.subr.mxu0 %v466
    %1642 = vmatpush1.msra.mxu0 %v465
    %1643 = vmatprep.subr.mxu0 %v468
    %1644 = vmatpush1.msra.mxu0 %v467
    %1645 = vmatprep.subr.mxu0 %v470
    %1646 = vmatpush1.msra.mxu0 %v469
    %1647 = vmatprep.subr.mxu0 0.0
    %1648 = vmatpush1.msra.mxu0 0.0
    %1649 = vmatprep.subr.mxu0 0.0
    %1650 = vmatpush1.msra.mxu0 0.0
    %1651 = vmatprep.subr.mxu0 0.0
    %1652 = vmatpush1.msra.mxu0 0.0
    %1653 = vmatprep.subr.mxu0 0.0
    %1654 = vmatpush1.msra.mxu0 0.0
    %1655 = vmatprep.subr.mxu0 0.0
    %1656 = vmatpush1.msra.mxu0 0.0
    %1657 = vmatprep.subr.mxu0 0.0
    %1658 = vmatpush1.msra.mxu0 0.0
    %1659 = vmatprep.subr.mxu0 0.0
    %1660 = vmatpush1.msra.mxu0 0.0
    %1661 = vmatprep.subr.mxu0 0.0
    %1662 = vmatpush1.msra.mxu0 0.0
    %1663 = vmatprep.subr.mxu0 0.0
    %1664 = vmatpush1.msra.mxu0 0.0
    %1665 = vmatprep.subr.mxu0 0.0
    %1666 = vmatpush1.msra.mxu0 0.0
    %1667 = vmatprep.subr.mxu0 0.0
    %1668 = vmatpush1.msra.mxu0 0.0
    %1669 = vmatprep.subr.mxu0 0.0
    %1670 = vmatpush1.msra.mxu0 0.0
    %1671 = vmatprep.subr.mxu0 0.0
    %1672 = vmatpush1.msra.mxu0 0.0
    %1673 = vmatprep.subr.mxu0 0.0
    %1674 = vmatpush1.msra.mxu0 0.0
    %1675 = vmatprep.subr.mxu0 0.0
    %1676 = vmatpush1.msra.mxu0 0.0
    %1677 = vmatprep.subr.mxu0 0.0
    %1678 = vmatpush1.msra.mxu0 0.0
    %1679 = vmatprep.subr.mxu0 0.0
    %1680 = vmatpush1.msra.mxu0 0.0
    %1681 = vmatprep.subr.mxu0 0.0
    %1682 = vmatpush1.msra.mxu0 0.0
    %1683 = vmatprep.subr.mxu0 0.0
    %1684 = vmatpush1.msra.mxu0 0.0
    %1685 = vmatprep.subr.mxu0 0.0
    %1686 = vmatpush1.msra.mxu0 0.0
    %1687 = vmatprep.subr.mxu0 0.0
    %1688 = vmatpush1.msra.mxu0 0.0
    %1689 = vmatprep.subr.mxu0 0.0
    %1690 = vmatpush1.msra.mxu0 0.0
    %1691 = vmatprep.subr.mxu0 0.0
    %1692 = vmatpush1.msra.mxu0 0.0
    %1693 = vmatprep.subr.mxu0 0.0
    %1694 = vmatpush1.msra.mxu0 0.0
    %1695 = vmatprep.mubr.f32.mxu0 0.0
    %1696 = vmatmul.mubr.f32.gmra.mrb[0].mxu0 %v1629
    %v1697 = vpop.f32.mrb[0].mxu0
    %v1698 = vadd.f32 %v486, %v1697
    %v1699 = vpop.f32.mrb[0].mxu0
    %v1700 = vadd.f32 %v490, %v1699
    %1701 = vdwg.mxu0
    %v1702 = vld [vmem:[#allocation2 + $0x30] sm:$0xff]
    %v1703 = vld [vmem:[#allocation3 + $0x48] sm:$0xff]
    %v1704 = vadd.f32 %v1702, %v1698
    %v1705 = vxor.u32 %v1704, 2147483648
    %v1706 = vmul.f32 %v1705, 1.442695
    %v1707 = vpow.pop %v1706
    %v1708 = vadd.f32 %v1707, 1.0
    %v1709 = vrcp.pop %v1708
    %v1710 = vmul.f32 1.0, %v1709
    %1713 = vrot.lane.b32.xlu0 %v1698, 32
    %v1714 = vpop.permute.xlu0 %1713
    %1715 = vrot.lane.b32.xlu0 %v1700, 32
    %v1716 = vpop.permute.xlu0 %1715
    %v1717 = vsel %vm83, %v1714, %v1716
    %v1719 = vadd.f32 %v1703, %v1717
    %v1720 = vxor.u32 %v1719, 2147483648
    %v1721 = vmul.f32 %v1720, 1.442695
    %v1722 = vpow.pop %v1721
    %v1723 = vadd.f32 %v1722, 1.0
    %v1724 = vrcp.pop %v1723
    %v1725 = vmul.f32 1.0, %v1724
    %1726 = vrot.lane.b32.xlu0 %v1698, 64
    %v1727 = vpop.permute.xlu0 %1726
    %v1729 = vmul.f32 %v1710, %v1727
    %1731 = vrot.lane.b32.xlu0 %v1729, 64
    %v1732 = vpop.permute.xlu0 %1731
    %v1734 = vadd.f32 %v1702, %v1732
    %v1735 = vtanh.pop %v1734
    %1736 = vrot.lane.b32.xlu0 %v1700, 96
    %v1737 = vpop.permute.xlu0 %1736
    %v1739 = vmul.f32 %v1725, %v1737
    %1741 = vrot.lane.b32.xlu0 %v1739, 64
    %v1742 = vpop.permute.xlu0 %1741
    %v1744 = vadd.f32 %v1703, %v1742
    %v1745 = vtanh.pop %v1744
    %1747 = vrot.lane.b32.xlu0 %v1735, 64
    %v1748 = vpop.permute.xlu0 %1747
    %v1750 = vsub.f32 %v1625, %v1748
    %1752 = vrot.lane.b32.xlu0 %v1750, 32
    %v1753 = vpop.permute.xlu0 %1752
    %v1755 = vmul.f32 %v1710, %v1753
    %1757 = vrot.lane.b32.xlu0 %v1755, 32
    %v1758 = vpop.permute.xlu0 %1757
    %v1760 = vadd.f32 %v1735, %v1758
    %1762 = vrot.lane.b32.xlu0 %v1745, 96
    %v1763 = vpop.permute.xlu0 %1762
    %v1765 = vsub.f32 %v1625, %v1763
    %v1766 = vmul.f32 %v1725, %v1765
    %1768 = vrot.lane.b32.xlu0 %v1766, 32
    %v1769 = vpop.permute.xlu0 %1768
    %v1771 = vadd.f32 %v1745, %v1769
    %v1772 = vstv %s1626
    %vm1773 = vcmp.gt.s32.totalorder %v454, %v1772
    %v1774 = vstv %s1627
    %vm1775 = vcmp.gt.s32.totalorder %v454, %v1774
    %v1776 = vsel %vm1773, 1, 0
    %1777 = vset.pattern.permute.xlu0 0
    %1778 = vperm.xlu0 %1777, %v1776
    %v1779 = vpop.permute.xlu0 %1778
    %vm1780 = vcmp.eq.s32.totalorder %v1779, 1
    %1781 = vrot.lane.b32.xlu0 %v1625, 64
    %v1782 = vpop.permute.xlu0 %1781
    %v1784 = vsel %vm1780, %v1760, %v1782
    %v1785 = vsel %vm1775, 1, 0
    %1786 = vset.pattern.permute.xlu0 0
    %1787 = vperm.xlu0 %1786, %v1785
    %v1788 = vpop.permute.xlu0 %1787
    %vm1789 = vcmp.eq.s32.totalorder %v1788, 1
    %1790 = vrot.lane.b32.xlu0 %v1625, 32
    %v1791 = vpop.permute.xlu0 %1790
    %v1793 = vsel %vm1789, %v1771, %v1791
    %v1794 = vsel %vm1780, %v1760, 0.0
    %v1795 = vsel %vm1789, %v1771, 0.0
    %1797 = vrot.lane.b32.xlu0 %v1794, 64
    %v1798 = vpop.permute.xlu0 %1797
    %1800 = vst.msk [vmem:[%s6 + $0x30] sm:$0xff] %vm83, %v1798
    %1802 = vrot.lane.b32.xlu0 %v1795, 64
    %v1803 = vpop.permute.xlu0 %1802
    %1805 = vst.msk [vmem:[#allocation4 + $0x48] sm:$0xff] %vm83, %v1803
    %1807 = vrot.lane.b32.xlu0 %v1784, 64
    %v1808 = vpop.permute.xlu0 %1807
    %1811 = vrot.lane.b32.xlu0 %v1793, 96
    %v1812 = vpop.permute.xlu0 %1811
    %v1814 = vsel %vm83, %v1808, %v1812
    %s1815 = sadd.s32 %s480, 7
    %s1816 = ssub.s32 8, %s480
    %v1818 = vsel %vm493, %v1814, 0
    %1820 = vmatprep.subr.mxu0 %v456
    %1821 = vmatpush1.msra.mxu0 %v455
    %1822 = vmatprep.subr.mxu0 %v458
    %1823 = vmatpush1.msra.mxu0 %v457
    %1824 = vmatprep.subr.mxu0 %v460
    %1825 = vmatpush1.msra.mxu0 %v459
    %1826 = vmatprep.subr.mxu0 %v462
    %1827 = vmatpush1.msra.mxu0 %v461
    %1828 = vmatprep.subr.mxu0 %v464
    %1829 = vmatpush1.msra.mxu0 %v463
    %1830 = vmatprep.subr.mxu0 %v466
    %1831 = vmatpush1.msra.mxu0 %v465
    %1832 = vmatprep.subr.mxu0 %v468
    %1833 = vmatpush1.msra.mxu0 %v467
    %1834 = vmatprep.subr.mxu0 %v470
    %1835 = vmatpush1.msra.mxu0 %v469
    %1836 = vmatprep.subr.mxu0 0.0
    %1837 = vmatpush1.msra.mxu0 0.0
    %1838 = vmatprep.subr.mxu0 0.0
    %1839 = vmatpush1.msra.mxu0 0.0
    %1840 = vmatprep.subr.mxu0 0.0
    %1841 = vmatpush1.msra.mxu0 0.0
    %1842 = vmatprep.subr.mxu0 0.0
    %1843 = vmatpush1.msra.mxu0 0.0
    %1844 = vmatprep.subr.mxu0 0.0
    %1845 = vmatpush1.msra.mxu0 0.0
    %1846 = vmatprep.subr.mxu0 0.0
    %1847 = vmatpush1.msra.mxu0 0.0
    %1848 = vmatprep.subr.mxu0 0.0
    %1849 = vmatpush1.msra.mxu0 0.0
    %1850 = vmatprep.subr.mxu0 0.0
    %1851 = vmatpush1.msra.mxu0 0.0
    %1852 = vmatprep.subr.mxu0 0.0
    %1853 = vmatpush1.msra.mxu0 0.0
    %1854 = vmatprep.subr.mxu0 0.0
    %1855 = vmatpush1.msra.mxu0 0.0
    %1856 = vmatprep.subr.mxu0 0.0
    %1857 = vmatpush1.msra.mxu0 0.0
    %1858 = vmatprep.subr.mxu0 0.0
    %1859 = vmatpush1.msra.mxu0 0.0
    %1860 = vmatprep.subr.mxu0 0.0
    %1861 = vmatpush1.msra.mxu0 0.0
    %1862 = vmatprep.subr.mxu0 0.0
    %1863 = vmatpush1.msra.mxu0 0.0
    %1864 = vmatprep.subr.mxu0 0.0
    %1865 = vmatpush1.msra.mxu0 0.0
    %1866 = vmatprep.subr.mxu0 0.0
    %1867 = vmatpush1.msra.mxu0 0.0
    %1868 = vmatprep.subr.mxu0 0.0
    %1869 = vmatpush1.msra.mxu0 0.0
    %1870 = vmatprep.subr.mxu0 0.0
    %1871 = vmatpush1.msra.mxu0 0.0
    %1872 = vmatprep.subr.mxu0 0.0
    %1873 = vmatpush1.msra.mxu0 0.0
    %1874 = vmatprep.subr.mxu0 0.0
    %1875 = vmatpush1.msra.mxu0 0.0
    %1876 = vmatprep.subr.mxu0 0.0
    %1877 = vmatpush1.msra.mxu0 0.0
    %1878 = vmatprep.subr.mxu0 0.0
    %1879 = vmatpush1.msra.mxu0 0.0
    %1880 = vmatprep.subr.mxu0 0.0
    %1881 = vmatpush1.msra.mxu0 0.0
    %1882 = vmatprep.subr.mxu0 0.0
    %1883 = vmatpush1.msra.mxu0 0.0
    %1884 = vmatprep.mubr.f32.mxu0 0.0
    %1885 = vmatmul.mubr.f32.gmra.mrb[0].mxu0 %v1818
    %v1886 = vpop.f32.mrb[0].mxu0
    %v1887 = vadd.f32 %v486, %v1886
    %v1888 = vpop.f32.mrb[0].mxu0
    %v1889 = vadd.f32 %v490, %v1888
    %1890 = vdwg.mxu0
    %v1891 = vld [vmem:[#allocation2 + $0x38] sm:$0xff]
    %v1892 = vld [vmem:[#allocation3 + $0x40] sm:$0xff]
    %v1893 = vadd.f32 %v1891, %v1887
    %v1894 = vxor.u32 %v1893, 2147483648
    %v1895 = vmul.f32 %v1894, 1.442695
    %v1896 = vpow.pop %v1895
    %v1897 = vadd.f32 %v1896, 1.0
    %v1898 = vrcp.pop %v1897
    %v1899 = vmul.f32 1.0, %v1898
    %1902 = vrot.lane.b32.xlu0 %v1887, 32
    %v1903 = vpop.permute.xlu0 %1902
    %1904 = vrot.lane.b32.xlu0 %v1889, 32
    %v1905 = vpop.permute.xlu0 %1904
    %v1906 = vsel %vm83, %v1903, %v1905
    %v1908 = vadd.f32 %v1892, %v1906
    %v1909 = vxor.u32 %v1908, 2147483648
    %v1910 = vmul.f32 %v1909, 1.442695
    %v1911 = vpow.pop %v1910
    %v1912 = vadd.f32 %v1911, 1.0
    %v1913 = vrcp.pop %v1912
    %v1914 = vmul.f32 1.0, %v1913
    %1915 = vrot.lane.b32.xlu0 %v1887, 64
    %v1916 = vpop.permute.xlu0 %1915
    %v1918 = vmul.f32 %v1899, %v1916
    %1920 = vrot.lane.b32.xlu0 %v1918, 64
    %v1921 = vpop.permute.xlu0 %1920
    %v1923 = vadd.f32 %v1891, %v1921
    %v1924 = vtanh.pop %v1923
    %1925 = vrot.lane.b32.xlu0 %v1889, 96
    %v1926 = vpop.permute.xlu0 %1925
    %v1928 = vmul.f32 %v1914, %v1926
    %1930 = vrot.lane.b32.xlu0 %v1928, 64
    %v1931 = vpop.permute.xlu0 %1930
    %v1933 = vadd.f32 %v1892, %v1931
    %v1934 = vtanh.pop %v1933
    %1936 = vrot.lane.b32.xlu0 %v1924, 64
    %v1937 = vpop.permute.xlu0 %1936
    %v1939 = vsub.f32 %v1814, %v1937
    %1941 = vrot.lane.b32.xlu0 %v1939, 32
    %v1942 = vpop.permute.xlu0 %1941
    %v1944 = vmul.f32 %v1899, %v1942
    %1946 = vrot.lane.b32.xlu0 %v1944, 32
    %v1947 = vpop.permute.xlu0 %1946
    %v1949 = vadd.f32 %v1924, %v1947
    %1951 = vrot.lane.b32.xlu0 %v1934, 96
    %v1952 = vpop.permute.xlu0 %1951
    %v1954 = vsub.f32 %v1814, %v1952
    %v1955 = vmul.f32 %v1914, %v1954
    %1957 = vrot.lane.b32.xlu0 %v1955, 32
    %v1958 = vpop.permute.xlu0 %1957
    %v1960 = vadd.f32 %v1934, %v1958
    %v1961 = vstv %s1815
    %vm1962 = vcmp.gt.s32.totalorder %v454, %v1961
    %v1963 = vstv %s1816
    %vm1964 = vcmp.gt.s32.totalorder %v454, %v1963
    %v1965 = vsel %vm1962, 1, 0
    %1966 = vset.pattern.permute.xlu0 0
    %1967 = vperm.xlu0 %1966, %v1965
    %v1968 = vpop.permute.xlu0 %1967
    %vm1969 = vcmp.eq.s32.totalorder %v1968, 1
    %1970 = vrot.lane.b32.xlu0 %v1814, 64
    %v1971 = vpop.permute.xlu0 %1970
    %v1973 = vsel %vm1969, %v1949, %v1971
    %v1974 = vsel %vm1964, 1, 0
    %1975 = vset.pattern.permute.xlu0 0
    %1976 = vperm.xlu0 %1975, %v1974
    %v1977 = vpop.permute.xlu0 %1976
    %vm1978 = vcmp.eq.s32.totalorder %v1977, 1
    %1979 = vrot.lane.b32.xlu0 %v1814, 32
    %v1980 = vpop.permute.xlu0 %1979
    %v1982 = vsel %vm1978, %v1960, %v1980
    %v1983 = vsel %vm1969, %v1949, 0.0
    %v1984 = vsel %vm1978, %v1960, 0.0
    %1986 = vrot.lane.b32.xlu0 %v1983, 64
    %v1987 = vpop.permute.xlu0 %1986
    %1989 = vst.msk [vmem:[%s6 + $0x38] sm:$0xff] %vm83, %v1987
    %1991 = vrot.lane.b32.xlu0 %v1984, 64
    %v1992 = vpop.permute.xlu0 %1991
    %1994 = vst.msk [vmem:[#allocation4 + $0x40] sm:$0xff] %vm83, %v1992
    %1996 = vrot.lane.b32.xlu0 %v1973, 64
    %v1997 = vpop.permute.xlu0 %1996
    %2000 = vrot.lane.b32.xlu0 %v1982, 96
    %v2001 = vpop.permute.xlu0 %2000
    %v2003 = vsel %vm83, %v1997, %v2001
    %s2004 = sadd.s32 %s480, 8
    %s2005 = ssub.s32 7, %s480
    %v2007 = vsel %vm493, %v2003, 0
    %2009 = vmatprep.subr.mxu0 %v456
    %2010 = vmatpush1.msra.mxu0 %v455
    %2011 = vmatprep.subr.mxu0 %v458
    %2012 = vmatpush1.msra.mxu0 %v457
    %2013 = vmatprep.subr.mxu0 %v460
    %2014 = vmatpush1.msra.mxu0 %v459
    %2015 = vmatprep.subr.mxu0 %v462
    %2016 = vmatpush1.msra.mxu0 %v461
    %2017 = vmatprep.subr.mxu0 %v464
    %2018 = vmatpush1.msra.mxu0 %v463
    %2019 = vmatprep.subr.mxu0 %v466
    %2020 = vmatpush1.msra.mxu0 %v465
    %2021 = vmatprep.subr.mxu0 %v468
    %2022 = vmatpush1.msra.mxu0 %v467
    %2023 = vmatprep.subr.mxu0 %v470
    %2024 = vmatpush1.msra.mxu0 %v469
    %2025 = vmatprep.subr.mxu0 0.0
    %2026 = vmatpush1.msra.mxu0 0.0
    %2027 = vmatprep.subr.mxu0 0.0
    %2028 = vmatpush1.msra.mxu0 0.0
    %2029 = vmatprep.subr.mxu0 0.0
    %2030 = vmatpush1.msra.mxu0 0.0
    %2031 = vmatprep.subr.mxu0 0.0
    %2032 = vmatpush1.msra.mxu0 0.0
    %2033 = vmatprep.subr.mxu0 0.0
    %2034 = vmatpush1.msra.mxu0 0.0
    %2035 = vmatprep.subr.mxu0 0.0
    %2036 = vmatpush1.msra.mxu0 0.0
    %2037 = vmatprep.subr.mxu0 0.0
    %2038 = vmatpush1.msra.mxu0 0.0
    %2039 = vmatprep.subr.mxu0 0.0
    %2040 = vmatpush1.msra.mxu0 0.0
    %2041 = vmatprep.subr.mxu0 0.0
    %2042 = vmatpush1.msra.mxu0 0.0
    %2043 = vmatprep.subr.mxu0 0.0
    %2044 = vmatpush1.msra.mxu0 0.0
    %2045 = vmatprep.subr.mxu0 0.0
    %2046 = vmatpush1.msra.mxu0 0.0
    %2047 = vmatprep.subr.mxu0 0.0
    %2048 = vmatpush1.msra.mxu0 0.0
    %2049 = vmatprep.subr.mxu0 0.0
    %2050 = vmatpush1.msra.mxu0 0.0
    %2051 = vmatprep.subr.mxu0 0.0
    %2052 = vmatpush1.msra.mxu0 0.0
    %2053 = vmatprep.subr.mxu0 0.0
    %2054 = vmatpush1.msra.mxu0 0.0
    %2055 = vmatprep.subr.mxu0 0.0
    %2056 = vmatpush1.msra.mxu0 0.0
    %2057 = vmatprep.subr.mxu0 0.0
    %2058 = vmatpush1.msra.mxu0 0.0
    %2059 = vmatprep.subr.mxu0 0.0
    %2060 = vmatpush1.msra.mxu0 0.0
    %2061 = vmatprep.subr.mxu0 0.0
    %2062 = vmatpush1.msra.mxu0 0.0
    %2063 = vmatprep.subr.mxu0 0.0
    %2064 = vmatpush1.msra.mxu0 0.0
    %2065 = vmatprep.subr.mxu0 0.0
    %2066 = vmatpush1.msra.mxu0 0.0
    %2067 = vmatprep.subr.mxu0 0.0
    %2068 = vmatpush1.msra.mxu0 0.0
    %2069 = vmatprep.subr.mxu0 0.0
    %2070 = vmatpush1.msra.mxu0 0.0
    %2071 = vmatprep.subr.mxu0 0.0
    %2072 = vmatpush1.msra.mxu0 0.0
    %2073 = vmatprep.mubr.f32.mxu0 0.0
    %2074 = vmatmul.mubr.f32.gmra.mrb[0].mxu0 %v2007
    %v2075 = vpop.f32.mrb[0].mxu0
    %v2076 = vadd.f32 %v486, %v2075
    %v2077 = vpop.f32.mrb[0].mxu0
    %v2078 = vadd.f32 %v490, %v2077
    %2079 = vdwg.mxu0
    %v2080 = vld [vmem:[#allocation2 + $0x40] sm:$0xff]
    %v2081 = vld [vmem:[#allocation3 + $0x38] sm:$0xff]
    %v2082 = vadd.f32 %v2080, %v2076
    %v2083 = vxor.u32 %v2082, 2147483648
    %v2084 = vmul.f32 %v2083, 1.442695
    %v2085 = vpow.pop %v2084
    %v2086 = vadd.f32 %v2085, 1.0
    %v2087 = vrcp.pop %v2086
    %v2088 = vmul.f32 1.0, %v2087
    %2091 = vrot.lane.b32.xlu0 %v2076, 32
    %v2092 = vpop.permute.xlu0 %2091
    %2093 = vrot.lane.b32.xlu0 %v2078, 32
    %v2094 = vpop.permute.xlu0 %2093
    %v2095 = vsel %vm83, %v2092, %v2094
    %v2097 = vadd.f32 %v2081, %v2095
    %v2098 = vxor.u32 %v2097, 2147483648
    %v2099 = vmul.f32 %v2098, 1.442695
    %v2100 = vpow.pop %v2099
    %v2101 = vadd.f32 %v2100, 1.0
    %v2102 = vrcp.pop %v2101
    %v2103 = vmul.f32 1.0, %v2102
    %2104 = vrot.lane.b32.xlu0 %v2076, 64
    %v2105 = vpop.permute.xlu0 %2104
    %v2107 = vmul.f32 %v2088, %v2105
    %2109 = vrot.lane.b32.xlu0 %v2107, 64
    %v2110 = vpop.permute.xlu0 %2109
    %v2112 = vadd.f32 %v2080, %v2110
    %v2113 = vtanh.pop %v2112
    %2114 = vrot.lane.b32.xlu0 %v2078, 96
    %v2115 = vpop.permute.xlu0 %2114
    %v2117 = vmul.f32 %v2103, %v2115
    %2119 = vrot.lane.b32.xlu0 %v2117, 64
    %v2120 = vpop.permute.xlu0 %2119
    %v2122 = vadd.f32 %v2081, %v2120
    %v2123 = vtanh.pop %v2122
    %2125 = vrot.lane.b32.xlu0 %v2113, 64
    %v2126 = vpop.permute.xlu0 %2125
    %v2128 = vsub.f32 %v2003, %v2126
    %2130 = vrot.lane.b32.xlu0 %v2128, 32
    %v2131 = vpop.permute.xlu0 %2130
    %v2133 = vmul.f32 %v2088, %v2131
    %2135 = vrot.lane.b32.xlu0 %v2133, 32
    %v2136 = vpop.permute.xlu0 %2135
    %v2138 = vadd.f32 %v2113, %v2136
    %2140 = vrot.lane.b32.xlu0 %v2123, 96
    %v2141 = vpop.permute.xlu0 %2140
    %v2143 = vsub.f32 %v2003, %v2141
    %v2144 = vmul.f32 %v2103, %v2143
    %2146 = vrot.lane.b32.xlu0 %v2144, 32
    %v2147 = vpop.permute.xlu0 %2146
    %v2149 = vadd.f32 %v2123, %v2147
    %v2150 = vstv %s2004
    %vm2151 = vcmp.gt.s32.totalorder %v454, %v2150
    %v2152 = vstv %s2005
    %vm2153 = vcmp.gt.s32.totalorder %v454, %v2152
    %v2154 = vsel %vm2151, 1, 0
    %2155 = vset.pattern.permute.xlu0 0
    %2156 = vperm.xlu0 %2155, %v2154
    %v2157 = vpop.permute.xlu0 %2156
    %vm2158 = vcmp.eq.s32.totalorder %v2157, 1
    %2159 = vrot.lane.b32.xlu0 %v2003, 64
    %v2160 = vpop.permute.xlu0 %2159
    %v2162 = vsel %vm2158, %v2138, %v2160
    %v2163 = vsel %vm2153, 1, 0
    %2164 = vset.pattern.permute.xlu0 0
    %2165 = vperm.xlu0 %2164, %v2163
    %v2166 = vpop.permute.xlu0 %2165
    %vm2167 = vcmp.eq.s32.totalorder %v2166, 1
    %2168 = vrot.lane.b32.xlu0 %v2003, 32
    %v2169 = vpop.permute.xlu0 %2168
    %v2171 = vsel %vm2167, %v2149, %v2169
    %v2172 = vsel %vm2158, %v2138, 0.0
    %v2173 = vsel %vm2167, %v2149, 0.0
    %2175 = vrot.lane.b32.xlu0 %v2172, 64
    %v2176 = vpop.permute.xlu0 %2175
    %2178 = vst.msk [vmem:[%s6 + $0x40] sm:$0xff] %vm83, %v2176
    %2180 = vrot.lane.b32.xlu0 %v2173, 64
    %v2181 = vpop.permute.xlu0 %2180
    %2183 = vst.msk [vmem:[#allocation4 + $0x38] sm:$0xff] %vm83, %v2181
    %2185 = vrot.lane.b32.xlu0 %v2162, 64
    %v2186 = vpop.permute.xlu0 %2185
    %2189 = vrot.lane.b32.xlu0 %v2171, 96
    %v2190 = vpop.permute.xlu0 %2189
    %v2192 = vsel %vm83, %v2186, %v2190
    %s2193 = sadd.s32 %s480, 9
    %s2194 = ssub.s32 6, %s480
    %v2196 = vsel %vm493, %v2192, 0
    %2198 = vmatprep.subr.mxu0 %v456
    %2199 = vmatpush1.msra.mxu0 %v455
    %2200 = vmatprep.subr.mxu0 %v458
    %2201 = vmatpush1.msra.mxu0 %v457
    %2202 = vmatprep.subr.mxu0 %v460
    %2203 = vmatpush1.msra.mxu0 %v459
    %2204 = vmatprep.subr.mxu0 %v462
    %2205 = vmatpush1.msra.mxu0 %v461
    %2206 = vmatprep.subr.mxu0 %v464
    %2207 = vmatpush1.msra.mxu0 %v463
    %2208 = vmatprep.subr.mxu0 %v466
    %2209 = vmatpush1.msra.mxu0 %v465
    %2210 = vmatprep.subr.mxu0 %v468
    %2211 = vmatpush1.msra.mxu0 %v467
    %2212 = vmatprep.subr.mxu0 %v470
    %2213 = vmatpush1.msra.mxu0 %v469
    %2214 = vmatprep.subr.mxu0 0.0
    %2215 = vmatpush1.msra.mxu0 0.0
    %2216 = vmatprep.subr.mxu0 0.0
    %2217 = vmatpush1.msra.mxu0 0.0
    %2218 = vmatprep.subr.mxu0 0.0
    %2219 = vmatpush1.msra.mxu0 0.0
    %2220 = vmatprep.subr.mxu0 0.0
    %2221 = vmatpush1.msra.mxu0 0.0
    %2222 = vmatprep.subr.mxu0 0.0
    %2223 = vmatpush1.msra.mxu0 0.0
    %2224 = vmatprep.subr.mxu0 0.0
    %2225 = vmatpush1.msra.mxu0 0.0
    %2226 = vmatprep.subr.mxu0 0.0
    %2227 = vmatpush1.msra.mxu0 0.0
    %2228 = vmatprep.subr.mxu0 0.0
    %2229 = vmatpush1.msra.mxu0 0.0
    %2230 = vmatprep.subr.mxu0 0.0
    %2231 = vmatpush1.msra.mxu0 0.0
    %2232 = vmatprep.subr.mxu0 0.0
    %2233 = vmatpush1.msra.mxu0 0.0
    %2234 = vmatprep.subr.mxu0 0.0
    %2235 = vmatpush1.msra.mxu0 0.0
    %2236 = vmatprep.subr.mxu0 0.0
    %2237 = vmatpush1.msra.mxu0 0.0
    %2238 = vmatprep.subr.mxu0 0.0
    %2239 = vmatpush1.msra.mxu0 0.0
    %2240 = vmatprep.subr.mxu0 0.0
    %2241 = vmatpush1.msra.mxu0 0.0
    %2242 = vmatprep.subr.mxu0 0.0
    %2243 = vmatpush1.msra.mxu0 0.0
    %2244 = vmatprep.subr.mxu0 0.0
    %2245 = vmatpush1.msra.mxu0 0.0
    %2246 = vmatprep.subr.mxu0 0.0
    %2247 = vmatpush1.msra.mxu0 0.0
    %2248 = vmatprep.subr.mxu0 0.0
    %2249 = vmatpush1.msra.mxu0 0.0
    %2250 = vmatprep.subr.mxu0 0.0
    %2251 = vmatpush1.msra.mxu0 0.0
    %2252 = vmatprep.subr.mxu0 0.0
    %2253 = vmatpush1.msra.mxu0 0.0
    %2254 = vmatprep.subr.mxu0 0.0
    %2255 = vmatpush1.msra.mxu0 0.0
    %2256 = vmatprep.subr.mxu0 0.0
    %2257 = vmatpush1.msra.mxu0 0.0
    %2258 = vmatprep.subr.mxu0 0.0
    %2259 = vmatpush1.msra.mxu0 0.0
    %2260 = vmatprep.subr.mxu0 0.0
    %2261 = vmatpush1.msra.mxu0 0.0
    %2262 = vmatprep.mubr.f32.mxu0 0.0
    %2263 = vmatmul.mubr.f32.gmra.mrb[0].mxu0 %v2196
    %v2264 = vpop.f32.mrb[0].mxu0
    %v2265 = vadd.f32 %v486, %v2264
    %v2266 = vpop.f32.mrb[0].mxu0
    %v2267 = vadd.f32 %v490, %v2266
    %2268 = vdwg.mxu0
    %v2269 = vld [vmem:[#allocation2 + $0x48] sm:$0xff]
    %v2270 = vld [vmem:[#allocation3 + $0x30] sm:$0xff]
    %v2271 = vadd.f32 %v2269, %v2265
    %v2272 = vxor.u32 %v2271, 2147483648
    %v2273 = vmul.f32 %v2272, 1.442695
    %v2274 = vpow.pop %v2273
    %v2275 = vadd.f32 %v2274, 1.0
    %v2276 = vrcp.pop %v2275
    %v2277 = vmul.f32 1.0, %v2276
    %2280 = vrot.lane.b32.xlu0 %v2265, 32
    %v2281 = vpop.permute.xlu0 %2280
    %2282 = vrot.lane.b32.xlu0 %v2267, 32
    %v2283 = vpop.permute.xlu0 %2282
    %v2284 = vsel %vm83, %v2281, %v2283
    %v2286 = vadd.f32 %v2270, %v2284
    %v2287 = vxor.u32 %v2286, 2147483648
    %v2288 = vmul.f32 %v2287, 1.442695
    %v2289 = vpow.pop %v2288
    %v2290 = vadd.f32 %v2289, 1.0
    %v2291 = vrcp.pop %v2290
    %v2292 = vmul.f32 1.0, %v2291
    %2293 = vrot.lane.b32.xlu0 %v2265, 64
    %v2294 = vpop.permute.xlu0 %2293
    %v2296 = vmul.f32 %v2277, %v2294
    %2298 = vrot.lane.b32.xlu0 %v2296, 64
    %v2299 = vpop.permute.xlu0 %2298
    %v2301 = vadd.f32 %v2269, %v2299
    %v2302 = vtanh.pop %v2301
    %2303 = vrot.lane.b32.xlu0 %v2267, 96
    %v2304 = vpop.permute.xlu0 %2303
    %v2306 = vmul.f32 %v2292, %v2304
    %2308 = vrot.lane.b32.xlu0 %v2306, 64
    %v2309 = vpop.permute.xlu0 %2308
    %v2311 = vadd.f32 %v2270, %v2309
    %v2312 = vtanh.pop %v2311
    %2314 = vrot.lane.b32.xlu0 %v2302, 64
    %v2315 = vpop.permute.xlu0 %2314
    %v2317 = vsub.f32 %v2192, %v2315
    %2319 = vrot.lane.b32.xlu0 %v2317, 32
    %v2320 = vpop.permute.xlu0 %2319
    %v2322 = vmul.f32 %v2277, %v2320
    %2324 = vrot.lane.b32.xlu0 %v2322, 32
    %v2325 = vpop.permute.xlu0 %2324
    %v2327 = vadd.f32 %v2302, %v2325
    %2329 = vrot.lane.b32.xlu0 %v2312, 96
    %v2330 = vpop.permute.xlu0 %2329
    %v2332 = vsub.f32 %v2192, %v2330
    %v2333 = vmul.f32 %v2292, %v2332
    %2335 = vrot.lane.b32.xlu0 %v2333, 32
    %v2336 = vpop.permute.xlu0 %2335
    %v2338 = vadd.f32 %v2312, %v2336
    %v2339 = vstv %s2193
    %vm2340 = vcmp.gt.s32.totalorder %v454, %v2339
    %v2341 = vstv %s2194
    %vm2342 = vcmp.gt.s32.totalorder %v454, %v2341
    %v2343 = vsel %vm2340, 1, 0
    %2344 = vset.pattern.permute.xlu0 0
    %2345 = vperm.xlu0 %2344, %v2343
    %v2346 = vpop.permute.xlu0 %2345
    %vm2347 = vcmp.eq.s32.totalorder %v2346, 1
    %2348 = vrot.lane.b32.xlu0 %v2192, 64
    %v2349 = vpop.permute.xlu0 %2348
    %v2351 = vsel %vm2347, %v2327, %v2349
    %v2352 = vsel %vm2342, 1, 0
    %2353 = vset.pattern.permute.xlu0 0
    %2354 = vperm.xlu0 %2353, %v2352
    %v2355 = vpop.permute.xlu0 %2354
    %vm2356 = vcmp.eq.s32.totalorder %v2355, 1
    %2357 = vrot.lane.b32.xlu0 %v2192, 32
    %v2358 = vpop.permute.xlu0 %2357
    %v2360 = vsel %vm2356, %v2338, %v2358
    %v2361 = vsel %vm2347, %v2327, 0.0
    %v2362 = vsel %vm2356, %v2338, 0.0
    %2364 = vrot.lane.b32.xlu0 %v2361, 64
    %v2365 = vpop.permute.xlu0 %2364
    %2367 = vst.msk [vmem:[%s6 + $0x48] sm:$0xff] %vm83, %v2365
    %2369 = vrot.lane.b32.xlu0 %v2362, 64
    %v2370 = vpop.permute.xlu0 %2369
    %2372 = vst.msk [vmem:[#allocation4 + $0x30] sm:$0xff] %vm83, %v2370
    %2374 = vrot.lane.b32.xlu0 %v2351, 64
    %v2375 = vpop.permute.xlu0 %2374
    %2378 = vrot.lane.b32.xlu0 %v2360, 96
    %v2379 = vpop.permute.xlu0 %2378
    %v2381 = vsel %vm83, %v2375, %v2379
    %s2382 = sadd.s32 %s480, 10
    %s2383 = ssub.s32 5, %s480
    %v2385 = vsel %vm493, %v2381, 0
    %2387 = vmatprep.subr.mxu0 %v456
    %2388 = vmatpush1.msra.mxu0 %v455
    %2389 = vmatprep.subr.mxu0 %v458
    %2390 = vmatpush1.msra.mxu0 %v457
    %2391 = vmatprep.subr.mxu0 %v460
    %2392 = vmatpush1.msra.mxu0 %v459
    %2393 = vmatprep.subr.mxu0 %v462
    %2394 = vmatpush1.msra.mxu0 %v461
    %2395 = vmatprep.subr.mxu0 %v464
    %2396 = vmatpush1.msra.mxu0 %v463
    %2397 = vmatprep.subr.mxu0 %v466
    %2398 = vmatpush1.msra.mxu0 %v465
    %2399 = vmatprep.subr.mxu0 %v468
    %2400 = vmatpush1.msra.mxu0 %v467
    %2401 = vmatprep.subr.mxu0 %v470
    %2402 = vmatpush1.msra.mxu0 %v469
    %2403 = vmatprep.subr.mxu0 0.0
    %2404 = vmatpush1.msra.mxu0 0.0
    %2405 = vmatprep.subr.mxu0 0.0
    %2406 = vmatpush1.msra.mxu0 0.0
    %2407 = vmatprep.subr.mxu0 0.0
    %2408 = vmatpush1.msra.mxu0 0.0
    %2409 = vmatprep.subr.mxu0 0.0
    %2410 = vmatpush1.msra.mxu0 0.0
    %2411 = vmatprep.subr.mxu0 0.0
    %2412 = vmatpush1.msra.mxu0 0.0
    %2413 = vmatprep.subr.mxu0 0.0
    %2414 = vmatpush1.msra.mxu0 0.0
    %2415 = vmatprep.subr.mxu0 0.0
    %2416 = vmatpush1.msra.mxu0 0.0
    %2417 = vmatprep.subr.mxu0 0.0
    %2418 = vmatpush1.msra.mxu0 0.0
    %2419 = vmatprep.subr.mxu0 0.0
    %2420 = vmatpush1.msra.mxu0 0.0
    %2421 = vmatprep.subr.mxu0 0.0
    %2422 = vmatpush1.msra.mxu0 0.0
    %2423 = vmatprep.subr.mxu0 0.0
    %2424 = vmatpush1.msra.mxu0 0.0
    %2425 = vmatprep.subr.mxu0 0.0
    %2426 = vmatpush1.msra.mxu0 0.0
    %2427 = vmatprep.subr.mxu0 0.0
    %2428 = vmatpush1.msra.mxu0 0.0
    %2429 = vmatprep.subr.mxu0 0.0
    %2430 = vmatpush1.msra.mxu0 0.0
    %2431 = vmatprep.subr.mxu0 0.0
    %2432 = vmatpush1.msra.mxu0 0.0
    %2433 = vmatprep.subr.mxu0 0.0
    %2434 = vmatpush1.msra.mxu0 0.0
    %2435 = vmatprep.subr.mxu0 0.0
    %2436 = vmatpush1.msra.mxu0 0.0
    %2437 = vmatprep.subr.mxu0 0.0
    %2438 = vmatpush1.msra.mxu0 0.0
    %2439 = vmatprep.subr.mxu0 0.0
    %2440 = vmatpush1.msra.mxu0 0.0
    %2441 = vmatprep.subr.mxu0 0.0
    %2442 = vmatpush1.msra.mxu0 0.0
    %2443 = vmatprep.subr.mxu0 0.0
    %2444 = vmatpush1.msra.mxu0 0.0
    %2445 = vmatprep.subr.mxu0 0.0
    %2446 = vmatpush1.msra.mxu0 0.0
    %2447 = vmatprep.subr.mxu0 0.0
    %2448 = vmatpush1.msra.mxu0 0.0
    %2449 = vmatprep.subr.mxu0 0.0
    %2450 = vmatpush1.msra.mxu0 0.0
    %2451 = vmatprep.mubr.f32.mxu0 0.0
    %2452 = vmatmul.mubr.f32.gmra.mrb[0].mxu0 %v2385
    %v2453 = vpop.f32.mrb[0].mxu0
    %v2454 = vadd.f32 %v486, %v2453
    %v2455 = vpop.f32.mrb[0].mxu0
    %v2456 = vadd.f32 %v490, %v2455
    %2457 = vdwg.mxu0
    %v2458 = vld [vmem:[#allocation2 + $0x50] sm:$0xff]
    %v2459 = vld [vmem:[#allocation3 + $0x28] sm:$0xff]
    %v2460 = vadd.f32 %v2458, %v2454
    %v2461 = vxor.u32 %v2460, 2147483648
    %v2462 = vmul.f32 %v2461, 1.442695
    %v2463 = vpow.pop %v2462
    %v2464 = vadd.f32 %v2463, 1.0
    %v2465 = vrcp.pop %v2464
    %v2466 = vmul.f32 1.0, %v2465
    %2469 = vrot.lane.b32.xlu0 %v2454, 32
    %v2470 = vpop.permute.xlu0 %2469
    %2471 = vrot.lane.b32.xlu0 %v2456, 32
    %v2472 = vpop.permute.xlu0 %2471
    %v2473 = vsel %vm83, %v2470, %v2472
    %v2475 = vadd.f32 %v2459, %v2473
    %v2476 = vxor.u32 %v2475, 2147483648
    %v2477 = vmul.f32 %v2476, 1.442695
    %v2478 = vpow.pop %v2477
    %v2479 = vadd.f32 %v2478, 1.0
    %v2480 = vrcp.pop %v2479
    %v2481 = vmul.f32 1.0, %v2480
    %2482 = vrot.lane.b32.xlu0 %v2454, 64
    %v2483 = vpop.permute.xlu0 %2482
    %v2485 = vmul.f32 %v2466, %v2483
    %2487 = vrot.lane.b32.xlu0 %v2485, 64
    %v2488 = vpop.permute.xlu0 %2487
    %v2490 = vadd.f32 %v2458, %v2488
    %v2491 = vtanh.pop %v2490
    %2492 = vrot.lane.b32.xlu0 %v2456, 96
    %v2493 = vpop.permute.xlu0 %2492
    %v2495 = vmul.f32 %v2481, %v2493
    %2497 = vrot.lane.b32.xlu0 %v2495, 64
    %v2498 = vpop.permute.xlu0 %2497
    %v2500 = vadd.f32 %v2459, %v2498
    %v2501 = vtanh.pop %v2500
    %2503 = vrot.lane.b32.xlu0 %v2491, 64
    %v2504 = vpop.permute.xlu0 %2503
    %v2506 = vsub.f32 %v2381, %v2504
    %2508 = vrot.lane.b32.xlu0 %v2506, 32
    %v2509 = vpop.permute.xlu0 %2508
    %v2511 = vmul.f32 %v2466, %v2509
    %2513 = vrot.lane.b32.xlu0 %v2511, 32
    %v2514 = vpop.permute.xlu0 %2513
    %v2516 = vadd.f32 %v2491, %v2514
    %2518 = vrot.lane.b32.xlu0 %v2501, 96
    %v2519 = vpop.permute.xlu0 %2518
    %v2521 = vsub.f32 %v2381, %v2519
    %v2522 = vmul.f32 %v2481, %v2521
    %2524 = vrot.lane.b32.xlu0 %v2522, 32
    %v2525 = vpop.permute.xlu0 %2524
    %v2527 = vadd.f32 %v2501, %v2525
    %v2528 = vstv %s2382
    %vm2529 = vcmp.gt.s32.totalorder %v454, %v2528
    %v2530 = vstv %s2383
    %vm2531 = vcmp.gt.s32.totalorder %v454, %v2530
    %v2532 = vsel %vm2529, 1, 0
    %2533 = vset.pattern.permute.xlu0 0
    %2534 = vperm.xlu0 %2533, %v2532
    %v2535 = vpop.permute.xlu0 %2534
    %vm2536 = vcmp.eq.s32.totalorder %v2535, 1
    %2537 = vrot.lane.b32.xlu0 %v2381, 64
    %v2538 = vpop.permute.xlu0 %2537
    %v2540 = vsel %vm2536, %v2516, %v2538
    %v2541 = vsel %vm2531, 1, 0
    %2542 = vset.pattern.permute.xlu0 0
    %2543 = vperm.xlu0 %2542, %v2541
    %v2544 = vpop.permute.xlu0 %2543
    %vm2545 = vcmp.eq.s32.totalorder %v2544, 1
    %2546 = vrot.lane.b32.xlu0 %v2381, 32
    %v2547 = vpop.permute.xlu0 %2546
    %v2549 = vsel %vm2545, %v2527, %v2547
    %v2550 = vsel %vm2536, %v2516, 0.0
    %v2551 = vsel %vm2545, %v2527, 0.0
    %2553 = vrot.lane.b32.xlu0 %v2550, 64
    %v2554 = vpop.permute.xlu0 %2553
    %2556 = vst.msk [vmem:[%s6 + $0x50] sm:$0xff] %vm83, %v2554
    %2558 = vrot.lane.b32.xlu0 %v2551, 64
    %v2559 = vpop.permute.xlu0 %2558
    %2561 = vst.msk [vmem:[#allocation4 + $0x28] sm:$0xff] %vm83, %v2559
    %2563 = vrot.lane.b32.xlu0 %v2540, 64
    %v2564 = vpop.permute.xlu0 %2563
    %2567 = vrot.lane.b32.xlu0 %v2549, 96
    %v2568 = vpop.permute.xlu0 %2567
    %v2570 = vsel %vm83, %v2564, %v2568
    %s2571 = sadd.s32 %s480, 11
    %s2572 = ssub.s32 4, %s480
    %v2574 = vsel %vm493, %v2570, 0
    %2576 = vmatprep.subr.mxu0 %v456
    %2577 = vmatpush1.msra.mxu0 %v455
    %2578 = vmatprep.subr.mxu0 %v458
    %2579 = vmatpush1.msra.mxu0 %v457
    %2580 = vmatprep.subr.mxu0 %v460
    %2581 = vmatpush1.msra.mxu0 %v459
    %2582 = vmatprep.subr.mxu0 %v462
    %2583 = vmatpush1.msra.mxu0 %v461
    %2584 = vmatprep.subr.mxu0 %v464
    %2585 = vmatpush1.msra.mxu0 %v463
    %2586 = vmatprep.subr.mxu0 %v466
    %2587 = vmatpush1.msra.mxu0 %v465
    %2588 = vmatprep.subr.mxu0 %v468
    %2589 = vmatpush1.msra.mxu0 %v467
    %2590 = vmatprep.subr.mxu0 %v470
    %2591 = vmatpush1.msra.mxu0 %v469
    %2592 = vmatprep.subr.mxu0 0.0
    %2593 = vmatpush1.msra.mxu0 0.0
    %2594 = vmatprep.subr.mxu0 0.0
    %2595 = vmatpush1.msra.mxu0 0.0
    %2596 = vmatprep.subr.mxu0 0.0
    %2597 = vmatpush1.msra.mxu0 0.0
    %2598 = vmatprep.subr.mxu0 0.0
    %2599 = vmatpush1.msra.mxu0 0.0
    %2600 = vmatprep.subr.mxu0 0.0
    %2601 = vmatpush1.msra.mxu0 0.0
    %2602 = vmatprep.subr.mxu0 0.0
    %2603 = vmatpush1.msra.mxu0 0.0
    %2604 = vmatprep.subr.mxu0 0.0
    %2605 = vmatpush1.msra.mxu0 0.0
    %2606 = vmatprep.subr.mxu0 0.0
    %2607 = vmatpush1.msra.mxu0 0.0
    %2608 = vmatprep.subr.mxu0 0.0
    %2609 = vmatpush1.msra.mxu0 0.0
    %2610 = vmatprep.subr.mxu0 0.0
    %2611 = vmatpush1.msra.mxu0 0.0
    %2612 = vmatprep.subr.mxu0 0.0
    %2613 = vmatpush1.msra.mxu0 0.0
    %2614 = vmatprep.subr.mxu0 0.0
    %2615 = vmatpush1.msra.mxu0 0.0
    %2616 = vmatprep.subr.mxu0 0.0
    %2617 = vmatpush1.msra.mxu0 0.0
    %2618 = vmatprep.subr.mxu0 0.0
    %2619 = vmatpush1.msra.mxu0 0.0
    %2620 = vmatprep.subr.mxu0 0.0
    %2621 = vmatpush1.msra.mxu0 0.0
    %2622 = vmatprep.subr.mxu0 0.0
    %2623 = vmatpush1.msra.mxu0 0.0
    %2624 = vmatprep.subr.mxu0 0.0
    %2625 = vmatpush1.msra.mxu0 0.0
    %2626 = vmatprep.subr.mxu0 0.0
    %2627 = vmatpush1.msra.mxu0 0.0
    %2628 = vmatprep.subr.mxu0 0.0
    %2629 = vmatpush1.msra.mxu0 0.0
    %2630 = vmatprep.subr.mxu0 0.0
    %2631 = vmatpush1.msra.mxu0 0.0
    %2632 = vmatprep.subr.mxu0 0.0
    %2633 = vmatpush1.msra.mxu0 0.0
    %2634 = vmatprep.subr.mxu0 0.0
    %2635 = vmatpush1.msra.mxu0 0.0
    %2636 = vmatprep.subr.mxu0 0.0
    %2637 = vmatpush1.msra.mxu0 0.0
    %2638 = vmatprep.subr.mxu0 0.0
    %2639 = vmatpush1.msra.mxu0 0.0
    %2640 = vmatprep.mubr.f32.mxu0 0.0
    %2641 = vmatmul.mubr.f32.gmra.mrb[0].mxu0 %v2574
    %v2642 = vpop.f32.mrb[0].mxu0
    %v2643 = vadd.f32 %v486, %v2642
    %v2644 = vpop.f32.mrb[0].mxu0
    %v2645 = vadd.f32 %v490, %v2644
    %2646 = vdwg.mxu0
    %v2647 = vld [vmem:[#allocation2 + $0x58] sm:$0xff]
    %v2648 = vld [vmem:[#allocation3 + $0x20] sm:$0xff]
    %v2649 = vadd.f32 %v2647, %v2643
    %v2650 = vxor.u32 %v2649, 2147483648
    %v2651 = vmul.f32 %v2650, 1.442695
    %v2652 = vpow.pop %v2651
    %v2653 = vadd.f32 %v2652, 1.0
    %v2654 = vrcp.pop %v2653
    %v2655 = vmul.f32 1.0, %v2654
    %2658 = vrot.lane.b32.xlu0 %v2643, 32
    %v2659 = vpop.permute.xlu0 %2658
    %2660 = vrot.lane.b32.xlu0 %v2645, 32
    %v2661 = vpop.permute.xlu0 %2660
    %v2662 = vsel %vm83, %v2659, %v2661
    %v2664 = vadd.f32 %v2648, %v2662
    %v2665 = vxor.u32 %v2664, 2147483648
    %v2666 = vmul.f32 %v2665, 1.442695
    %v2667 = vpow.pop %v2666
    %v2668 = vadd.f32 %v2667, 1.0
    %v2669 = vrcp.pop %v2668
    %v2670 = vmul.f32 1.0, %v2669
    %2671 = vrot.lane.b32.xlu0 %v2643, 64
    %v2672 = vpop.permute.xlu0 %2671
    %v2674 = vmul.f32 %v2655, %v2672
    %2676 = vrot.lane.b32.xlu0 %v2674, 64
    %v2677 = vpop.permute.xlu0 %2676
    %v2679 = vadd.f32 %v2647, %v2677
    %v2680 = vtanh.pop %v2679
    %2681 = vrot.lane.b32.xlu0 %v2645, 96
    %v2682 = vpop.permute.xlu0 %2681
    %v2684 = vmul.f32 %v2670, %v2682
    %2686 = vrot.lane.b32.xlu0 %v2684, 64
    %v2687 = vpop.permute.xlu0 %2686
    %v2689 = vadd.f32 %v2648, %v2687
    %v2690 = vtanh.pop %v2689
    %2692 = vrot.lane.b32.xlu0 %v2680, 64
    %v2693 = vpop.permute.xlu0 %2692
    %v2695 = vsub.f32 %v2570, %v2693
    %2697 = vrot.lane.b32.xlu0 %v2695, 32
    %v2698 = vpop.permute.xlu0 %2697
    %v2700 = vmul.f32 %v2655, %v2698
    %2702 = vrot.lane.b32.xlu0 %v2700, 32
    %v2703 = vpop.permute.xlu0 %2702
    %v2705 = vadd.f32 %v2680, %v2703
    %2707 = vrot.lane.b32.xlu0 %v2690, 96
    %v2708 = vpop.permute.xlu0 %2707
    %v2710 = vsub.f32 %v2570, %v2708
    %v2711 = vmul.f32 %v2670, %v2710
    %2713 = vrot.lane.b32.xlu0 %v2711, 32
    %v2714 = vpop.permute.xlu0 %2713
    %v2716 = vadd.f32 %v2690, %v2714
    %v2717 = vstv %s2571
    %vm2718 = vcmp.gt.s32.totalorder %v454, %v2717
    %v2719 = vstv %s2572
    %vm2720 = vcmp.gt.s32.totalorder %v454, %v2719
    %v2721 = vsel %vm2718, 1, 0
    %2722 = vset.pattern.permute.xlu0 0
    %2723 = vperm.xlu0 %2722, %v2721
    %v2724 = vpop.permute.xlu0 %2723
    %vm2725 = vcmp.eq.s32.totalorder %v2724, 1
    %2726 = vrot.lane.b32.xlu0 %v2570, 64
    %v2727 = vpop.permute.xlu0 %2726
    %v2729 = vsel %vm2725, %v2705, %v2727
    %v2730 = vsel %vm2720, 1, 0
    %2731 = vset.pattern.permute.xlu0 0
    %2732 = vperm.xlu0 %2731, %v2730
    %v2733 = vpop.permute.xlu0 %2732
    %vm2734 = vcmp.eq.s32.totalorder %v2733, 1
    %2735 = vrot.lane.b32.xlu0 %v2570, 32
    %v2736 = vpop.permute.xlu0 %2735
    %v2738 = vsel %vm2734, %v2716, %v2736
    %v2739 = vsel %vm2725, %v2705, 0.0
    %v2740 = vsel %vm2734, %v2716, 0.0
    %2742 = vrot.lane.b32.xlu0 %v2739, 64
    %v2743 = vpop.permute.xlu0 %2742
    %2745 = vst.msk [vmem:[%s6 + $0x58] sm:$0xff] %vm83, %v2743
    %2747 = vrot.lane.b32.xlu0 %v2740, 64
    %v2748 = vpop.permute.xlu0 %2747
    %2750 = vst.msk [vmem:[#allocation4 + $0x20] sm:$0xff] %vm83, %v2748
    %2752 = vrot.lane.b32.xlu0 %v2729, 64
    %v2753 = vpop.permute.xlu0 %2752
    %2756 = vrot.lane.b32.xlu0 %v2738, 96
    %v2757 = vpop.permute.xlu0 %2756
    %v2759 = vsel %vm83, %v2753, %v2757
    %s2760 = sadd.s32 %s480, 12
    %s2761 = ssub.s32 3, %s480
    %v2763 = vsel %vm493, %v2759, 0
    %2765 = vmatprep.subr.mxu0 %v456
    %2766 = vmatpush1.msra.mxu0 %v455
    %2767 = vmatprep.subr.mxu0 %v458
    %2768 = vmatpush1.msra.mxu0 %v457
    %2769 = vmatprep.subr.mxu0 %v460
    %2770 = vmatpush1.msra.mxu0 %v459
    %2771 = vmatprep.subr.mxu0 %v462
    %2772 = vmatpush1.msra.mxu0 %v461
    %2773 = vmatprep.subr.mxu0 %v464
    %2774 = vmatpush1.msra.mxu0 %v463
    %2775 = vmatprep.subr.mxu0 %v466
    %2776 = vmatpush1.msra.mxu0 %v465
    %2777 = vmatprep.subr.mxu0 %v468
    %2778 = vmatpush1.msra.mxu0 %v467
    %2779 = vmatprep.subr.mxu0 %v470
    %2780 = vmatpush1.msra.mxu0 %v469
    %2781 = vmatprep.subr.mxu0 0.0
    %2782 = vmatpush1.msra.mxu0 0.0
    %2783 = vmatprep.subr.mxu0 0.0
    %2784 = vmatpush1.msra.mxu0 0.0
    %2785 = vmatprep.subr.mxu0 0.0
    %2786 = vmatpush1.msra.mxu0 0.0
    %2787 = vmatprep.subr.mxu0 0.0
    %2788 = vmatpush1.msra.mxu0 0.0
    %2789 = vmatprep.subr.mxu0 0.0
    %2790 = vmatpush1.msra.mxu0 0.0
    %2791 = vmatprep.subr.mxu0 0.0
    %2792 = vmatpush1.msra.mxu0 0.0
    %2793 = vmatprep.subr.mxu0 0.0
    %2794 = vmatpush1.msra.mxu0 0.0
    %2795 = vmatprep.subr.mxu0 0.0
    %2796 = vmatpush1.msra.mxu0 0.0
    %2797 = vmatprep.subr.mxu0 0.0
    %2798 = vmatpush1.msra.mxu0 0.0
    %2799 = vmatprep.subr.mxu0 0.0
    %2800 = vmatpush1.msra.mxu0 0.0
    %2801 = vmatprep.subr.mxu0 0.0
    %2802 = vmatpush1.msra.mxu0 0.0
    %2803 = vmatprep.subr.mxu0 0.0
    %2804 = vmatpush1.msra.mxu0 0.0
    %2805 = vmatprep.subr.mxu0 0.0
    %2806 = vmatpush1.msra.mxu0 0.0
    %2807 = vmatprep.subr.mxu0 0.0
    %2808 = vmatpush1.msra.mxu0 0.0
    %2809 = vmatprep.subr.mxu0 0.0
    %2810 = vmatpush1.msra.mxu0 0.0
    %2811 = vmatprep.subr.mxu0 0.0
    %2812 = vmatpush1.msra.mxu0 0.0
    %2813 = vmatprep.subr.mxu0 0.0
    %2814 = vmatpush1.msra.mxu0 0.0
    %2815 = vmatprep.subr.mxu0 0.0
    %2816 = vmatpush1.msra.mxu0 0.0
    %2817 = vmatprep.subr.mxu0 0.0
    %2818 = vmatpush1.msra.mxu0 0.0
    %2819 = vmatprep.subr.mxu0 0.0
    %2820 = vmatpush1.msra.mxu0 0.0
    %2821 = vmatprep.subr.mxu0 0.0
    %2822 = vmatpush1.msra.mxu0 0.0
    %2823 = vmatprep.subr.mxu0 0.0
    %2824 = vmatpush1.msra.mxu0 0.0
    %2825 = vmatprep.subr.mxu0 0.0
    %2826 = vmatpush1.msra.mxu0 0.0
    %2827 = vmatprep.subr.mxu0 0.0
    %2828 = vmatpush1.msra.mxu0 0.0
    %2829 = vmatprep.mubr.f32.mxu0 0.0
    %2830 = vmatmul.mubr.f32.gmra.mrb[0].mxu0 %v2763
    %v2831 = vpop.f32.mrb[0].mxu0
    %v2832 = vadd.f32 %v486, %v2831
    %v2833 = vpop.f32.mrb[0].mxu0
    %v2834 = vadd.f32 %v490, %v2833
    %2835 = vdwg.mxu0
    %v2836 = vld [vmem:[#allocation2 + $0x60] sm:$0xff]
    %v2837 = vld [vmem:[#allocation3 + $0x18] sm:$0xff]
    %v2838 = vadd.f32 %v2836, %v2832
    %v2839 = vxor.u32 %v2838, 2147483648
    %v2840 = vmul.f32 %v2839, 1.442695
    %v2841 = vpow.pop %v2840
    %v2842 = vadd.f32 %v2841, 1.0
    %v2843 = vrcp.pop %v2842
    %v2844 = vmul.f32 1.0, %v2843
    %2847 = vrot.lane.b32.xlu0 %v2832, 32
    %v2848 = vpop.permute.xlu0 %2847
    %2849 = vrot.lane.b32.xlu0 %v2834, 32
    %v2850 = vpop.permute.xlu0 %2849
    %v2851 = vsel %vm83, %v2848, %v2850
    %v2853 = vadd.f32 %v2837, %v2851
    %v2854 = vxor.u32 %v2853, 2147483648
    %v2855 = vmul.f32 %v2854, 1.442695
    %v2856 = vpow.pop %v2855
    %v2857 = vadd.f32 %v2856, 1.0
    %v2858 = vrcp.pop %v2857
    %v2859 = vmul.f32 1.0, %v2858
    %2860 = vrot.lane.b32.xlu0 %v2832, 64
    %v2861 = vpop.permute.xlu0 %2860
    %v2863 = vmul.f32 %v2844, %v2861
    %2865 = vrot.lane.b32.xlu0 %v2863, 64
    %v2866 = vpop.permute.xlu0 %2865
    %v2868 = vadd.f32 %v2836, %v2866
    %v2869 = vtanh.pop %v2868
    %2870 = vrot.lane.b32.xlu0 %v2834, 96
    %v2871 = vpop.permute.xlu0 %2870
    %v2873 = vmul.f32 %v2859, %v2871
    %2875 = vrot.lane.b32.xlu0 %v2873, 64
    %v2876 = vpop.permute.xlu0 %2875
    %v2878 = vadd.f32 %v2837, %v2876
    %v2879 = vtanh.pop %v2878
    %2881 = vrot.lane.b32.xlu0 %v2869, 64
    %v2882 = vpop.permute.xlu0 %2881
    %v2884 = vsub.f32 %v2759, %v2882
    %2886 = vrot.lane.b32.xlu0 %v2884, 32
    %v2887 = vpop.permute.xlu0 %2886
    %v2889 = vmul.f32 %v2844, %v2887
    %2891 = vrot.lane.b32.xlu0 %v2889, 32
    %v2892 = vpop.permute.xlu0 %2891
    %v2894 = vadd.f32 %v2869, %v2892
    %2896 = vrot.lane.b32.xlu0 %v2879, 96
    %v2897 = vpop.permute.xlu0 %2896
    %v2899 = vsub.f32 %v2759, %v2897
    %v2900 = vmul.f32 %v2859, %v2899
    %2902 = vrot.lane.b32.xlu0 %v2900, 32
    %v2903 = vpop.permute.xlu0 %2902
    %v2905 = vadd.f32 %v2879, %v2903
    %v2906 = vstv %s2760
    %vm2907 = vcmp.gt.s32.totalorder %v454, %v2906
    %v2908 = vstv %s2761
    %vm2909 = vcmp.gt.s32.totalorder %v454, %v2908
    %v2910 = vsel %vm2907, 1, 0
    %2911 = vset.pattern.permute.xlu0 0
    %2912 = vperm.xlu0 %2911, %v2910
    %v2913 = vpop.permute.xlu0 %2912
    %vm2914 = vcmp.eq.s32.totalorder %v2913, 1
    %2915 = vrot.lane.b32.xlu0 %v2759, 64
    %v2916 = vpop.permute.xlu0 %2915
    %v2918 = vsel %vm2914, %v2894, %v2916
    %v2919 = vsel %vm2909, 1, 0
    %2920 = vset.pattern.permute.xlu0 0
    %2921 = vperm.xlu0 %2920, %v2919
    %v2922 = vpop.permute.xlu0 %2921
    %vm2923 = vcmp.eq.s32.totalorder %v2922, 1
    %2924 = vrot.lane.b32.xlu0 %v2759, 32
    %v2925 = vpop.permute.xlu0 %2924
    %v2927 = vsel %vm2923, %v2905, %v2925
    %v2928 = vsel %vm2914, %v2894, 0.0
    %v2929 = vsel %vm2923, %v2905, 0.0
    %2931 = vrot.lane.b32.xlu0 %v2928, 64
    %v2932 = vpop.permute.xlu0 %2931
    %2934 = vst.msk [vmem:[%s6 + $0x60] sm:$0xff] %vm83, %v2932
    %2936 = vrot.lane.b32.xlu0 %v2929, 64
    %v2937 = vpop.permute.xlu0 %2936
    %2939 = vst.msk [vmem:[#allocation4 + $0x18] sm:$0xff] %vm83, %v2937
    %2941 = vrot.lane.b32.xlu0 %v2918, 64
    %v2942 = vpop.permute.xlu0 %2941
    %2945 = vrot.lane.b32.xlu0 %v2927, 96
    %v2946 = vpop.permute.xlu0 %2945
    %v2948 = vsel %vm83, %v2942, %v2946
    %s2949 = sadd.s32 %s480, 13
    %s2950 = ssub.s32 2, %s480
    %v2952 = vsel %vm493, %v2948, 0
    %2954 = vmatprep.subr.mxu0 %v456
    %2955 = vmatpush1.msra.mxu0 %v455
    %2956 = vmatprep.subr.mxu0 %v458
    %2957 = vmatpush1.msra.mxu0 %v457
    %2958 = vmatprep.subr.mxu0 %v460
    %2959 = vmatpush1.msra.mxu0 %v459
    %2960 = vmatprep.subr.mxu0 %v462
    %2961 = vmatpush1.msra.mxu0 %v461
    %2962 = vmatprep.subr.mxu0 %v464
    %2963 = vmatpush1.msra.mxu0 %v463
    %2964 = vmatprep.subr.mxu0 %v466
    %2965 = vmatpush1.msra.mxu0 %v465
    %2966 = vmatprep.subr.mxu0 %v468
    %2967 = vmatpush1.msra.mxu0 %v467
    %2968 = vmatprep.subr.mxu0 %v470
    %2969 = vmatpush1.msra.mxu0 %v469
    %2970 = vmatprep.subr.mxu0 0.0
    %2971 = vmatpush1.msra.mxu0 0.0
    %2972 = vmatprep.subr.mxu0 0.0
    %2973 = vmatpush1.msra.mxu0 0.0
    %2974 = vmatprep.subr.mxu0 0.0
    %2975 = vmatpush1.msra.mxu0 0.0
    %2976 = vmatprep.subr.mxu0 0.0
    %2977 = vmatpush1.msra.mxu0 0.0
    %2978 = vmatprep.subr.mxu0 0.0
    %2979 = vmatpush1.msra.mxu0 0.0
    %2980 = vmatprep.subr.mxu0 0.0
    %2981 = vmatpush1.msra.mxu0 0.0
    %2982 = vmatprep.subr.mxu0 0.0
    %2983 = vmatpush1.msra.mxu0 0.0
    %2984 = vmatprep.subr.mxu0 0.0
    %2985 = vmatpush1.msra.mxu0 0.0
    %2986 = vmatprep.subr.mxu0 0.0
    %2987 = vmatpush1.msra.mxu0 0.0
    %2988 = vmatprep.subr.mxu0 0.0
    %2989 = vmatpush1.msra.mxu0 0.0
    %2990 = vmatprep.subr.mxu0 0.0
    %2991 = vmatpush1.msra.mxu0 0.0
    %2992 = vmatprep.subr.mxu0 0.0
    %2993 = vmatpush1.msra.mxu0 0.0
    %2994 = vmatprep.subr.mxu0 0.0
    %2995 = vmatpush1.msra.mxu0 0.0
    %2996 = vmatprep.subr.mxu0 0.0
    %2997 = vmatpush1.msra.mxu0 0.0
    %2998 = vmatprep.subr.mxu0 0.0
    %2999 = vmatpush1.msra.mxu0 0.0
    %3000 = vmatprep.subr.mxu0 0.0
    %3001 = vmatpush1.msra.mxu0 0.0
    %3002 = vmatprep.subr.mxu0 0.0
    %3003 = vmatpush1.msra.mxu0 0.0
    %3004 = vmatprep.subr.mxu0 0.0
    %3005 = vmatpush1.msra.mxu0 0.0
    %3006 = vmatprep.subr.mxu0 0.0
    %3007 = vmatpush1.msra.mxu0 0.0
    %3008 = vmatprep.subr.mxu0 0.0
    %3009 = vmatpush1.msra.mxu0 0.0
    %3010 = vmatprep.subr.mxu0 0.0
    %3011 = vmatpush1.msra.mxu0 0.0
    %3012 = vmatprep.subr.mxu0 0.0
    %3013 = vmatpush1.msra.mxu0 0.0
    %3014 = vmatprep.subr.mxu0 0.0
    %3015 = vmatpush1.msra.mxu0 0.0
    %3016 = vmatprep.subr.mxu0 0.0
    %3017 = vmatpush1.msra.mxu0 0.0
    %3018 = vmatprep.mubr.f32.mxu0 0.0
    %3019 = vmatmul.mubr.f32.gmra.mrb[0].mxu0 %v2952
    %v3020 = vpop.f32.mrb[0].mxu0
    %v3021 = vadd.f32 %v486, %v3020
    %v3022 = vpop.f32.mrb[0].mxu0
    %v3023 = vadd.f32 %v490, %v3022
    %3024 = vdwg.mxu0
    %v3025 = vld [vmem:[#allocation2 + $0x68] sm:$0xff]
    %v3026 = vld [vmem:[#allocation3 + $0x10] sm:$0xff]
    %v3027 = vadd.f32 %v3025, %v3021
    %v3028 = vxor.u32 %v3027, 2147483648
    %v3029 = vmul.f32 %v3028, 1.442695
    %v3030 = vpow.pop %v3029
    %v3031 = vadd.f32 %v3030, 1.0
    %v3032 = vrcp.pop %v3031
    %v3033 = vmul.f32 1.0, %v3032
    %3036 = vrot.lane.b32.xlu0 %v3021, 32
    %v3037 = vpop.permute.xlu0 %3036
    %3038 = vrot.lane.b32.xlu0 %v3023, 32
    %v3039 = vpop.permute.xlu0 %3038
    %v3040 = vsel %vm83, %v3037, %v3039
    %v3042 = vadd.f32 %v3026, %v3040
    %v3043 = vxor.u32 %v3042, 2147483648
    %v3044 = vmul.f32 %v3043, 1.442695
    %v3045 = vpow.pop %v3044
    %v3046 = vadd.f32 %v3045, 1.0
    %v3047 = vrcp.pop %v3046
    %v3048 = vmul.f32 1.0, %v3047
    %3049 = vrot.lane.b32.xlu0 %v3021, 64
    %v3050 = vpop.permute.xlu0 %3049
    %v3052 = vmul.f32 %v3033, %v3050
    %3054 = vrot.lane.b32.xlu0 %v3052, 64
    %v3055 = vpop.permute.xlu0 %3054
    %v3057 = vadd.f32 %v3025, %v3055
    %v3058 = vtanh.pop %v3057
    %3059 = vrot.lane.b32.xlu0 %v3023, 96
    %v3060 = vpop.permute.xlu0 %3059
    %v3062 = vmul.f32 %v3048, %v3060
    %3064 = vrot.lane.b32.xlu0 %v3062, 64
    %v3065 = vpop.permute.xlu0 %3064
    %v3067 = vadd.f32 %v3026, %v3065
    %v3068 = vtanh.pop %v3067
    %3070 = vrot.lane.b32.xlu0 %v3058, 64
    %v3071 = vpop.permute.xlu0 %3070
    %v3073 = vsub.f32 %v2948, %v3071
    %3075 = vrot.lane.b32.xlu0 %v3073, 32
    %v3076 = vpop.permute.xlu0 %3075
    %v3078 = vmul.f32 %v3033, %v3076
    %3080 = vrot.lane.b32.xlu0 %v3078, 32
    %v3081 = vpop.permute.xlu0 %3080
    %v3083 = vadd.f32 %v3058, %v3081
    %3085 = vrot.lane.b32.xlu0 %v3068, 96
    %v3086 = vpop.permute.xlu0 %3085
    %v3088 = vsub.f32 %v2948, %v3086
    %v3089 = vmul.f32 %v3048, %v3088
    %3091 = vrot.lane.b32.xlu0 %v3089, 32
    %v3092 = vpop.permute.xlu0 %3091
    %v3094 = vadd.f32 %v3068, %v3092
    %v3095 = vstv %s2949
    %vm3096 = vcmp.gt.s32.totalorder %v454, %v3095
    %v3097 = vstv %s2950
    %vm3098 = vcmp.gt.s32.totalorder %v454, %v3097
    %v3099 = vsel %vm3096, 1, 0
    %3100 = vset.pattern.permute.xlu0 0
    %3101 = vperm.xlu0 %3100, %v3099
    %v3102 = vpop.permute.xlu0 %3101
    %vm3103 = vcmp.eq.s32.totalorder %v3102, 1
    %3104 = vrot.lane.b32.xlu0 %v2948, 64
    %v3105 = vpop.permute.xlu0 %3104
    %v3107 = vsel %vm3103, %v3083, %v3105
    %v3108 = vsel %vm3098, 1, 0
    %3109 = vset.pattern.permute.xlu0 0
    %3110 = vperm.xlu0 %3109, %v3108
    %v3111 = vpop.permute.xlu0 %3110
    %vm3112 = vcmp.eq.s32.totalorder %v3111, 1
    %3113 = vrot.lane.b32.xlu0 %v2948, 32
    %v3114 = vpop.permute.xlu0 %3113
    %v3116 = vsel %vm3112, %v3094, %v3114
    %v3117 = vsel %vm3103, %v3083, 0.0
    %v3118 = vsel %vm3112, %v3094, 0.0
    %3120 = vrot.lane.b32.xlu0 %v3117, 64
    %v3121 = vpop.permute.xlu0 %3120
    %3123 = vst.msk [vmem:[%s6 + $0x68] sm:$0xff] %vm83, %v3121
    %3125 = vrot.lane.b32.xlu0 %v3118, 64
    %v3126 = vpop.permute.xlu0 %3125
    %3128 = vst.msk [vmem:[#allocation4 + $0x10] sm:$0xff] %vm83, %v3126
    %3130 = vrot.lane.b32.xlu0 %v3107, 64
    %v3131 = vpop.permute.xlu0 %3130
    %3134 = vrot.lane.b32.xlu0 %v3116, 96
    %v3135 = vpop.permute.xlu0 %3134
    %v3137 = vsel %vm83, %v3131, %v3135
    %s3138 = sadd.s32 %s480, 14
    %s3139 = ssub.s32 1, %s480
    %v3141 = vsel %vm493, %v3137, 0
    %3143 = vmatprep.subr.mxu0 %v456
    %3144 = vmatpush1.msra.mxu0 %v455
    %3145 = vmatprep.subr.mxu0 %v458
    %3146 = vmatpush1.msra.mxu0 %v457
    %3147 = vmatprep.subr.mxu0 %v460
    %3148 = vmatpush1.msra.mxu0 %v459
    %3149 = vmatprep.subr.mxu0 %v462
    %3150 = vmatpush1.msra.mxu0 %v461
    %3151 = vmatprep.subr.mxu0 %v464
    %3152 = vmatpush1.msra.mxu0 %v463
    %3153 = vmatprep.subr.mxu0 %v466
    %3154 = vmatpush1.msra.mxu0 %v465
    %3155 = vmatprep.subr.mxu0 %v468
    %3156 = vmatpush1.msra.mxu0 %v467
    %3157 = vmatprep.subr.mxu0 %v470
    %3158 = vmatpush1.msra.mxu0 %v469
    %3159 = vmatprep.subr.mxu0 0.0
    %3160 = vmatpush1.msra.mxu0 0.0
    %3161 = vmatprep.subr.mxu0 0.0
    %3162 = vmatpush1.msra.mxu0 0.0
    %3163 = vmatprep.subr.mxu0 0.0
    %3164 = vmatpush1.msra.mxu0 0.0
    %3165 = vmatprep.subr.mxu0 0.0
    %3166 = vmatpush1.msra.mxu0 0.0
    %3167 = vmatprep.subr.mxu0 0.0
    %3168 = vmatpush1.msra.mxu0 0.0
    %3169 = vmatprep.subr.mxu0 0.0
    %3170 = vmatpush1.msra.mxu0 0.0
    %3171 = vmatprep.subr.mxu0 0.0
    %3172 = vmatpush1.msra.mxu0 0.0
    %3173 = vmatprep.subr.mxu0 0.0
    %3174 = vmatpush1.msra.mxu0 0.0
    %3175 = vmatprep.subr.mxu0 0.0
    %3176 = vmatpush1.msra.mxu0 0.0
    %3177 = vmatprep.subr.mxu0 0.0
    %3178 = vmatpush1.msra.mxu0 0.0
    %3179 = vmatprep.subr.mxu0 0.0
    %3180 = vmatpush1.msra.mxu0 0.0
    %3181 = vmatprep.subr.mxu0 0.0
    %3182 = vmatpush1.msra.mxu0 0.0
    %3183 = vmatprep.subr.mxu0 0.0
    %3184 = vmatpush1.msra.mxu0 0.0
    %3185 = vmatprep.subr.mxu0 0.0
    %3186 = vmatpush1.msra.mxu0 0.0
    %3187 = vmatprep.subr.mxu0 0.0
    %3188 = vmatpush1.msra.mxu0 0.0
    %3189 = vmatprep.subr.mxu0 0.0
    %3190 = vmatpush1.msra.mxu0 0.0
    %3191 = vmatprep.subr.mxu0 0.0
    %3192 = vmatpush1.msra.mxu0 0.0
    %3193 = vmatprep.subr.mxu0 0.0
    %3194 = vmatpush1.msra.mxu0 0.0
    %3195 = vmatprep.subr.mxu0 0.0
    %3196 = vmatpush1.msra.mxu0 0.0
    %3197 = vmatprep.subr.mxu0 0.0
    %3198 = vmatpush1.msra.mxu0 0.0
    %3199 = vmatprep.subr.mxu0 0.0
    %3200 = vmatpush1.msra.mxu0 0.0
    %3201 = vmatprep.subr.mxu0 0.0
    %3202 = vmatpush1.msra.mxu0 0.0
    %3203 = vmatprep.subr.mxu0 0.0
    %3204 = vmatpush1.msra.mxu0 0.0
    %3205 = vmatprep.subr.mxu0 0.0
    %3206 = vmatpush1.msra.mxu0 0.0
    %3207 = vmatprep.mubr.f32.mxu0 0.0
    %3208 = vmatmul.mubr.f32.gmra.mrb[0].mxu0 %v3141
    %v3209 = vpop.f32.mrb[0].mxu0
    %v3210 = vadd.f32 %v486, %v3209
    %v3211 = vpop.f32.mrb[0].mxu0
    %v3212 = vadd.f32 %v490, %v3211
    %3213 = vdwg.mxu0
    %v3214 = vld [vmem:[#allocation2 + $0x70] sm:$0xff]
    %v3215 = vld [vmem:[#allocation3 + $0x8] sm:$0xff]
    %v3216 = vadd.f32 %v3214, %v3210
    %v3217 = vxor.u32 %v3216, 2147483648
    %v3218 = vmul.f32 %v3217, 1.442695
    %v3219 = vpow.pop %v3218
    %v3220 = vadd.f32 %v3219, 1.0
    %v3221 = vrcp.pop %v3220
    %v3222 = vmul.f32 1.0, %v3221
    %3225 = vrot.lane.b32.xlu0 %v3210, 32
    %v3226 = vpop.permute.xlu0 %3225
    %3227 = vrot.lane.b32.xlu0 %v3212, 32
    %v3228 = vpop.permute.xlu0 %3227
    %v3229 = vsel %vm83, %v3226, %v3228
    %v3231 = vadd.f32 %v3215, %v3229
    %v3232 = vxor.u32 %v3231, 2147483648
    %v3233 = vmul.f32 %v3232, 1.442695
    %v3234 = vpow.pop %v3233
    %v3235 = vadd.f32 %v3234, 1.0
    %v3236 = vrcp.pop %v3235
    %v3237 = vmul.f32 1.0, %v3236
    %3238 = vrot.lane.b32.xlu0 %v3210, 64
    %v3239 = vpop.permute.xlu0 %3238
    %v3241 = vmul.f32 %v3222, %v3239
    %3243 = vrot.lane.b32.xlu0 %v3241, 64
    %v3244 = vpop.permute.xlu0 %3243
    %v3246 = vadd.f32 %v3214, %v3244
    %v3247 = vtanh.pop %v3246
    %3248 = vrot.lane.b32.xlu0 %v3212, 96
    %v3249 = vpop.permute.xlu0 %3248
    %v3251 = vmul.f32 %v3237, %v3249
    %3253 = vrot.lane.b32.xlu0 %v3251, 64
    %v3254 = vpop.permute.xlu0 %3253
    %v3256 = vadd.f32 %v3215, %v3254
    %v3257 = vtanh.pop %v3256
    %3259 = vrot.lane.b32.xlu0 %v3247, 64
    %v3260 = vpop.permute.xlu0 %3259
    %v3262 = vsub.f32 %v3137, %v3260
    %3264 = vrot.lane.b32.xlu0 %v3262, 32
    %v3265 = vpop.permute.xlu0 %3264
    %v3267 = vmul.f32 %v3222, %v3265
    %3269 = vrot.lane.b32.xlu0 %v3267, 32
    %v3270 = vpop.permute.xlu0 %3269
    %v3272 = vadd.f32 %v3247, %v3270
    %3274 = vrot.lane.b32.xlu0 %v3257, 96
    %v3275 = vpop.permute.xlu0 %3274
    %v3277 = vsub.f32 %v3137, %v3275
    %v3278 = vmul.f32 %v3237, %v3277
    %3280 = vrot.lane.b32.xlu0 %v3278, 32
    %v3281 = vpop.permute.xlu0 %3280
    %v3283 = vadd.f32 %v3257, %v3281
    %v3284 = vstv %s3138
    %vm3285 = vcmp.gt.s32.totalorder %v454, %v3284
    %v3286 = vstv %s3139
    %vm3287 = vcmp.gt.s32.totalorder %v454, %v3286
    %v3288 = vsel %vm3285, 1, 0
    %3289 = vset.pattern.permute.xlu0 0
    %3290 = vperm.xlu0 %3289, %v3288
    %v3291 = vpop.permute.xlu0 %3290
    %vm3292 = vcmp.eq.s32.totalorder %v3291, 1
    %3293 = vrot.lane.b32.xlu0 %v3137, 64
    %v3294 = vpop.permute.xlu0 %3293
    %v3296 = vsel %vm3292, %v3272, %v3294
    %v3297 = vsel %vm3287, 1, 0
    %3298 = vset.pattern.permute.xlu0 0
    %3299 = vperm.xlu0 %3298, %v3297
    %v3300 = vpop.permute.xlu0 %3299
    %vm3301 = vcmp.eq.s32.totalorder %v3300, 1
    %3302 = vrot.lane.b32.xlu0 %v3137, 32
    %v3303 = vpop.permute.xlu0 %3302
    %v3305 = vsel %vm3301, %v3283, %v3303
    %v3306 = vsel %vm3292, %v3272, 0.0
    %v3307 = vsel %vm3301, %v3283, 0.0
    %3309 = vrot.lane.b32.xlu0 %v3306, 64
    %v3310 = vpop.permute.xlu0 %3309
    %3312 = vst.msk [vmem:[%s6 + $0x70] sm:$0xff] %vm83, %v3310
    %3314 = vrot.lane.b32.xlu0 %v3307, 64
    %v3315 = vpop.permute.xlu0 %3314
    %3317 = vst.msk [vmem:[#allocation4 + $0x8] sm:$0xff] %vm83, %v3315
    %3319 = vrot.lane.b32.xlu0 %v3296, 64
    %v3320 = vpop.permute.xlu0 %3319
    %3323 = vrot.lane.b32.xlu0 %v3305, 96
    %v3324 = vpop.permute.xlu0 %3323
    %v3326 = vsel %vm83, %v3320, %v3324
    %s3327 = sadd.s32 %s480, 15
    %s3328 = ssub.s32 0, %s480
    %v3330 = vsel %vm493, %v3326, 0
    %3332 = vmatprep.subr.mxu0 %v456
    %3333 = vmatpush1.msra.mxu0 %v455
    %3334 = vmatprep.subr.mxu0 %v458
    %3335 = vmatpush1.msra.mxu0 %v457
    %3336 = vmatprep.subr.mxu0 %v460
    %3337 = vmatpush1.msra.mxu0 %v459
    %3338 = vmatprep.subr.mxu0 %v462
    %3339 = vmatpush1.msra.mxu0 %v461
    %3340 = vmatprep.subr.mxu0 %v464
    %3341 = vmatpush1.msra.mxu0 %v463
    %3342 = vmatprep.subr.mxu0 %v466
    %3343 = vmatpush1.msra.mxu0 %v465
    %3344 = vmatprep.subr.mxu0 %v468
    %3345 = vmatpush1.msra.mxu0 %v467
    %3346 = vmatprep.subr.mxu0 %v470
    %3347 = vmatpush1.msra.mxu0 %v469
    %3348 = vmatprep.subr.mxu0 0.0
    %3349 = vmatpush1.msra.mxu0 0.0
    %3350 = vmatprep.subr.mxu0 0.0
    %3351 = vmatpush1.msra.mxu0 0.0
    %3352 = vmatprep.subr.mxu0 0.0
    %3353 = vmatpush1.msra.mxu0 0.0
    %3354 = vmatprep.subr.mxu0 0.0
    %3355 = vmatpush1.msra.mxu0 0.0
    %3356 = vmatprep.subr.mxu0 0.0
    %3357 = vmatpush1.msra.mxu0 0.0
    %3358 = vmatprep.subr.mxu0 0.0
    %3359 = vmatpush1.msra.mxu0 0.0
    %3360 = vmatprep.subr.mxu0 0.0
    %3361 = vmatpush1.msra.mxu0 0.0
    %3362 = vmatprep.subr.mxu0 0.0
    %3363 = vmatpush1.msra.mxu0 0.0
    %3364 = vmatprep.subr.mxu0 0.0
    %3365 = vmatpush1.msra.mxu0 0.0
    %3366 = vmatprep.subr.mxu0 0.0
    %3367 = vmatpush1.msra.mxu0 0.0
    %3368 = vmatprep.subr.mxu0 0.0
    %3369 = vmatpush1.msra.mxu0 0.0
    %3370 = vmatprep.subr.mxu0 0.0
    %3371 = vmatpush1.msra.mxu0 0.0
    %3372 = vmatprep.subr.mxu0 0.0
    %3373 = vmatpush1.msra.mxu0 0.0
    %3374 = vmatprep.subr.mxu0 0.0
    %3375 = vmatpush1.msra.mxu0 0.0
    %3376 = vmatprep.subr.mxu0 0.0
    %3377 = vmatpush1.msra.mxu0 0.0
    %3378 = vmatprep.subr.mxu0 0.0
    %3379 = vmatpush1.msra.mxu0 0.0
    %3380 = vmatprep.subr.mxu0 0.0
    %3381 = vmatpush1.msra.mxu0 0.0
    %3382 = vmatprep.subr.mxu0 0.0
    %3383 = vmatpush1.msra.mxu0 0.0
    %3384 = vmatprep.subr.mxu0 0.0
    %3385 = vmatpush1.msra.mxu0 0.0
    %3386 = vmatprep.subr.mxu0 0.0
    %3387 = vmatpush1.msra.mxu0 0.0
    %3388 = vmatprep.subr.mxu0 0.0
    %3389 = vmatpush1.msra.mxu0 0.0
    %3390 = vmatprep.subr.mxu0 0.0
    %3391 = vmatpush1.msra.mxu0 0.0
    %3392 = vmatprep.subr.mxu0 0.0
    %3393 = vmatpush1.msra.mxu0 0.0
    %3394 = vmatprep.subr.mxu0 0.0
    %3395 = vmatpush1.msra.mxu0 0.0
    %3396 = vmatprep.mubr.f32.mxu0 0.0
    %3397 = vmatmul.mubr.f32.gmra.mrb[0].mxu0 %v3330
    %v3398 = vpop.f32.mrb[0].mxu0
    %v3399 = vadd.f32 %v486, %v3398
    %v3400 = vpop.f32.mrb[0].mxu0
    %v3401 = vadd.f32 %v490, %v3400
    %3402 = vdwg.mxu0
    %v3403 = vld [vmem:[#allocation2 + $0x78] sm:$0xff]
    %v3404 = vld [vmem:[#allocation3] sm:$0xff]
    %v3405 = vadd.f32 %v3403, %v3399
    %v3406 = vxor.u32 %v3405, 2147483648
    %v3407 = vmul.f32 %v3406, 1.442695
    %v3408 = vpow.pop %v3407
    %v3409 = vadd.f32 %v3408, 1.0
    %v3410 = vrcp.pop %v3409
    %v3411 = vmul.f32 1.0, %v3410
    %3414 = vrot.lane.b32.xlu0 %v3399, 32
    %v3415 = vpop.permute.xlu0 %3414
    %3416 = vrot.lane.b32.xlu0 %v3401, 32
    %v3417 = vpop.permute.xlu0 %3416
    %v3418 = vsel %vm83, %v3415, %v3417
    %v3420 = vadd.f32 %v3404, %v3418
    %v3421 = vxor.u32 %v3420, 2147483648
    %v3422 = vmul.f32 %v3421, 1.442695
    %v3423 = vpow.pop %v3422
    %v3424 = vadd.f32 %v3423, 1.0
    %v3425 = vrcp.pop %v3424
    %v3426 = vmul.f32 1.0, %v3425
    %3427 = vrot.lane.b32.xlu0 %v3399, 64
    %v3428 = vpop.permute.xlu0 %3427
    %v3430 = vmul.f32 %v3411, %v3428
    %3432 = vrot.lane.b32.xlu0 %v3430, 64
    %v3433 = vpop.permute.xlu0 %3432
    %v3435 = vadd.f32 %v3403, %v3433
    %v3436 = vtanh.pop %v3435
    %3437 = vrot.lane.b32.xlu0 %v3401, 96
    %v3438 = vpop.permute.xlu0 %3437
    %v3440 = vmul.f32 %v3426, %v3438
    %3442 = vrot.lane.b32.xlu0 %v3440, 64
    %v3443 = vpop.permute.xlu0 %3442
    %v3445 = vadd.f32 %v3404, %v3443
    %v3446 = vtanh.pop %v3445
    %3448 = vrot.lane.b32.xlu0 %v3436, 64
    %v3449 = vpop.permute.xlu0 %3448
    %v3451 = vsub.f32 %v3326, %v3449
    %3453 = vrot.lane.b32.xlu0 %v3451, 32
    %v3454 = vpop.permute.xlu0 %3453
    %v3456 = vmul.f32 %v3411, %v3454
    %3458 = vrot.lane.b32.xlu0 %v3456, 32
    %v3459 = vpop.permute.xlu0 %3458
    %v3461 = vadd.f32 %v3436, %v3459
    %3463 = vrot.lane.b32.xlu0 %v3446, 96
    %v3464 = vpop.permute.xlu0 %3463
    %v3466 = vsub.f32 %v3326, %v3464
    %v3467 = vmul.f32 %v3426, %v3466
    %3469 = vrot.lane.b32.xlu0 %v3467, 32
    %v3470 = vpop.permute.xlu0 %3469
    %v3472 = vadd.f32 %v3446, %v3470
    %v3473 = vstv %s3327
    %vm3474 = vcmp.gt.s32.totalorder %v454, %v3473
    %v3475 = vstv %s3328
    %vm3476 = vcmp.gt.s32.totalorder %v454, %v3475
    %v3477 = vsel %vm3474, 1, 0
    %3478 = vset.pattern.permute.xlu0 0
    %3479 = vperm.xlu0 %3478, %v3477
    %v3480 = vpop.permute.xlu0 %3479
    %vm3481 = vcmp.eq.s32.totalorder %v3480, 1
    %3482 = vrot.lane.b32.xlu0 %v3326, 64
    %v3483 = vpop.permute.xlu0 %3482
    %v3485 = vsel %vm3481, %v3461, %v3483
    %v3486 = vsel %vm3476, 1, 0
    %3487 = vset.pattern.permute.xlu0 0
    %3488 = vperm.xlu0 %3487, %v3486
    %v3489 = vpop.permute.xlu0 %3488
    %vm3490 = vcmp.eq.s32.totalorder %v3489, 1
    %3491 = vrot.lane.b32.xlu0 %v3326, 32
    %v3492 = vpop.permute.xlu0 %3491
    %v3494 = vsel %vm3490, %v3472, %v3492
    %v3495 = vsel %vm3481, %v3461, 0.0
    %v3496 = vsel %vm3490, %v3472, 0.0
    %3498 = vrot.lane.b32.xlu0 %v3495, 64
    %v3499 = vpop.permute.xlu0 %3498
    %3501 = vst.msk [vmem:[%s6 + $0x78] sm:$0xff] %vm83, %v3499
    %3503 = vrot.lane.b32.xlu0 %v3496, 64
    %v3504 = vpop.permute.xlu0 %3503
    %3506 = vst.msk [vmem:[#allocation4] sm:$0xff] %vm83, %v3504
    %3508 = vrot.lane.b32.xlu0 %v3485, 64
    %v3509 = vpop.permute.xlu0 %3508
    %3512 = vrot.lane.b32.xlu0 %v3494, 96
    %v3513 = vpop.permute.xlu0 %3512
    %v3515 = vsel %vm83, %v3509, %v3513
    %3516 = vst.msk [vmem:[#allocation8] sm:$0xff] %vm83, %v3515
    %3518 = vrot.lane.b32.xlu0 %v3515, 96
    %v3519 = vpop.permute.xlu0 %3518
    %3521 = vst.msk [vmem:[%s473] sm:$0xff] %vm83, %v3519
    %v3522 = vld [vmem:[%s6] sm:$0xff]
    %v3523 = vld [vmem:[%s6 + $0x8] sm:$0xff]
    %v3524 = vld [vmem:[%s6 + $0x10] sm:$0xff]
    %v3525 = vld [vmem:[%s6 + $0x18] sm:$0xff]
    %v3526 = vld [vmem:[%s6 + $0x20] sm:$0xff]
    %v3527 = vld [vmem:[%s6 + $0x28] sm:$0xff]
    %v3528 = vld [vmem:[%s6 + $0x30] sm:$0xff]
    %v3529 = vld [vmem:[%s6 + $0x38] sm:$0xff]
    %v3530 = vld [vmem:[%s6 + $0x40] sm:$0xff]
    %v3531 = vld [vmem:[%s6 + $0x48] sm:$0xff]
    %v3532 = vld [vmem:[%s6 + $0x50] sm:$0xff]
    %v3533 = vld [vmem:[%s6 + $0x58] sm:$0xff]
    %v3534 = vld [vmem:[%s6 + $0x60] sm:$0xff]
    %v3535 = vld [vmem:[%s6 + $0x68] sm:$0xff]
    %v3536 = vld [vmem:[%s6 + $0x70] sm:$0xff]
    %v3537 = vld [vmem:[%s6 + $0x78] sm:$0xff]
    %v3538 = vld [vmem:[#allocation4] sm:$0xff]
    %v3539 = vld [vmem:[#allocation4 + $0x8] sm:$0xff]
    %v3540 = vld [vmem:[#allocation4 + $0x10] sm:$0xff]
    %v3541 = vld [vmem:[#allocation4 + $0x18] sm:$0xff]
    %v3542 = vld [vmem:[#allocation4 + $0x20] sm:$0xff]
    %v3543 = vld [vmem:[#allocation4 + $0x28] sm:$0xff]
    %v3544 = vld [vmem:[#allocation4 + $0x30] sm:$0xff]
    %v3545 = vld [vmem:[#allocation4 + $0x38] sm:$0xff]
    %v3546 = vld [vmem:[#allocation4 + $0x40] sm:$0xff]
    %v3547 = vld [vmem:[#allocation4 + $0x48] sm:$0xff]
    %v3548 = vld [vmem:[#allocation4 + $0x50] sm:$0xff]
    %v3549 = vld [vmem:[#allocation4 + $0x58] sm:$0xff]
    %v3550 = vld [vmem:[#allocation4 + $0x60] sm:$0xff]
    %v3551 = vld [vmem:[#allocation4 + $0x68] sm:$0xff]
    %v3552 = vld [vmem:[#allocation4 + $0x70] sm:$0xff]
    %v3553 = vld [vmem:[#allocation4 + $0x78] sm:$0xff]
    %v3554 = vadd.f32 %v3522, %v3538
    %v3555 = vadd.f32 %v3523, %v3539
    %v3556 = vadd.f32 %v3524, %v3540
    %v3557 = vadd.f32 %v3525, %v3541
    %v3558 = vadd.f32 %v3526, %v3542
    %v3559 = vadd.f32 %v3527, %v3543
    %v3560 = vadd.f32 %v3528, %v3544
    %v3561 = vadd.f32 %v3529, %v3545
    %v3562 = vadd.f32 %v3530, %v3546
    %v3563 = vadd.f32 %v3531, %v3547
    %v3564 = vadd.f32 %v3532, %v3548
    %v3565 = vadd.f32 %v3533, %v3549
    %v3566 = vadd.f32 %v3534, %v3550
    %v3567 = vadd.f32 %v3535, %v3551
    %v3568 = vadd.f32 %v3536, %v3552
    %v3569 = vadd.f32 %v3537, %v3553
    %3570 = vst.msk [vmem:[%s6] sm:$0xff] %vm83, %v3554
    %3571 = vst.msk [vmem:[%s6 + $0x8] sm:$0xff] %vm83, %v3555
    %3572 = vst.msk [vmem:[%s6 + $0x10] sm:$0xff] %vm83, %v3556
    %3573 = vst.msk [vmem:[%s6 + $0x18] sm:$0xff] %vm83, %v3557
    %3574 = vst.msk [vmem:[%s6 + $0x20] sm:$0xff] %vm83, %v3558
    %3575 = vst.msk [vmem:[%s6 + $0x28] sm:$0xff] %vm83, %v3559
    %3576 = vst.msk [vmem:[%s6 + $0x30] sm:$0xff] %vm83, %v3560
    %3577 = vst.msk [vmem:[%s6 + $0x38] sm:$0xff] %vm83, %v3561
    %3578 = vst.msk [vmem:[%s6 + $0x40] sm:$0xff] %vm83, %v3562
    %3579 = vst.msk [vmem:[%s6 + $0x48] sm:$0xff] %vm83, %v3563
    %3580 = vst.msk [vmem:[%s6 + $0x50] sm:$0xff] %vm83, %v3564
    %3581 = vst.msk [vmem:[%s6 + $0x58] sm:$0xff] %vm83, %v3565
    %3582 = vst.msk [vmem:[%s6 + $0x60] sm:$0xff] %vm83, %v3566
    %3583 = vst.msk [vmem:[%s6 + $0x68] sm:$0xff] %vm83, %v3567
    %3584 = vst.msk [vmem:[%s6 + $0x70] sm:$0xff] %vm83, %v3568
    %3585 = vst.msk [vmem:[%s6 + $0x78] sm:$0xff] %vm83, %v3569
    // Predicated region
    $region34: #{tpu_custom_call.1} parent=1 // pred_check
      _
    $region35: #{tpu_custom_call.1} parent=1 // pred_check_branch
      %3587 = sbr.rel (0) target = $region37
    $region36: #{tpu_custom_call.1} parent=1 // pred_region
      _
    $region37: #{tpu_custom_call.1} parent=1 // pred_fallthru
      _
    // Predicated region
    $region38: #{tpu_custom_call.1} parent=1 // pred_check
      _
    $region39: #{tpu_custom_call.1} parent=1 // pred_check_branch
      %3589 = sbr.rel (0) target = $region41
    $region40: #{tpu_custom_call.1} parent=1 // pred_region
      %s3591 = ssub.s32 256, 256
      %3592 = vsyncadd [#allocation7], %s3591
      %s3593 = sshll.u32 [#allocation8], 4
      %s3594 = int_to_ptr.vmem [resolvable:$true] %s3593
      %3599 = dma.vmem_to_hbm [thread:$0]  %s3594, 256, %s7, [#allocation7], 128, 128, 8
    $region41: #{tpu_custom_call.1} parent=1 // pred_fallthru
      _
    // Predicated region
    $region42: #{tpu_custom_call.1} parent=1 // pred_check
      _
    $region43: #{tpu_custom_call.1} parent=1 // pred_check_branch
      %3601 = sbr.rel (0) target = $region45
    $region44: #{tpu_custom_call.1} parent=1 // pred_region
      _
    $region45: #{tpu_custom_call.1} parent=1 // pred_fallthru
      _
    // Predicated region
    $region46: #{tpu_custom_call.1} parent=1 // pred_check
      _
    $region47: #{tpu_custom_call.1} parent=1 // pred_check_branch
      %3603 = sbr.rel (0) target = $region49
    $region48: #{tpu_custom_call.1} parent=1 // pred_region
      %3604 = dma.done [#allocation7], 256
    $region49: #{tpu_custom_call.1} parent=1 // pred_fallthru
      _
    %3605 = vsyncpa [#allocation6], 1
    %3606 = vsyncpa [#allocation7], 1

</llo_original>
